<compile_context>
chip_gen: v6e
topology: v6e:2x2x1
jax: 0.10.0
libtpu: 0.0.40
codegen_flags: <defaults>
</compile_context>

<pallas_src>
import functools
import math

import jax
import jax.numpy as jnp
from jax.experimental import pallas as pl
from jax.experimental.pallas import tpu as pltpu


def _round_up(v, m):
    return ((v + m - 1) // m) * m


def simple_model_kernel(x_ref, we_t_ref, wqkv_t_ref, wc_t_ref,
                        be_ref, bqkv_ref, bc_ref, out_ref, *, seq_len):
    M, D_in = x_ref.shape            # M = batch_tile * seq_len (dense row slab)
    E_pad = we_t_ref.shape[1]
    C_pad = wc_t_ref.shape[1]
    S = seq_len
    BB = M // S                      # batch elements in this tile

    # ---- embedding: (M, D_in) @ (D_in, E_pad) in f32 (K tiny; x stays un-cast) ----
    emb = jnp.dot(x_ref[...], we_t_ref[...],
                  preferred_element_type=jnp.float32) + be_ref[...]      # (M, E_pad) f32

    # ---- fused Q/K/V projection: (M, E_pad) @ (E_pad, 3*E_pad), bf16 MXU / f32 acc ----
    qkv = jnp.dot(emb.astype(jnp.bfloat16), wqkv_t_ref[...],
                  preferred_element_type=jnp.float32) + bqkv_ref[...]    # (M, 3E_pad) f32
    qkv = qkv.reshape(BB, S, 3 * E_pad)
    # lane-aligned slices: offsets 0 / E_pad / 2*E_pad are 128-multiples.
    q = qkv[..., :E_pad]             # 1/sqrt(E) already folded into W_q / b_q
    k = qkv[..., E_pad:2 * E_pad]
    v = qkv[..., 2 * E_pad:]

    # ---- attention scores + numerically-stable softmax ----
    scores = jnp.einsum("bqe,bke->bqk",
                        q.astype(jnp.bfloat16), k.astype(jnp.bfloat16),
                        preferred_element_type=jnp.float32)              # (BB, S, S) f32
    m = jnp.max(scores, axis=-1, keepdims=True)
    e = jnp.exp(scores - m)
    inv = pl.reciprocal(jnp.sum(e, axis=-1, keepdims=True), approx=True)
    attn = e * inv                                                       # (BB, S, S) f32

    # ---- mean pool over queries fused into the value product (exact by linearity);
    #      1-row-per-batch matmul replaced by a VPU weighted sum over keys ----
    w = jnp.mean(attn, axis=1)                                           # (BB, S) f32
    pooled = jnp.sum(w[:, :, None] * v, axis=1)                          # (BB, E_pad) f32

    # ---- classifier: (BB, E_pad) @ (E_pad, C_pad), lane-dense padded output ----
    logits = jnp.dot(pooled.astype(jnp.bfloat16), wc_t_ref[...],
                     preferred_element_type=jnp.float32) + bc_ref[...]   # (BB, C_pad) f32

    out_ref[...] = logits.astype(out_ref.dtype)                          # dense 2D store

    # TODO(synk): for long sequences, tile keys flash-style (online softmax) so the
    # (BB, S, S) scores never materialize and the working set fits v7x's 64 MiB VMEM.


def prepare_params(params):
    """One-time re-layout of torch-Linear-style params (W: [out, in]) for the kernel.

    Hoisted out of the forward so transposes / padding / bf16 casts never run in the
    hot path.  E is padded to a 128 multiple (lane-aligned q/k/v slices), C likewise.
    All padding is with zeros and is numerically exact.
    """
    E, _D_in = params["we"].shape
    C = params["wc"].shape[0]
    D_in = _D_in
    E_pad = _round_up(E, 128)
    C_pad = _round_up(C, 128)
    scale = 1.0 / math.sqrt(E)       # true embed_dim, folded into W_q / b_q

    # embedding weight stays f32 (tiny K; lets x go in un-cast, better accuracy).
    we_t = jnp.zeros((D_in, E_pad), jnp.float32).at[:, :E].set(params["we"].T)

    # fused Q/K/V; each output segment padded to E_pad so slices are lane-aligned.
    wqkv_t = jnp.zeros((E_pad, 3 * E_pad), jnp.float32)
    wqkv_t = wqkv_t.at[:E, 0 * E_pad:0 * E_pad + E].set((params["wq"] * scale).T)
    wqkv_t = wqkv_t.at[:E, 1 * E_pad:1 * E_pad + E].set(params["wk"].T)
    wqkv_t = wqkv_t.at[:E, 2 * E_pad:2 * E_pad + E].set(params["wv"].T)
    wqkv_t = wqkv_t.astype(jnp.bfloat16)

    wc_t = jnp.zeros((E_pad, C_pad), jnp.float32).at[:E, :C].set(params["wc"].T)
    wc_t = wc_t.astype(jnp.bfloat16)

    # biases as three separate lane-aligned operands (f32).
    be = jnp.zeros((1, E_pad), jnp.float32).at[0, :E].set(params["be"])
    bqkv = jnp.zeros((1, 3 * E_pad), jnp.float32)
    bqkv = bqkv.at[0, 0 * E_pad:0 * E_pad + E].set(params["bq"] * scale)
    bqkv = bqkv.at[0, 1 * E_pad:1 * E_pad + E].set(params["bk"])
    bqkv = bqkv.at[0, 2 * E_pad:2 * E_pad + E].set(params["bv"])
    bc = jnp.zeros((1, C_pad), jnp.float32).at[0, :C].set(params["bc"])

    return dict(we_t=we_t, wqkv_t=wqkv_t, wc_t=wc_t,
                be=be, bqkv=bqkv, bc=bc, num_classes=C)


def _pick_batch_tile(B, S):
    """Prefer: legal dense tile (multiple of 8 sublanes or the full batch),
    >= 2 grid steps (both v7x TensorCores), M = bt*S up to ~256 rows per step."""
    divisors = [d for d in range(1, B + 1) if B % d == 0]

    def score(d):
        legal = (d % 8 == 0) or (d == B)
        two_steps = (B // d) >= 2
        return (legal, two_steps, min(d * S, 256), -d)

    return max(divisors, key=score)


def simple_model_forward(x, prepared, *, batch_tile=None):
    """x: (B, S, D_in) float32.  `prepared` comes from prepare_params()."""
    B, S, D_in = x.shape
    E_pad = prepared["we_t"].shape[1]
    C_pad = prepared["wc_t"].shape[1]
    C = prepared["num_classes"]

    if batch_tile is None:
        batch_tile = _pick_batch_tile(B, S)
    assert B % batch_tile == 0, "batch_tile must divide batch"
    assert batch_tile % 8 == 0 or batch_tile == B, \
        "batch_tile must be a multiple of 8 (or the full batch) for dense tiles"

    M_tile = batch_tile * S
    grid = (B // batch_tile,)

    kernel = functools.partial(simple_model_kernel, seq_len=S)

    # per-call work is just a (metadata) reshape; all param re-layout was done once.
    x2d = x.reshape(B * S, D_in)

    out = pl.pallas_call(
        kernel,
        out_shape=jax.ShapeDtypeStruct((B, C_pad), jnp.float32),
        grid=grid,
        in_specs=[
            pl.BlockSpec((M_tile, D_in), lambda b: (b, 0)),     # x rows for this tile
            # weights / biases: constant block index -> stay VMEM-resident across steps.
            # (pl.Buffered(1) would drop their second pipeline buffer; irrelevant at
            #  this size, worth adding if E / C grow on v7x's 64 MiB VMEM.)
            pl.BlockSpec((D_in, E_pad), lambda b: (0, 0)),
            pl.BlockSpec((E_pad, 3 * E_pad), lambda b: (0, 0)),
            pl.BlockSpec((E_pad, C_pad), lambda b: (0, 0)),
            pl.BlockSpec((1, E_pad), lambda b: (0, 0)),
            pl.BlockSpec((1, 3 * E_pad), lambda b: (0, 0)),
            pl.BlockSpec((1, C_pad), lambda b: (0, 0)),
        ],
        out_specs=pl.BlockSpec((batch_tile, C_pad), lambda b: (b, 0)),
        compiler_params=pltpu.CompilerParams(
            dimension_semantics=("parallel",),   # shard batch tiles across v7x's 2 TCs
            vmem_limit_bytes=32 * 1024 * 1024,
        ),
    )(x2d, prepared["we_t"], prepared["wqkv_t"], prepared["wc_t"],
      prepared["be"], prepared["bqkv"], prepared["bc"])

    return out[:, :C]                                           # (B, C)


def init_params(key, input_dim, embed_dim, num_classes):
    """Deterministic, PyTorch-Linear-shaped parameters (W: [out, in], b: [out])."""
    ks = jax.random.split(key, 10)

    def lin(kw, kb, out_f, in_f):
        bound = 1.0 / math.sqrt(in_f)
        w = jax.random.uniform(kw, (out_f, in_f), jnp.float32, -bound, bound)
        b = jax.random.uniform(kb, (out_f,), jnp.float32, -bound, bound)
        return w, b

    we, be = lin(ks[0], ks[1], embed_dim, input_dim)
    wq, bq = lin(ks[2], ks[3], embed_dim, embed_dim)
    wk, bk = lin(ks[4], ks[5], embed_dim, embed_dim)
    wv, bv = lin(ks[6], ks[7], embed_dim, embed_dim)
    wc, bc = lin(ks[8], ks[9], num_classes, embed_dim)
    return dict(we=we, be=be, wq=wq, bq=bq, wk=wk, bk=bk,
                wv=wv, bv=bv, wc=wc, bc=bc)


def ref_fwd(x, p):
    """Pure-JAX f32 reference matching the PyTorch module."""
    embed_dim = p["we"].shape[0]
    emb = jnp.einsum("bsd,ed->bse", x, p["we"]) + p["be"]
    q = jnp.einsum("bse,fe->bsf", emb, p["wq"]) + p["bq"]
    k = jnp.einsum("bse,fe->bsf", emb, p["wk"]) + p["bk"]
    v = jnp.einsum("bse,fe->bsf", emb, p["wv"]) + p["bv"]
    s = jnp.einsum("bqe,bke->bqk", q, k) / math.sqrt(embed_dim)
    a = jax.nn.softmax(s, axis=-1)
    o = jnp.einsum("bqk,bke->bqe", a, v)
    pooled = jnp.mean(o, axis=1)
    return jnp.einsum("be,ce->bc", pooled, p["wc"]) + p["bc"]


if __name__ == "__main__":
    input_dim, embed_dim, num_classes = 10, 64, 2
    # seq=8 per the module; batch=64 with batch_tile=32 gives M = 256 rows per grid
    # step and a grid of 2 parallel steps (both v7x TensorCores).  Total data stays tiny.
    batch, seq_len = 64, 8

    key = jax.random.PRNGKey(0)
    kx, kp = jax.random.split(key)
    x = jax.random.normal(kx, (batch, seq_len, input_dim), jnp.float32)
    params = init_params(kp, input_dim, embed_dim, num_classes)

    prepared = prepare_params(params)        # one-time re-layout, not in the hot path

    logits = simple_model_forward(x, prepared, batch_tile=32)
    jax.block_until_ready(logits)

    ref = ref_fwd(x, params)
    assert logits.shape == (batch, num_classes)
    # bf16 MXU operands for QKV/scores/classifier + approx reciprocal -> compare vs the
    # f32 reference with a bf16-appropriate tolerance (observed error << 5e-2 here).
    err = float(jnp.max(jnp.abs(logits - ref)))
    assert jnp.allclose(logits, ref, atol=5e-2, rtol=5e-2), \
        f"mismatch vs reference (max abs err {err})"

    print("KERNEL_OK")
</pallas_src>

<mosaic_0001>
module attributes {stable_mosaic.version = 11 : i64} {
  func.func @simple_model_kernel(%arg0: i32, %arg1: memref<256x10xf32, #tpu.memory_space<vmem>>, %arg2: memref<10x128xf32, #tpu.memory_space<vmem>>, %arg3: memref<128x384xbf16, #tpu.memory_space<vmem>>, %arg4: memref<128x128xbf16, #tpu.memory_space<vmem>>, %arg5: memref<1x128xf32, #tpu.memory_space<vmem>>, %arg6: memref<1x384xf32, #tpu.memory_space<vmem>>, %arg7: memref<1x128xf32, #tpu.memory_space<vmem>>, %arg8: memref<32x128xf32, #tpu.memory_space<vmem>>) attributes {dimension_semantics = [#tpu.dimension_semantics<parallel>], iteration_bounds = array<i64: 2>, scalar_prefetch = 0 : i64, scratch_operands = 0 : i64, tpu.core_type = #tpu.core_type<tc>, window_params = [{transform_indices = @transform_0, window_bounds = array<i64: 256, 10>}, {pipeline_mode = #tpu.pipeline_mode<synchronous>, transform_indices = @transform_1, window_bounds = array<i64: 10, 128>}, {pipeline_mode = #tpu.pipeline_mode<synchronous>, transform_indices = @transform_2, window_bounds = array<i64: 128, 384>}, {pipeline_mode = #tpu.pipeline_mode<synchronous>, transform_indices = @transform_3, window_bounds = array<i64: 128, 128>}, {pipeline_mode = #tpu.pipeline_mode<synchronous>, transform_indices = @transform_4, window_bounds = array<i64: 1, 128>}, {pipeline_mode = #tpu.pipeline_mode<synchronous>, transform_indices = @transform_5, window_bounds = array<i64: 1, 384>}, {pipeline_mode = #tpu.pipeline_mode<synchronous>, transform_indices = @transform_6, window_bounds = array<i64: 1, 128>}, {transform_indices = @transform_7, window_bounds = array<i64: 32, 128>}]} {
    %c0 = arith.constant 0 : index
    %c0_0 = arith.constant 0 : index
    %0 = vector.load %arg1[%c0, %c0_0] : memref<256x10xf32, #tpu.memory_space<vmem>>, vector<256x10xf32>
    %c0_1 = arith.constant 0 : index
    %c0_2 = arith.constant 0 : index
    %1 = vector.load %arg2[%c0_1, %c0_2] : memref<10x128xf32, #tpu.memory_space<vmem>>, vector<10x128xf32>
    %cst = arith.constant dense<0.000000e+00> : vector<256x128xf32>
    %2 = tpu.matmul %0, %1, %cst {dimension_numbers = #tpu.dot_dimension_numbers<[1], [0], [0], [1], [0, 0, 1, 1], [], []>} : vector<256x10xf32>, vector<10x128xf32>, vector<256x128xf32> -> vector<256x128xf32>
    %c0_3 = arith.constant 0 : index
    %c0_4 = arith.constant 0 : index
    %3 = vector.load %arg5[%c0_3, %c0_4] : memref<1x128xf32, #tpu.memory_space<vmem>>, vector<1x128xf32>
    %4 = vector.broadcast %3 : vector<1x128xf32> to vector<256x128xf32>
    %5 = arith.addf %2, %4 : vector<256x128xf32>
    %6 = arith.truncf %5 : vector<256x128xf32> to vector<256x128xbf16>
    %c0_5 = arith.constant 0 : index
    %c0_6 = arith.constant 0 : index
    %7 = vector.load %arg3[%c0_5, %c0_6] : memref<128x384xbf16, #tpu.memory_space<vmem>>, vector<128x384xbf16>
    %cst_7 = arith.constant dense<0.000000e+00> : vector<256x384xf32>
    %8 = tpu.matmul %6, %7, %cst_7 {dimension_numbers = #tpu.dot_dimension_numbers<[1], [0], [0], [1], [0, 0, 1, 1], [], []>} : vector<256x128xbf16>, vector<128x384xbf16>, vector<256x384xf32> -> vector<256x384xf32>
    %c0_8 = arith.constant 0 : index
    %c0_9 = arith.constant 0 : index
    %9 = vector.load %arg6[%c0_8, %c0_9] : memref<1x384xf32, #tpu.memory_space<vmem>>, vector<1x384xf32>
    %10 = vector.broadcast %9 : vector<1x384xf32> to vector<256x384xf32>
    %11 = arith.addf %8, %10 : vector<256x384xf32>
    %12 = vector.shape_cast %11 : vector<256x384xf32> to vector<32x8x384xf32>
    %13 = vector.extract_strided_slice %12 {offsets = [0, 0, 0], sizes = [32, 8, 128], strides = [1, 1, 1]} : vector<32x8x384xf32> to vector<32x8x128xf32>
    %14 = vector.extract_strided_slice %12 {offsets = [0, 0, 128], sizes = [32, 8, 128], strides = [1, 1, 1]} : vector<32x8x384xf32> to vector<32x8x128xf32>
    %15 = vector.extract_strided_slice %12 {offsets = [0, 0, 256], sizes = [32, 8, 128], strides = [1, 1, 1]} : vector<32x8x384xf32> to vector<32x8x128xf32>
    %16 = arith.truncf %13 : vector<32x8x128xf32> to vector<32x8x128xbf16>
    %17 = arith.truncf %14 : vector<32x8x128xf32> to vector<32x8x128xbf16>
    "tpu.trace_start"() <{level = 10 : i32, message = "bqe,bke->bqk"}> : () -> ()
    %cst_10 = arith.constant dense<0.000000e+00> : vector<32x8x8xf32>
    %18 = tpu.matmul %16, %17, %cst_10 {dimension_numbers = #tpu.dot_dimension_numbers<[2], [2], [1], [1], [0, 0, 0, 1, 1, 1], [0], [0]>} : vector<32x8x128xbf16>, vector<32x8x128xbf16>, vector<32x8x8xf32> -> vector<32x8x8xf32>
    "tpu.trace_stop"() : () -> ()
    %cst_11 = arith.constant dense<0xFF800000> : vector<32x8xf32>
    %19 = vector.multi_reduction <maximumf>, %18, %cst_11 [2] : vector<32x8x8xf32> to vector<32x8xf32>
    %20 = vector.shape_cast %19 : vector<32x8xf32> to vector<32x8x1xf32>
    %21 = vector.broadcast %20 : vector<32x8x1xf32> to vector<32x8x8xf32>
    %22 = arith.subf %18, %21 : vector<32x8x8xf32>
    %23 = math.exp %22 : vector<32x8x8xf32>
    %cst_12 = arith.constant dense<0.000000e+00> : vector<32x8xf32>
    %24 = vector.multi_reduction <add>, %23, %cst_12 [2] : vector<32x8x8xf32> to vector<32x8xf32>
    %25 = vector.shape_cast %24 : vector<32x8xf32> to vector<32x8x1xf32>
    %26 = tpu.reciprocal %25 {approx = true} : vector<32x8x1xf32> -> vector<32x8x1xf32>
    %27 = vector.broadcast %26 : vector<32x8x1xf32> to vector<32x8x8xf32>
    %28 = arith.mulf %23, %27 : vector<32x8x8xf32>
    %cst_13 = arith.constant dense<0.000000e+00> : vector<32x8xf32>
    %29 = vector.multi_reduction <add>, %28, %cst_13 [1] : vector<32x8x8xf32> to vector<32x8xf32>
    %cst_14 = arith.constant 8.000000e+00 : f32
    %30 = vector.broadcast %cst_14 : f32 to vector<32x8xf32>
    %31 = arith.divf %29, %30 : vector<32x8xf32>
    %32 = vector.shape_cast %31 : vector<32x8xf32> to vector<32x8x1xf32>
    %33 = vector.broadcast %32 : vector<32x8x1xf32> to vector<32x8x128xf32>
    %34 = arith.mulf %33, %15 : vector<32x8x128xf32>
    %cst_15 = arith.constant dense<0.000000e+00> : vector<32x128xf32>
    %35 = vector.multi_reduction <add>, %34, %cst_15 [1] : vector<32x8x128xf32> to vector<32x128xf32>
    %36 = arith.truncf %35 : vector<32x128xf32> to vector<32x128xbf16>
    %c0_16 = arith.constant 0 : index
    %c0_17 = arith.constant 0 : index
    %37 = vector.load %arg4[%c0_16, %c0_17] : memref<128x128xbf16, #tpu.memory_space<vmem>>, vector<128x128xbf16>
    %cst_18 = arith.constant dense<0.000000e+00> : vector<32x128xf32>
    %38 = tpu.matmul %36, %37, %cst_18 {dimension_numbers = #tpu.dot_dimension_numbers<[1], [0], [0], [1], [0, 0, 1, 1], [], []>} : vector<32x128xbf16>, vector<128x128xbf16>, vector<32x128xf32> -> vector<32x128xf32>
    %c0_19 = arith.constant 0 : index
    %c0_20 = arith.constant 0 : index
    %39 = vector.load %arg7[%c0_19, %c0_20] : memref<1x128xf32, #tpu.memory_space<vmem>>, vector<1x128xf32>
    %40 = vector.broadcast %39 : vector<1x128xf32> to vector<32x128xf32>
    %41 = arith.addf %38, %40 : vector<32x128xf32>
    %c0_21 = arith.constant 0 : index
    %c0_22 = arith.constant 0 : index
    %42 = vector.load %arg8[%c0_21, %c0_22] : memref<32x128xf32, #tpu.memory_space<vmem>>, vector<32x128xf32>
    tpu.vector_store %arg8[%c0_21, %c0_22], %41 {strides = array<i32>} : memref<32x128xf32, #tpu.memory_space<vmem>>, vector<32x128xf32>,
    return
  }
  func.func @transform_0(%arg0: i32) -> (i32, i32) {
    %c0_i32 = arith.constant 0 : i32
    %c0_i32_0 = arith.constant 0 : i32
    return %arg0, %c0_i32 : i32, i32
  }
  func.func @transform_1(%arg0: i32) -> (i32, i32) {
    %c0_i32 = arith.constant 0 : i32
    %c0_i32_0 = arith.constant 0 : i32
    %c0_i32_1 = arith.constant 0 : i32
    return %c0_i32, %c0_i32_0 : i32, i32
  }
  func.func @transform_2(%arg0: i32) -> (i32, i32) {
    %c0_i32 = arith.constant 0 : i32
    %c0_i32_0 = arith.constant 0 : i32
    %c0_i32_1 = arith.constant 0 : i32
    return %c0_i32, %c0_i32_0 : i32, i32
  }
  func.func @transform_3(%arg0: i32) -> (i32, i32) {
    %c0_i32 = arith.constant 0 : i32
    %c0_i32_0 = arith.constant 0 : i32
    %c0_i32_1 = arith.constant 0 : i32
    return %c0_i32, %c0_i32_0 : i32, i32
  }
  func.func @transform_4(%arg0: i32) -> (i32, i32) {
    %c0_i32 = arith.constant 0 : i32
    %c0_i32_0 = arith.constant 0 : i32
    %c0_i32_1 = arith.constant 0 : i32
    return %c0_i32, %c0_i32_0 : i32, i32
  }
  func.func @transform_5(%arg0: i32) -> (i32, i32) {
    %c0_i32 = arith.constant 0 : i32
    %c0_i32_0 = arith.constant 0 : i32
    %c0_i32_1 = arith.constant 0 : i32
    return %c0_i32, %c0_i32_0 : i32, i32
  }
  func.func @transform_6(%arg0: i32) -> (i32, i32) {
    %c0_i32 = arith.constant 0 : i32
    %c0_i32_0 = arith.constant 0 : i32
    %c0_i32_1 = arith.constant 0 : i32
    return %c0_i32, %c0_i32_0 : i32, i32
  }
  func.func @transform_7(%arg0: i32) -> (i32, i32) {
    %c0_i32 = arith.constant 0 : i32
    %c0_i32_0 = arith.constant 0 : i32
    return %arg0, %c0_i32 : i32, i32
  }
}

</mosaic_0001>

<llo_original>
// kernel: tpu_custom_call.1
$region0: #{tpu_custom_call.1}
  #allocation0 [shape = 'u32[]', space=smem, size = 0x4, offset = 0x4, fixed_abs, tag = 'smem constant byte address 0x4 - core index']
  #allocation1 [shape = 'u32[144,128]{1,0:T(1,128)}', space=vmem, size = 0x12000, scoped, tag = 'internal scratch']
  %s0 = inlined_call_operand.vmem [shape: f32[512,10], index: 0, kind: input, shape index: {}]
  %s1 = inlined_call_operand.vmem [shape: f32[10,128], index: 1, kind: input, shape index: {}]
  %s2 = inlined_call_operand.vmem [shape: bf16[128,384], index: 2, kind: input, shape index: {}]
  %s3 = inlined_call_operand.vmem [shape: bf16[128,128], index: 3, kind: input, shape index: {}]
  %s4 = inlined_call_operand.vmem [shape: f32[1,128], index: 4, kind: input, shape index: {}]
  %s5 = inlined_call_operand.vmem [shape: f32[1,384], index: 5, kind: input, shape index: {}]
  %s6 = inlined_call_operand.vmem [shape: f32[1,128], index: 6, kind: input, shape index: {}]
  %s7 = inlined_call_operand.hbm [shape: f32[64,128], index: 7, kind: output, shape index: {}]
  %s8 = sld [smem:[#allocation0]]
  $region61: #{tpu_custom_call.1} parent=0
    _
  %s10 = ssub.s32 1, %s8
  %s11 = scalar_select 0, %s10, %s8
  $region1: #{tpu_custom_call.1} parent=0
    #allocation2 [shape = 'u8[32768]{0}', space=vmem, size = 0x8000, scoped, tag = 'output window, operand 0']
    #allocation3 [shape = 's32[2]{0}', space=sflag, size = 0x8, scoped, tag = 'scoped memory for tpu_custom_call.1']
    %12 = vsyncpa [#allocation3], 0
    %s13 = scalar_lea.sflag [#allocation3], 1
    %14 = vsyncpa %s13, 0
    loop: start=0, step=1, limit=4
    $region2: #{tpu_custom_call.1} parent=1 // loop_pre_header
      _
    $region3: #{tpu_custom_call.1} parent=1 // loop_header
      %s16 = sphi 0, %s20
      %p17 = scmp.ge.s32.totalorder %s16, 4
      %s26 = sphi 0, %s28
      %s29 = sphi 0, %s26
      %s30 = sphi 0, %s29
      %s46 = sphi 0, %s30
      %s50 = sphi 0, %s50
      %s52 = sphi 0, %s50
      %s53 = sphi 0, %s52
      %s67 = sphi 0, %s53
      %s71 = sphi 0, %s71
      %s73 = sphi 0, %s71
      %s74 = sphi 0, %s73
      %s88 = sphi 0, %s74
      %s92 = sphi 0, %s92
      %s94 = sphi 0, %s92
      %s95 = sphi 0, %s94
      %s109 = sphi 0, %s95
      %s113 = sphi 0, %s113
      %s115 = sphi 0, %s113
      %s116 = sphi 0, %s115
      %s130 = sphi 0, %s116
      %s134 = sphi 0, %s134
      %s136 = sphi 0, %s134
      %s137 = sphi 0, %s136
      %s151 = sphi 0, %s137
      %s155 = sphi 0, %s155
      %s157 = sphi 0, %s155
      %s158 = sphi 0, %s157
      %s172 = sphi 0, %s158
      %s178 = sphi 0, %s180
      %s181 = sphi 0, %s178
      %s182 = sphi 0, %s181
      %s198 = sphi 0, %s182
    $region4: #{tpu_custom_call.1} parent=1 // loop_header_branch
      %19 = sbr.rel (%p17) target = $region8
    $region5: #{tpu_custom_call.1} parent=1 // loop_body
      %s21 = ssub.s32 %s16, 1
      %s22 = ssub.s32 %s16, 2
      %s23 = sadd.s32 %s16, 1
      %s24 = ssub.s32 %s16, %s23
      %p25 = scmp.eq.s32.totalorder %s24, 0
      %s27 = sadd.s32 %s26, 1
      %s28 = scalar_select %p25, %s26, %s27
      %p31 = pneg %p25
      %p32 = scmp.eq.s32.totalorder %s16, 1
      %p33 = por %p31, %p32
      %p34 = scmp.ne.s32.totalorder %s26, %s29
      %p35 = scmp.eq.s32.totalorder %s16, 0
      %p36 = por %p34, %p35
      %p37 = scmp.ne.s32.totalorder %s26, %s29
      %p38 = scmp.eq.s32.totalorder %s21, 1
      %p39 = por %p37, %p38
      %p40 = scmp.ne.s32.totalorder %s29, %s30
      %p41 = scmp.eq.s32.totalorder %s21, 0
      %p42 = por %p40, %p41
      %p43 = scmp.ne.s32.totalorder %s29, %s30
      %p44 = scmp.eq.s32.totalorder %s22, 1
      %p45 = por %p43, %p44
      %p47 = scmp.ne.s32.totalorder %s30, %s46
      %p48 = scmp.eq.s32.totalorder %s22, 0
      %p49 = por %p47, %p48
      %s51 = sadd.s32 %s50, 1
      %p54 = scmp.eq.s32.totalorder %s16, 1
      %p55 = scmp.ne.s32.totalorder %s50, %s52
      %p56 = scmp.eq.s32.totalorder %s16, 0
      %p57 = por %p55, %p56
      %p58 = scmp.ne.s32.totalorder %s50, %s52
      %p59 = scmp.eq.s32.totalorder %s21, 1
      %p60 = por %p58, %p59
      %p61 = scmp.ne.s32.totalorder %s52, %s53
      %p62 = scmp.eq.s32.totalorder %s21, 0
      %p63 = por %p61, %p62
      %p64 = scmp.ne.s32.totalorder %s52, %s53
      %p65 = scmp.eq.s32.totalorder %s22, 1
      %p66 = por %p64, %p65
      %p68 = scmp.ne.s32.totalorder %s53, %s67
      %p69 = scmp.eq.s32.totalorder %s22, 0
      %p70 = por %p68, %p69
      %s72 = sadd.s32 %s71, 1
      %p75 = scmp.eq.s32.totalorder %s16, 1
      %p76 = scmp.ne.s32.totalorder %s71, %s73
      %p77 = scmp.eq.s32.totalorder %s16, 0
      %p78 = por %p76, %p77
      %p79 = scmp.ne.s32.totalorder %s71, %s73
      %p80 = scmp.eq.s32.totalorder %s21, 1
      %p81 = por %p79, %p80
      %p82 = scmp.ne.s32.totalorder %s73, %s74
      %p83 = scmp.eq.s32.totalorder %s21, 0
      %p84 = por %p82, %p83
      %p85 = scmp.ne.s32.totalorder %s73, %s74
      %p86 = scmp.eq.s32.totalorder %s22, 1
      %p87 = por %p85, %p86
      %p89 = scmp.ne.s32.totalorder %s74, %s88
      %p90 = scmp.eq.s32.totalorder %s22, 0
      %p91 = por %p89, %p90
      %s93 = sadd.s32 %s92, 1
      %p96 = scmp.eq.s32.totalorder %s16, 1
      %p97 = scmp.ne.s32.totalorder %s92, %s94
      %p98 = scmp.eq.s32.totalorder %s16, 0
      %p99 = por %p97, %p98
      %p100 = scmp.ne.s32.totalorder %s92, %s94
      %p101 = scmp.eq.s32.totalorder %s21, 1
      %p102 = por %p100, %p101
      %p103 = scmp.ne.s32.totalorder %s94, %s95
      %p104 = scmp.eq.s32.totalorder %s21, 0
      %p105 = por %p103, %p104
      %p106 = scmp.ne.s32.totalorder %s94, %s95
      %p107 = scmp.eq.s32.totalorder %s22, 1
      %p108 = por %p106, %p107
      %p110 = scmp.ne.s32.totalorder %s95, %s109
      %p111 = scmp.eq.s32.totalorder %s22, 0
      %p112 = por %p110, %p111
      %s114 = sadd.s32 %s113, 1
      %p117 = scmp.eq.s32.totalorder %s16, 1
      %p118 = scmp.ne.s32.totalorder %s113, %s115
      %p119 = scmp.eq.s32.totalorder %s16, 0
      %p120 = por %p118, %p119
      %p121 = scmp.ne.s32.totalorder %s113, %s115
      %p122 = scmp.eq.s32.totalorder %s21, 1
      %p123 = por %p121, %p122
      %p124 = scmp.ne.s32.totalorder %s115, %s116
      %p125 = scmp.eq.s32.totalorder %s21, 0
      %p126 = por %p124, %p125
      %p127 = scmp.ne.s32.totalorder %s115, %s116
      %p128 = scmp.eq.s32.totalorder %s22, 1
      %p129 = por %p127, %p128
      %p131 = scmp.ne.s32.totalorder %s116, %s130
      %p132 = scmp.eq.s32.totalorder %s22, 0
      %p133 = por %p131, %p132
      %s135 = sadd.s32 %s134, 1
      %p138 = scmp.eq.s32.totalorder %s16, 1
      %p139 = scmp.ne.s32.totalorder %s134, %s136
      %p140 = scmp.eq.s32.totalorder %s16, 0
      %p141 = por %p139, %p140
      %p142 = scmp.ne.s32.totalorder %s134, %s136
      %p143 = scmp.eq.s32.totalorder %s21, 1
      %p144 = por %p142, %p143
      %p145 = scmp.ne.s32.totalorder %s136, %s137
      %p146 = scmp.eq.s32.totalorder %s21, 0
      %p147 = por %p145, %p146
      %p148 = scmp.ne.s32.totalorder %s136, %s137
      %p149 = scmp.eq.s32.totalorder %s22, 1
      %p150 = por %p148, %p149
      %p152 = scmp.ne.s32.totalorder %s137, %s151
      %p153 = scmp.eq.s32.totalorder %s22, 0
      %p154 = por %p152, %p153
      %s156 = sadd.s32 %s155, 1
      %p159 = scmp.eq.s32.totalorder %s16, 1
      %p160 = scmp.ne.s32.totalorder %s155, %s157
      %p161 = scmp.eq.s32.totalorder %s16, 0
      %p162 = por %p160, %p161
      %p163 = scmp.ne.s32.totalorder %s155, %s157
      %p164 = scmp.eq.s32.totalorder %s21, 1
      %p165 = por %p163, %p164
      %p166 = scmp.ne.s32.totalorder %s157, %s158
      %p167 = scmp.eq.s32.totalorder %s21, 0
      %p168 = por %p166, %p167
      %p169 = scmp.ne.s32.totalorder %s157, %s158
      %p170 = scmp.eq.s32.totalorder %s22, 1
      %p171 = por %p169, %p170
      %p173 = scmp.ne.s32.totalorder %s158, %s172
      %p174 = scmp.eq.s32.totalorder %s22, 0
      %p175 = por %p173, %p174
      %s176 = ssub.s32 %s16, %s23
      %p177 = scmp.eq.s32.totalorder %s176, 0
      %s179 = sadd.s32 %s178, 1
      %s180 = scalar_select %p177, %s178, %s179
      %p183 = pneg %p177
      %p184 = scmp.eq.s32.totalorder %s16, 1
      %p185 = por %p183, %p184
      %p186 = scmp.ne.s32.totalorder %s178, %s181
      %p187 = scmp.eq.s32.totalorder %s16, 0
      %p188 = por %p186, %p187
      %p189 = scmp.ne.s32.totalorder %s178, %s181
      %p190 = scmp.eq.s32.totalorder %s21, 1
      %p191 = por %p189, %p190
      %p192 = scmp.ne.s32.totalorder %s181, %s182
      %p193 = scmp.eq.s32.totalorder %s21, 0
      %p194 = por %p192, %p193
      %p195 = scmp.ne.s32.totalorder %s181, %s182
      %p196 = scmp.eq.s32.totalorder %s22, 1
      %p197 = por %p195, %p196
      %p199 = scmp.ne.s32.totalorder %s182, %s198
      %p200 = scmp.eq.s32.totalorder %s22, 0
      %p201 = por %p199, %p200
      %p202 = scmp.le.s32.totalorder 1, %s16
      %p203 = scmp.lt.s32.totalorder %s16, 3
      %p204 = pnand %p202, %p203
      %p205 = pneg %p204
      // Predicated region
      $region9: #{tpu_custom_call.1} parent=5 // pred_check
        _
      $region10: #{tpu_custom_call.1} parent=5 // pred_check_branch
        %207 = sbr.rel (%p204) target = $region12
      $region11: #{tpu_custom_call.1} parent=5 // pred_region
        %s208 = ssub.s32 %s16, 1
        // Predicated region
        $region13: #{tpu_custom_call.1} parent=11 // pred_check
          %p209 = pneg %p63
        $region14: #{tpu_custom_call.1} parent=11 // pred_check_branch
          %211 = sbr.rel (%p209) target = $region16
        $region15: #{tpu_custom_call.1} parent=11 // pred_region
          _
        $region16: #{tpu_custom_call.1} parent=11 // pred_fallthru
          _
        // Predicated region
        $region17: #{tpu_custom_call.1} parent=11 // pred_check
          %p212 = pneg %p84
        $region18: #{tpu_custom_call.1} parent=11 // pred_check_branch
          %214 = sbr.rel (%p212) target = $region20
        $region19: #{tpu_custom_call.1} parent=11 // pred_region
          _
        $region20: #{tpu_custom_call.1} parent=11 // pred_fallthru
          _
        // Predicated region
        $region21: #{tpu_custom_call.1} parent=11 // pred_check
          %p215 = pneg %p105
        $region22: #{tpu_custom_call.1} parent=11 // pred_check_branch
          %217 = sbr.rel (%p215) target = $region24
        $region23: #{tpu_custom_call.1} parent=11 // pred_region
          _
        $region24: #{tpu_custom_call.1} parent=11 // pred_fallthru
          _
        // Predicated region
        $region25: #{tpu_custom_call.1} parent=11 // pred_check
          %p218 = pneg %p126
        $region26: #{tpu_custom_call.1} parent=11 // pred_check_branch
          %220 = sbr.rel (%p218) target = $region28
        $region27: #{tpu_custom_call.1} parent=11 // pred_region
          _
        $region28: #{tpu_custom_call.1} parent=11 // pred_fallthru
          _
        // Predicated region
        $region29: #{tpu_custom_call.1} parent=11 // pred_check
          %p221 = pneg %p147
        $region30: #{tpu_custom_call.1} parent=11 // pred_check_branch
          %223 = sbr.rel (%p221) target = $region32
        $region31: #{tpu_custom_call.1} parent=11 // pred_region
          _
        $region32: #{tpu_custom_call.1} parent=11 // pred_fallthru
          _
        // Predicated region
        $region33: #{tpu_custom_call.1} parent=11 // pred_check
          %p224 = pneg %p168
        $region34: #{tpu_custom_call.1} parent=11 // pred_check_branch
          %226 = sbr.rel (%p224) target = $region36
        $region35: #{tpu_custom_call.1} parent=11 // pred_region
          _
        $region36: #{tpu_custom_call.1} parent=11 // pred_fallthru
          _
      $region12: #{tpu_custom_call.1} parent=5 // pred_fallthru
        _
      %p227 = scmp.lt.s32.totalorder %s16, 2
      // Predicated region
      $region37: #{tpu_custom_call.1} parent=5 // pred_check
        %p228 = pneg %p227
      $region38: #{tpu_custom_call.1} parent=5 // pred_check_branch
        %230 = sbr.rel (%p228) target = $region40
      $region39: #{tpu_custom_call.1} parent=5 // pred_region
        // Predicated region
        $region41: #{tpu_custom_call.1} parent=39 // pred_check
          %p231 = pneg %p36
        $region42: #{tpu_custom_call.1} parent=39 // pred_check_branch
          %233 = sbr.rel (%p231) target = $region44
        $region43: #{tpu_custom_call.1} parent=39 // pred_region
          %s234 = smul.u32 32, %s16
          %p235 = scmp.lt.s32.totalorder %s234, 63
          %s236 = scalar_select %p235, %s234, 63
          %s237 = smul.addr %s236, 8
          %s238 = scalar_lea.vmem %s0, %s237
          %s239 = smul.u32 32, %s16
        $region44: #{tpu_custom_call.1} parent=39 // pred_fallthru
          _
      $region40: #{tpu_custom_call.1} parent=5 // pred_fallthru
        _
      %p240 = scmp.le.s32.totalorder 1, %s16
      %p241 = scmp.lt.s32.totalorder %s16, 3
      %p242 = pnand %p240, %p241
      %p243 = pneg %p242
      // Predicated region
      $region45: #{tpu_custom_call.1} parent=5 // pred_check
        _
      $region46: #{tpu_custom_call.1} parent=5 // pred_check_branch
        %245 = sbr.rel (%p242) target = $region48
      $region47: #{tpu_custom_call.1} parent=5 // pred_region
        %s246 = ssub.s32 %s16, 1
        %s247 = smul.u32 32, %s21
        %p248 = scmp.lt.s32.totalorder %s247, 63
        %s249 = scalar_select %p248, %s247, 63
        %s250 = smul.addr %s249, 8
        %s251 = scalar_lea.vmem %s0, %s250
        %p252 = pneg %p42
        %p253 = pneg %p39
        %p254 = pneg %p63
        %p255 = pneg %p60
        %p256 = pneg %p84
        %p257 = pneg %p81
        %p258 = pneg %p105
        %p259 = pneg %p102
        %p260 = pneg %p126
        %p261 = pneg %p123
        %p262 = pneg %p147
        %p263 = pneg %p144
        %p264 = pneg %p168
        %p265 = pneg %p165
        %p266 = pneg %p194
        %p267 = pneg %p191
        %s268 = sand.u32 %s181, 1
        %s269 = scalar_lea.sflag [#allocation3], %s268
        %s270 = sand.u32 %s181, 1
        %s271 = smul.addr %s270, 32
        %s272 = scalar_lea.vmem [#allocation2], %s271
        %s273 = smul.u32 32, %s21
        %p274 = scmp.lt.s32.totalorder %s273, 63
        %s275 = scalar_select %p274, %s273, 63
        %s276 = smul.addr %s275, 8
        %s277 = scalar_lea.vmem %s0, %s276
        %s278 = smul.u32 32, %s21
        %s279 = smul.u32 4, %s21
        %v281 = vld [vmem:[%s277] sm:$0xff]
        %v282 = vld [vmem:[%s277 + $0x8] sm:$0xff]
        %v283 = vld [vmem:[%s277 + $0x10] sm:$0xff]
        %v284 = vld [vmem:[%s277 + $0x18] sm:$0xff]
        %v285 = vld [vmem:[%s277 + $0x20] sm:$0xff]
        %v286 = vld [vmem:[%s277 + $0x28] sm:$0xff]
        %v287 = vld [vmem:[%s277 + $0x30] sm:$0xff]
        %v288 = vld [vmem:[%s277 + $0x38] sm:$0xff]
        %v289 = vld [vmem:[%s277 + $0x40] sm:$0xff]
        %v290 = vld [vmem:[%s277 + $0x48] sm:$0xff]
        %v291 = vld [vmem:[%s277 + $0x50] sm:$0xff]
        %v292 = vld [vmem:[%s277 + $0x58] sm:$0xff]
        %v293 = vld [vmem:[%s277 + $0x60] sm:$0xff]
        %v294 = vld [vmem:[%s277 + $0x68] sm:$0xff]
        %v295 = vld [vmem:[%s277 + $0x70] sm:$0xff]
        %v296 = vld [vmem:[%s277 + $0x78] sm:$0xff]
        %v297 = vld [vmem:[%s277 + $0x80] sm:$0xff]
        %v298 = vld [vmem:[%s277 + $0x88] sm:$0xff]
        %v299 = vld [vmem:[%s277 + $0x90] sm:$0xff]
        %v300 = vld [vmem:[%s277 + $0x98] sm:$0xff]
        %v301 = vld [vmem:[%s277 + $0xa0] sm:$0xff]
        %v302 = vld [vmem:[%s277 + $0xa8] sm:$0xff]
        %v303 = vld [vmem:[%s277 + $0xb0] sm:$0xff]
        %v304 = vld [vmem:[%s277 + $0xb8] sm:$0xff]
        %v305 = vld [vmem:[%s277 + $0xc0] sm:$0xff]
        %v306 = vld [vmem:[%s277 + $0xc8] sm:$0xff]
        %v307 = vld [vmem:[%s277 + $0xd0] sm:$0xff]
        %v308 = vld [vmem:[%s277 + $0xd8] sm:$0xff]
        %v309 = vld [vmem:[%s277 + $0xe0] sm:$0xff]
        %v310 = vld [vmem:[%s277 + $0xe8] sm:$0xff]
        %v311 = vld [vmem:[%s277 + $0xf0] sm:$0xff]
        %v312 = vld [vmem:[%s277 + $0xf8] sm:$0xff]
        %v313 = vld [vmem:[%s1] sm:$0xff]
        %v314 = vld [vmem:[%s1 + $0x8] sm:$0x3]
        %v315 = vld [vmem:[%s4] sm:$0x1]
        %v317 = vlaneseq
        %v318 = vshrl.u32 %v317, 7
        %v319 = vsub.s32 0, %v318
        %v320 = vrot.slane %v315, %v319
        %vm322 = vcmask 80896
        %v324 = vsel %vm322, %v281, 0
        %v327 = vsel %vm322, %v282, 0
        %v330 = vsel %vm322, %v283, 0
        %v333 = vsel %vm322, %v284, 0
        %v336 = vsel %vm322, %v285, 0
        %v339 = vsel %vm322, %v286, 0
        %v342 = vsel %vm322, %v287, 0
        %v345 = vsel %vm322, %v288, 0
        %v348 = vsel %vm322, %v289, 0
        %v351 = vsel %vm322, %v290, 0
        %v354 = vsel %vm322, %v291, 0
        %v357 = vsel %vm322, %v292, 0
        %v360 = vsel %vm322, %v293, 0
        %v363 = vsel %vm322, %v294, 0
        %v366 = vsel %vm322, %v295, 0
        %v369 = vsel %vm322, %v296, 0
        %v372 = vsel %vm322, %v297, 0
        %v375 = vsel %vm322, %v298, 0
        %v378 = vsel %vm322, %v299, 0
        %v381 = vsel %vm322, %v300, 0
        %v384 = vsel %vm322, %v301, 0
        %v387 = vsel %vm322, %v302, 0
        %v390 = vsel %vm322, %v303, 0
        %v393 = vsel %vm322, %v304, 0
        %v396 = vsel %vm322, %v305, 0
        %v399 = vsel %vm322, %v306, 0
        %v402 = vsel %vm322, %v307, 0
        %v405 = vsel %vm322, %v308, 0
        %v408 = vsel %vm322, %v309, 0
        %v411 = vsel %vm322, %v310, 0
        %v414 = vsel %vm322, %v311, 0
        %v417 = vsel %vm322, %v312, 0
        %vm419 = vcmask 1041408
        %v421 = vsel %vm419, %v314, 0
        %423 = vmatprep.subr.mxu0 0.0
        %424 = vmatpush1.msra.mxu0 0.0
        %425 = vmatprep.subr.mxu0 0.0
        %426 = vmatpush1.msra.mxu0 0.0
        %427 = vmatprep.subr.mxu0 0.0
        %428 = vmatpush1.msra.mxu0 0.0
        %429 = vmatprep.subr.mxu0 0.0
        %430 = vmatpush1.msra.mxu0 0.0
        %431 = vmatprep.subr.mxu0 0.0
        %432 = vmatpush1.msra.mxu0 0.0
        %433 = vmatprep.subr.mxu0 0.0
        %434 = vmatpush1.msra.mxu0 0.0
        %435 = vmatprep.subr.mxu0 0.0
        %436 = vmatpush1.msra.mxu0 0.0
        %437 = vmatprep.subr.mxu0 0.0
        %438 = vmatpush1.msra.mxu0 0.0
        %439 = vmatprep.subr.mxu0 0.0
        %440 = vmatpush1.msra.mxu0 0.0
        %441 = vmatprep.subr.mxu0 0.0
        %442 = vmatpush1.msra.mxu0 0.0
        %443 = vmatprep.subr.mxu0 0.0
        %444 = vmatpush1.msra.mxu0 0.0
        %445 = vmatprep.subr.mxu0 0.0
        %446 = vmatpush1.msra.mxu0 0.0
        %447 = vmatprep.subr.mxu0 0.0
        %448 = vmatpush1.msra.mxu0 0.0
        %449 = vmatprep.subr.mxu0 0.0
        %450 = vmatpush1.msra.mxu0 0.0
        %451 = vmatprep.subr.mxu0 0.0
        %452 = vmatpush1.msra.mxu0 %v421
        %453 = vmatprep.subr.mxu0 0.0
        %454 = vmatpush1.msra.mxu0 %v313
        %455 = vmatprep.subr.mxu0 0.0
        %456 = vmatpush2.msra.mxu0 0.0
        %457 = vmatprep.subr.mxu0 0.0
        %458 = vmatpush2.msra.mxu0 0.0
        %459 = vmatprep.subr.mxu0 0.0
        %460 = vmatpush2.msra.mxu0 0.0
        %461 = vmatprep.subr.mxu0 0.0
        %462 = vmatpush2.msra.mxu0 0.0
        %463 = vmatprep.subr.mxu0 0.0
        %464 = vmatpush2.msra.mxu0 0.0
        %465 = vmatprep.subr.mxu0 0.0
        %466 = vmatpush2.msra.mxu0 0.0
        %467 = vmatprep.subr.mxu0 0.0
        %468 = vmatpush2.msra.mxu0 0.0
        %469 = vmatprep.subr.mxu0 0.0
        %470 = vmatpush2.msra.mxu0 0.0
        %471 = vmatprep.subr.mxu0 0.0
        %472 = vmatpush2.msra.mxu0 0.0
        %473 = vmatprep.subr.mxu0 0.0
        %474 = vmatpush2.msra.mxu0 0.0
        %475 = vmatprep.subr.mxu0 0.0
        %476 = vmatpush2.msra.mxu0 0.0
        %477 = vmatprep.subr.mxu0 0.0
        %478 = vmatpush2.msra.mxu0 0.0
        %479 = vmatprep.subr.mxu0 0.0
        %480 = vmatpush2.msra.mxu0 0.0
        %481 = vmatprep.subr.mxu0 0.0
        %482 = vmatpush2.msra.mxu0 0.0
        %483 = vmatprep.subr.mxu0 0.0
        %484 = vmatpush2.msra.mxu0 0.0
        %485 = vmatprep.subr.mxu0 0.0
        %486 = vmatpush2.msra.mxu0 0.0
        %487 = vmatprep.mubr.f32.mxu0 0.0
        %488 = vmatmul.mubr.f32.gmra.mxu0 %v324
        %v489 = vpop.f32.mrf.mxu0
        %v490 = vadd.f32 %v320, %v489
        %v491 = vpop.f32.mrf.mxu0
        %492 = vmatprep.mubr.f32.mxu0 0.0
        %493 = vmatmul.mubr.f32.gmra.mxu0 %v327
        %v494 = vpop.f32.mrf.mxu0
        %v495 = vadd.f32 %v320, %v494
        %v496 = vpop.f32.mrf.mxu0
        %497 = vmatprep.mubr.f32.mxu0 0.0
        %498 = vmatmul.mubr.f32.gmra.mxu0 %v330
        %v499 = vpop.f32.mrf.mxu0
        %v500 = vadd.f32 %v320, %v499
        %v501 = vpop.f32.mrf.mxu0
        %502 = vmatprep.mubr.f32.mxu0 0.0
        %503 = vmatmul.mubr.f32.gmra.mxu0 %v333
        %v504 = vpop.f32.mrf.mxu0
        %v505 = vadd.f32 %v320, %v504
        %v506 = vpop.f32.mrf.mxu0
        %507 = vmatprep.mubr.f32.mxu0 0.0
        %508 = vmatmul.mubr.f32.gmra.mxu0 %v336
        %v509 = vpop.f32.mrf.mxu0
        %v510 = vadd.f32 %v320, %v509
        %v511 = vpop.f32.mrf.mxu0
        %512 = vmatprep.mubr.f32.mxu0 0.0
        %513 = vmatmul.mubr.f32.gmra.mxu0 %v339
        %v514 = vpop.f32.mrf.mxu0
        %v515 = vadd.f32 %v320, %v514
        %v516 = vpop.f32.mrf.mxu0
        %517 = vmatprep.mubr.f32.mxu0 0.0
        %518 = vmatmul.mubr.f32.gmra.mxu0 %v342
        %v519 = vpop.f32.mrf.mxu0
        %v520 = vadd.f32 %v320, %v519
        %v521 = vpop.f32.mrf.mxu0
        %522 = vmatprep.mubr.f32.mxu0 0.0
        %523 = vmatmul.mubr.f32.gmra.mxu0 %v345
        %v524 = vpop.f32.mrf.mxu0
        %v525 = vadd.f32 %v320, %v524
        %v526 = vpop.f32.mrf.mxu0
        %527 = vmatprep.mubr.f32.mxu0 0.0
        %528 = vmatmul.mubr.f32.gmra.mxu0 %v348
        %v529 = vpop.f32.mrf.mxu0
        %v530 = vadd.f32 %v320, %v529
        %v531 = vpop.f32.mrf.mxu0
        %532 = vmatprep.mubr.f32.mxu0 0.0
        %533 = vmatmul.mubr.f32.gmra.mxu0 %v351
        %v534 = vpop.f32.mrf.mxu0
        %v535 = vadd.f32 %v320, %v534
        %v536 = vpop.f32.mrf.mxu0
        %537 = vmatprep.mubr.f32.mxu0 0.0
        %538 = vmatmul.mubr.f32.gmra.mxu0 %v354
        %v539 = vpop.f32.mrf.mxu0
        %v540 = vadd.f32 %v320, %v539
        %v541 = vpop.f32.mrf.mxu0
        %542 = vmatprep.mubr.f32.mxu0 0.0
        %543 = vmatmul.mubr.f32.gmra.mxu0 %v357
        %v544 = vpop.f32.mrf.mxu0
        %v545 = vadd.f32 %v320, %v544
        %v546 = vpop.f32.mrf.mxu0
        %547 = vmatprep.mubr.f32.mxu0 0.0
        %548 = vmatmul.mubr.f32.gmra.mxu0 %v360
        %v549 = vpop.f32.mrf.mxu0
        %v550 = vadd.f32 %v320, %v549
        %v551 = vpop.f32.mrf.mxu0
        %552 = vmatprep.mubr.f32.mxu0 0.0
        %553 = vmatmul.mubr.f32.gmra.mxu0 %v363
        %v554 = vpop.f32.mrf.mxu0
        %v555 = vadd.f32 %v320, %v554
        %v556 = vpop.f32.mrf.mxu0
        %557 = vmatprep.mubr.f32.mxu0 0.0
        %558 = vmatmul.mubr.f32.gmra.mxu0 %v366
        %v559 = vpop.f32.mrf.mxu0
        %v560 = vadd.f32 %v320, %v559
        %v561 = vpop.f32.mrf.mxu0
        %562 = vmatprep.mubr.f32.mxu0 0.0
        %563 = vmatmul.mubr.f32.gmra.mxu0 %v369
        %v564 = vpop.f32.mrf.mxu0
        %v565 = vadd.f32 %v320, %v564
        %v566 = vpop.f32.mrf.mxu0
        %567 = vmatprep.mubr.f32.mxu0 0.0
        %568 = vmatmul.mubr.f32.gmra.mxu0 %v372
        %v569 = vpop.f32.mrf.mxu0
        %v570 = vadd.f32 %v320, %v569
        %v571 = vpop.f32.mrf.mxu0
        %572 = vmatprep.mubr.f32.mxu0 0.0
        %573 = vmatmul.mubr.f32.gmra.mxu0 %v375
        %v574 = vpop.f32.mrf.mxu0
        %v575 = vadd.f32 %v320, %v574
        %v576 = vpop.f32.mrf.mxu0
        %577 = vmatprep.mubr.f32.mxu0 0.0
        %578 = vmatmul.mubr.f32.gmra.mxu0 %v378
        %v579 = vpop.f32.mrf.mxu0
        %v580 = vadd.f32 %v320, %v579
        %v581 = vpop.f32.mrf.mxu0
        %582 = vmatprep.mubr.f32.mxu0 0.0
        %583 = vmatmul.mubr.f32.gmra.mxu0 %v381
        %v584 = vpop.f32.mrf.mxu0
        %v585 = vadd.f32 %v320, %v584
        %v586 = vpop.f32.mrf.mxu0
        %587 = vmatprep.mubr.f32.mxu0 0.0
        %588 = vmatmul.mubr.f32.gmra.mxu0 %v384
        %v589 = vpop.f32.mrf.mxu0
        %v590 = vadd.f32 %v320, %v589
        %v591 = vpop.f32.mrf.mxu0
        %592 = vmatprep.mubr.f32.mxu0 0.0
        %593 = vmatmul.mubr.f32.gmra.mxu0 %v387
        %v594 = vpop.f32.mrf.mxu0
        %v595 = vadd.f32 %v320, %v594
        %v596 = vpop.f32.mrf.mxu0
        %597 = vmatprep.mubr.f32.mxu0 0.0
        %598 = vmatmul.mubr.f32.gmra.mxu0 %v390
        %v599 = vpop.f32.mrf.mxu0
        %v600 = vadd.f32 %v320, %v599
        %v601 = vpop.f32.mrf.mxu0
        %602 = vmatprep.mubr.f32.mxu0 0.0
        %603 = vmatmul.mubr.f32.gmra.mxu0 %v393
        %v604 = vpop.f32.mrf.mxu0
        %v605 = vadd.f32 %v320, %v604
        %v606 = vpop.f32.mrf.mxu0
        %607 = vmatprep.mubr.f32.mxu0 0.0
        %608 = vmatmul.mubr.f32.gmra.mxu0 %v396
        %v609 = vpop.f32.mrf.mxu0
        %v610 = vadd.f32 %v320, %v609
        %v611 = vpop.f32.mrf.mxu0
        %612 = vmatprep.mubr.f32.mxu0 0.0
        %613 = vmatmul.mubr.f32.gmra.mxu0 %v399
        %v614 = vpop.f32.mrf.mxu0
        %v615 = vadd.f32 %v320, %v614
        %v616 = vpop.f32.mrf.mxu0
        %617 = vmatprep.mubr.f32.mxu0 0.0
        %618 = vmatmul.mubr.f32.gmra.mxu0 %v402
        %v619 = vpop.f32.mrf.mxu0
        %v620 = vadd.f32 %v320, %v619
        %v621 = vpop.f32.mrf.mxu0
        %622 = vmatprep.mubr.f32.mxu0 0.0
        %623 = vmatmul.mubr.f32.gmra.mxu0 %v405
        %v624 = vpop.f32.mrf.mxu0
        %v625 = vadd.f32 %v320, %v624
        %v626 = vpop.f32.mrf.mxu0
        %627 = vmatprep.mubr.f32.mxu0 0.0
        %628 = vmatmul.mubr.f32.gmra.mxu0 %v408
        %v629 = vpop.f32.mrf.mxu0
        %v630 = vadd.f32 %v320, %v629
        %v631 = vpop.f32.mrf.mxu0
        %632 = vmatprep.mubr.f32.mxu0 0.0
        %633 = vmatmul.mubr.f32.gmra.mxu0 %v411
        %v634 = vpop.f32.mrf.mxu0
        %v635 = vadd.f32 %v320, %v634
        %v636 = vpop.f32.mrf.mxu0
        %637 = vmatprep.mubr.f32.mxu0 0.0
        %638 = vmatmul.mubr.f32.gmra.mxu0 %v414
        %v639 = vpop.f32.mrf.mxu0
        %v640 = vadd.f32 %v320, %v639
        %v641 = vpop.f32.mrf.mxu0
        %642 = vmatprep.mubr.f32.mxu0 0.0
        %643 = vmatmul.mubr.f32.gmra.mxu0 %v417
        %v644 = vpop.f32.mrf.mxu0
        %v645 = vadd.f32 %v320, %v644
        %v646 = vpop.f32.mrf.mxu0
        %647 = vdwg.mxu0
        %v648 = vpack.c.bf16 %v495, %v490
        %v649 = vpack.c.bf16 %v505, %v500
        %v650 = vpack.c.bf16 %v515, %v510
        %v651 = vpack.c.bf16 %v525, %v520
        %v652 = vpack.c.bf16 %v535, %v530
        %v653 = vpack.c.bf16 %v545, %v540
        %v654 = vpack.c.bf16 %v555, %v550
        %v655 = vpack.c.bf16 %v565, %v560
        %v656 = vpack.c.bf16 %v575, %v570
        %v657 = vpack.c.bf16 %v585, %v580
        %v658 = vpack.c.bf16 %v595, %v590
        %v659 = vpack.c.bf16 %v605, %v600
        %v660 = vpack.c.bf16 %v615, %v610
        %v661 = vpack.c.bf16 %v625, %v620
        %v662 = vpack.c.bf16 %v635, %v630
        %v663 = vpack.c.bf16 %v645, %v640
        %v664 = vld [vmem:[%s2] sm:$0xff]
        %v665 = vld [vmem:[%s2 + $0x8] sm:$0xf]
        %v666 = vld [vmem:[%s2 + $0xc] sm:$0xff]
        %v667 = vld [vmem:[%s2 + $0x14] sm:$0xf]
        %v668 = vld [vmem:[%s2 + $0x18] sm:$0xff]
        %v669 = vld [vmem:[%s2 + $0x20] sm:$0xf]
        %v670 = vld [vmem:[%s2 + $0x24] sm:$0xff]
        %v671 = vld [vmem:[%s2 + $0x2c] sm:$0xf]
        %v672 = vld [vmem:[%s2 + $0x30] sm:$0xff]
        %v673 = vld [vmem:[%s2 + $0x38] sm:$0xf]
        %v674 = vld [vmem:[%s2 + $0x3c] sm:$0xff]
        %v675 = vld [vmem:[%s2 + $0x44] sm:$0xf]
        %v676 = vld [vmem:[%s2 + $0x48] sm:$0xff]
        %v677 = vld [vmem:[%s2 + $0x50] sm:$0xf]
        %v678 = vld [vmem:[%s2 + $0x54] sm:$0xff]
        %v679 = vld [vmem:[%s2 + $0x5c] sm:$0xf]
        %v680 = vld [vmem:[%s2 + $0x60] sm:$0xff]
        %v681 = vld [vmem:[%s2 + $0x68] sm:$0xf]
        %v682 = vld [vmem:[%s2 + $0x6c] sm:$0xff]
        %v683 = vld [vmem:[%s2 + $0x74] sm:$0xf]
        %v684 = vld [vmem:[%s2 + $0x78] sm:$0xff]
        %v685 = vld [vmem:[%s2 + $0x80] sm:$0xf]
        %v686 = vld [vmem:[%s2 + $0x84] sm:$0xff]
        %v687 = vld [vmem:[%s2 + $0x8c] sm:$0xf]
        %v688 = vld [vmem:[%s2 + $0x90] sm:$0xff]
        %v689 = vld [vmem:[%s2 + $0x98] sm:$0xf]
        %v690 = vld [vmem:[%s2 + $0x9c] sm:$0xff]
        %v691 = vld [vmem:[%s2 + $0xa4] sm:$0xf]
        %v692 = vld [vmem:[%s2 + $0xa8] sm:$0xff]
        %v693 = vld [vmem:[%s2 + $0xb0] sm:$0xf]
        %v694 = vld [vmem:[%s2 + $0xb4] sm:$0xff]
        %v695 = vld [vmem:[%s2 + $0xbc] sm:$0xf]
        %v696 = vld [vmem:[%s5] sm:$0x7]
        %v698 = vlaneseq
        %v699 = vshrl.u32 %v698, 7
        %v700 = vsub.s32 0, %v699
        %v701 = vrot.slane %v696, %v700
        %v702 = vlaneseq
        %v703 = vshrl.u32 %v702, 7
        %v704 = vsub.s32 1, %v703
        %v705 = vrot.slane %v696, %v704
        %v706 = vlaneseq
        %v707 = vshrl.u32 %v706, 7
        %v708 = vsub.s32 2, %v707
        %v709 = vrot.slane %v696, %v708
        %v745 = vunpack.c.l.b16 %v664
        %v746 = vunpack.c.h.b16 %v664
        %v747 = vunpack.c.l.b16 %v665
        %v748 = vunpack.c.l.b16 %v666
        %v749 = vunpack.c.h.b16 %v666
        %v750 = vunpack.c.l.b16 %v667
        %v751 = vunpack.c.l.b16 %v668
        %v752 = vunpack.c.h.b16 %v668
        %v753 = vunpack.c.l.b16 %v669
        %v754 = vunpack.c.l.b16 %v670
        %v755 = vunpack.c.h.b16 %v670
        %v756 = vunpack.c.l.b16 %v671
        %v757 = vunpack.c.l.b16 %v672
        %v758 = vunpack.c.h.b16 %v672
        %v759 = vunpack.c.l.b16 %v673
        %v760 = vunpack.c.l.b16 %v674
        %v761 = vunpack.c.h.b16 %v674
        %v762 = vunpack.c.l.b16 %v675
        %v763 = vunpack.c.l.b16 %v676
        %v764 = vunpack.c.h.b16 %v676
        %v765 = vunpack.c.l.b16 %v677
        %v766 = vunpack.c.l.b16 %v678
        %v767 = vunpack.c.h.b16 %v678
        %v768 = vunpack.c.l.b16 %v679
        %v769 = vunpack.c.l.b16 %v680
        %v770 = vunpack.c.h.b16 %v680
        %v771 = vunpack.c.l.b16 %v681
        %v772 = vunpack.c.l.b16 %v682
        %v773 = vunpack.c.h.b16 %v682
        %v774 = vunpack.c.l.b16 %v683
        %v775 = vunpack.c.l.b16 %v684
        %v776 = vunpack.c.h.b16 %v684
        %v777 = vunpack.c.l.b16 %v685
        %v778 = vunpack.c.l.b16 %v686
        %v779 = vunpack.c.h.b16 %v686
        %v780 = vunpack.c.l.b16 %v687
        %v781 = vunpack.c.l.b16 %v688
        %v782 = vunpack.c.h.b16 %v688
        %v783 = vunpack.c.l.b16 %v689
        %v784 = vunpack.c.l.b16 %v690
        %v785 = vunpack.c.h.b16 %v690
        %v786 = vunpack.c.l.b16 %v691
        %v787 = vunpack.c.l.b16 %v692
        %v788 = vunpack.c.h.b16 %v692
        %v789 = vunpack.c.l.b16 %v693
        %v790 = vunpack.c.l.b16 %v694
        %v791 = vunpack.c.h.b16 %v694
        %v792 = vunpack.c.l.b16 %v695
        %v793 = vpack.c.b16 %v748, %v745
        %v794 = vpack.c.b16 %v749, %v746
        %v795 = vpack.c.b16 %v750, %v747
        %v796 = vpack.c.b16 %v754, %v751
        %v797 = vpack.c.b16 %v755, %v752
        %v798 = vpack.c.b16 %v756, %v753
        %v799 = vpack.c.b16 %v760, %v757
        %v800 = vpack.c.b16 %v761, %v758
        %v801 = vpack.c.b16 %v762, %v759
        %v802 = vpack.c.b16 %v766, %v763
        %v803 = vpack.c.b16 %v767, %v764
        %v804 = vpack.c.b16 %v768, %v765
        %v805 = vpack.c.b16 %v772, %v769
        %v806 = vpack.c.b16 %v773, %v770
        %v807 = vpack.c.b16 %v774, %v771
        %v808 = vpack.c.b16 %v778, %v775
        %v809 = vpack.c.b16 %v779, %v776
        %v810 = vpack.c.b16 %v780, %v777
        %v811 = vpack.c.b16 %v784, %v781
        %v812 = vpack.c.b16 %v785, %v782
        %v813 = vpack.c.b16 %v786, %v783
        %v814 = vpack.c.b16 %v790, %v787
        %v815 = vpack.c.b16 %v791, %v788
        %v816 = vpack.c.b16 %v792, %v789
        %841 = vmatprep.subr.bf16.mxu0 %v815
        %842 = vmatpush1.bf16.msra.mxu0 %v814
        %843 = vmatprep.subr.bf16.mxu0 %v812
        %844 = vmatpush1.bf16.msra.mxu0 %v811
        %845 = vmatprep.subr.bf16.mxu0 %v809
        %846 = vmatpush1.bf16.msra.mxu0 %v808
        %847 = vmatprep.subr.bf16.mxu0 %v806
        %848 = vmatpush1.bf16.msra.mxu0 %v805
        %849 = vmatprep.subr.bf16.mxu0 %v803
        %850 = vmatpush1.bf16.msra.mxu0 %v802
        %851 = vmatprep.subr.bf16.mxu0 %v800
        %852 = vmatpush1.bf16.msra.mxu0 %v799
        %853 = vmatprep.subr.bf16.mxu0 %v797
        %854 = vmatpush1.bf16.msra.mxu0 %v796
        %855 = vmatprep.subr.bf16.mxu0 %v794
        %856 = vmatpush1.bf16.msra.mxu0 %v793
        %857 = vmatprep.subr.bf16.mxu0 0
        %858 = vmatpush2.bf16.msra.mxu0 0
        %859 = vmatprep.subr.bf16.mxu0 0
        %860 = vmatpush2.bf16.msra.mxu0 0
        %861 = vmatprep.subr.bf16.mxu0 0
        %862 = vmatpush2.bf16.msra.mxu0 0
        %863 = vmatprep.subr.bf16.mxu0 0
        %864 = vmatpush2.bf16.msra.mxu0 0
        %865 = vmatprep.subr.bf16.mxu0 0
        %866 = vmatpush2.bf16.msra.mxu0 0
        %867 = vmatprep.subr.bf16.mxu0 0
        %868 = vmatpush2.bf16.msra.mxu0 0
        %869 = vmatprep.subr.bf16.mxu0 0
        %870 = vmatpush2.bf16.msra.mxu0 0
        %871 = vmatprep.subr.bf16.mxu0 0
        %872 = vmatpush2.bf16.msra.mxu0 0
        %873 = vmatprep.mubr.bf16.mxu0 0
        %874 = vmatmul.mubr.bf16.gmra.mxu0 %v648
        %v875 = vpop.f32.mrf.mxu0
        %v876 = vadd.f32 %v701, %v875
        %v877 = vpop.f32.mrf.mxu0
        %v878 = vadd.f32 %v705, %v877
        %v879 = vpop.f32.mrf.mxu0
        %v880 = vadd.f32 %v701, %v879
        %v881 = vpop.f32.mrf.mxu0
        %v882 = vadd.f32 %v705, %v881
        %883 = vmatprep.mubr.bf16.mxu0 0
        %884 = vmatmul.mubr.bf16.gmra.mxu0 %v649
        %v885 = vpop.f32.mrf.mxu0
        %v886 = vadd.f32 %v701, %v885
        %v887 = vpop.f32.mrf.mxu0
        %v888 = vadd.f32 %v705, %v887
        %v889 = vpop.f32.mrf.mxu0
        %v890 = vadd.f32 %v701, %v889
        %v891 = vpop.f32.mrf.mxu0
        %v892 = vadd.f32 %v705, %v891
        %893 = vmatprep.mubr.bf16.mxu0 0
        %894 = vmatmul.mubr.bf16.gmra.mxu0 %v650
        %v895 = vpop.f32.mrf.mxu0
        %v896 = vadd.f32 %v701, %v895
        %v897 = vpop.f32.mrf.mxu0
        %v898 = vadd.f32 %v705, %v897
        %v899 = vpop.f32.mrf.mxu0
        %v900 = vadd.f32 %v701, %v899
        %v901 = vpop.f32.mrf.mxu0
        %v902 = vadd.f32 %v705, %v901
        %903 = vmatprep.mubr.bf16.mxu0 0
        %904 = vmatmul.mubr.bf16.gmra.mxu0 %v651
        %v905 = vpop.f32.mrf.mxu0
        %v906 = vadd.f32 %v701, %v905
        %v907 = vpop.f32.mrf.mxu0
        %v908 = vadd.f32 %v705, %v907
        %v909 = vpop.f32.mrf.mxu0
        %v910 = vadd.f32 %v701, %v909
        %v911 = vpop.f32.mrf.mxu0
        %v912 = vadd.f32 %v705, %v911
        %913 = vmatprep.mubr.bf16.mxu0 0
        %914 = vmatmul.mubr.bf16.gmra.mxu0 %v652
        %v915 = vpop.f32.mrf.mxu0
        %v916 = vadd.f32 %v701, %v915
        %v917 = vpop.f32.mrf.mxu0
        %v918 = vadd.f32 %v705, %v917
        %v919 = vpop.f32.mrf.mxu0
        %v920 = vadd.f32 %v701, %v919
        %v921 = vpop.f32.mrf.mxu0
        %v922 = vadd.f32 %v705, %v921
        %923 = vmatprep.mubr.bf16.mxu0 0
        %924 = vmatmul.mubr.bf16.gmra.mxu0 %v653
        %v925 = vpop.f32.mrf.mxu0
        %v926 = vadd.f32 %v701, %v925
        %v927 = vpop.f32.mrf.mxu0
        %v928 = vadd.f32 %v705, %v927
        %v929 = vpop.f32.mrf.mxu0
        %v930 = vadd.f32 %v701, %v929
        %v931 = vpop.f32.mrf.mxu0
        %v932 = vadd.f32 %v705, %v931
        %933 = vmatprep.mubr.bf16.mxu0 0
        %934 = vmatmul.mubr.bf16.gmra.mxu0 %v654
        %v935 = vpop.f32.mrf.mxu0
        %v936 = vadd.f32 %v701, %v935
        %v937 = vpop.f32.mrf.mxu0
        %v938 = vadd.f32 %v705, %v937
        %v939 = vpop.f32.mrf.mxu0
        %v940 = vadd.f32 %v701, %v939
        %v941 = vpop.f32.mrf.mxu0
        %v942 = vadd.f32 %v705, %v941
        %943 = vmatprep.mubr.bf16.mxu0 0
        %944 = vmatmul.mubr.bf16.gmra.mxu0 %v655
        %v945 = vpop.f32.mrf.mxu0
        %v946 = vadd.f32 %v701, %v945
        %v947 = vpop.f32.mrf.mxu0
        %v948 = vadd.f32 %v705, %v947
        %v949 = vpop.f32.mrf.mxu0
        %v950 = vadd.f32 %v701, %v949
        %v951 = vpop.f32.mrf.mxu0
        %v952 = vadd.f32 %v705, %v951
        %953 = vmatprep.mubr.bf16.mxu0 0
        %954 = vmatmul.mubr.bf16.gmra.mxu0 %v656
        %v955 = vpop.f32.mrf.mxu0
        %v956 = vadd.f32 %v701, %v955
        %v957 = vpop.f32.mrf.mxu0
        %v958 = vadd.f32 %v705, %v957
        %v959 = vpop.f32.mrf.mxu0
        %v960 = vadd.f32 %v701, %v959
        %v961 = vpop.f32.mrf.mxu0
        %v962 = vadd.f32 %v705, %v961
        %963 = vmatprep.mubr.bf16.mxu0 0
        %964 = vmatmul.mubr.bf16.gmra.mxu0 %v657
        %v965 = vpop.f32.mrf.mxu0
        %v966 = vadd.f32 %v701, %v965
        %v967 = vpop.f32.mrf.mxu0
        %v968 = vadd.f32 %v705, %v967
        %v969 = vpop.f32.mrf.mxu0
        %v970 = vadd.f32 %v701, %v969
        %v971 = vpop.f32.mrf.mxu0
        %v972 = vadd.f32 %v705, %v971
        %973 = vmatprep.mubr.bf16.mxu0 0
        %974 = vmatmul.mubr.bf16.gmra.mxu0 %v658
        %v975 = vpop.f32.mrf.mxu0
        %v976 = vadd.f32 %v701, %v975
        %v977 = vpop.f32.mrf.mxu0
        %v978 = vadd.f32 %v705, %v977
        %v979 = vpop.f32.mrf.mxu0
        %v980 = vadd.f32 %v701, %v979
        %v981 = vpop.f32.mrf.mxu0
        %v982 = vadd.f32 %v705, %v981
        %983 = vmatprep.mubr.bf16.mxu0 0
        %984 = vmatmul.mubr.bf16.gmra.mxu0 %v659
        %v985 = vpop.f32.mrf.mxu0
        %v986 = vadd.f32 %v701, %v985
        %v987 = vpop.f32.mrf.mxu0
        %v988 = vadd.f32 %v705, %v987
        %v989 = vpop.f32.mrf.mxu0
        %v990 = vadd.f32 %v701, %v989
        %v991 = vpop.f32.mrf.mxu0
        %v992 = vadd.f32 %v705, %v991
        %993 = vmatprep.mubr.bf16.mxu0 0
        %994 = vmatmul.mubr.bf16.gmra.mxu0 %v660
        %v995 = vpop.f32.mrf.mxu0
        %v996 = vadd.f32 %v701, %v995
        %v997 = vpop.f32.mrf.mxu0
        %v998 = vadd.f32 %v705, %v997
        %v999 = vpop.f32.mrf.mxu0
        %v1000 = vadd.f32 %v701, %v999
        %v1001 = vpop.f32.mrf.mxu0
        %v1002 = vadd.f32 %v705, %v1001
        %1003 = vmatprep.mubr.bf16.mxu0 0
        %1004 = vmatmul.mubr.bf16.gmra.mxu0 %v661
        %v1005 = vpop.f32.mrf.mxu0
        %v1006 = vadd.f32 %v701, %v1005
        %v1007 = vpop.f32.mrf.mxu0
        %v1008 = vadd.f32 %v705, %v1007
        %v1009 = vpop.f32.mrf.mxu0
        %v1010 = vadd.f32 %v701, %v1009
        %v1011 = vpop.f32.mrf.mxu0
        %v1012 = vadd.f32 %v705, %v1011
        %1013 = vmatprep.mubr.bf16.mxu0 0
        %1014 = vmatmul.mubr.bf16.gmra.mxu0 %v662
        %v1015 = vpop.f32.mrf.mxu0
        %v1016 = vadd.f32 %v701, %v1015
        %v1017 = vpop.f32.mrf.mxu0
        %v1018 = vadd.f32 %v705, %v1017
        %v1019 = vpop.f32.mrf.mxu0
        %v1020 = vadd.f32 %v701, %v1019
        %v1021 = vpop.f32.mrf.mxu0
        %v1022 = vadd.f32 %v705, %v1021
        %1023 = vmatprep.mubr.bf16.mxu0 0
        %1024 = vmatmul.mubr.bf16.gmra.mxu0 %v663
        %v1025 = vpop.f32.mrf.mxu0
        %v1026 = vadd.f32 %v701, %v1025
        %v1027 = vpop.f32.mrf.mxu0
        %v1028 = vadd.f32 %v705, %v1027
        %v1029 = vpop.f32.mrf.mxu0
        %v1030 = vadd.f32 %v701, %v1029
        %v1031 = vpop.f32.mrf.mxu0
        %v1032 = vadd.f32 %v705, %v1031
        %1033 = vdwg.mxu0
        %1034 = vmatprep.subr.bf16.mxu0 0
        %1035 = vmatpush1.bf16.msra.mxu0 %v816
        %1036 = vmatprep.subr.bf16.mxu0 0
        %1037 = vmatpush1.bf16.msra.mxu0 %v813
        %1038 = vmatprep.subr.bf16.mxu0 0
        %1039 = vmatpush1.bf16.msra.mxu0 %v810
        %1040 = vmatprep.subr.bf16.mxu0 0
        %1041 = vmatpush1.bf16.msra.mxu0 %v807
        %1042 = vmatprep.subr.bf16.mxu0 0
        %1043 = vmatpush1.bf16.msra.mxu0 %v804
        %1044 = vmatprep.subr.bf16.mxu0 0
        %1045 = vmatpush1.bf16.msra.mxu0 %v801
        %1046 = vmatprep.subr.bf16.mxu0 0
        %1047 = vmatpush1.bf16.msra.mxu0 %v798
        %1048 = vmatprep.subr.bf16.mxu0 0
        %1049 = vmatpush1.bf16.msra.mxu0 %v795
        %1050 = vmatprep.subr.bf16.mxu0 0
        %1051 = vmatpush2.bf16.msra.mxu0 0
        %1052 = vmatprep.subr.bf16.mxu0 0
        %1053 = vmatpush2.bf16.msra.mxu0 0
        %1054 = vmatprep.subr.bf16.mxu0 0
        %1055 = vmatpush2.bf16.msra.mxu0 0
        %1056 = vmatprep.subr.bf16.mxu0 0
        %1057 = vmatpush2.bf16.msra.mxu0 0
        %1058 = vmatprep.subr.bf16.mxu0 0
        %1059 = vmatpush2.bf16.msra.mxu0 0
        %1060 = vmatprep.subr.bf16.mxu0 0
        %1061 = vmatpush2.bf16.msra.mxu0 0
        %1062 = vmatprep.subr.bf16.mxu0 0
        %1063 = vmatpush2.bf16.msra.mxu0 0
        %1064 = vmatprep.subr.bf16.mxu0 0
        %1065 = vmatpush2.bf16.msra.mxu0 0
        %1066 = vmatprep.mubr.bf16.mxu0 0
        %1067 = vmatmul.mubr.bf16.gmra.mxu0 %v648
        %v1068 = vpop.f32.mrf.mxu0
        %v1069 = vadd.f32 %v709, %v1068
        %v1070 = vpop.f32.mrf.mxu0
        %v1071 = vpop.f32.mrf.mxu0
        %v1072 = vadd.f32 %v709, %v1071
        %v1073 = vpop.f32.mrf.mxu0
        %1074 = vmatprep.mubr.bf16.mxu0 0
        %1075 = vmatmul.mubr.bf16.gmra.mxu0 %v649
        %v1076 = vpop.f32.mrf.mxu0
        %v1077 = vadd.f32 %v709, %v1076
        %v1078 = vpop.f32.mrf.mxu0
        %v1079 = vpop.f32.mrf.mxu0
        %v1080 = vadd.f32 %v709, %v1079
        %v1081 = vpop.f32.mrf.mxu0
        %1082 = vmatprep.mubr.bf16.mxu0 0
        %1083 = vmatmul.mubr.bf16.gmra.mxu0 %v650
        %v1084 = vpop.f32.mrf.mxu0
        %v1085 = vadd.f32 %v709, %v1084
        %v1086 = vpop.f32.mrf.mxu0
        %v1087 = vpop.f32.mrf.mxu0
        %v1088 = vadd.f32 %v709, %v1087
        %v1089 = vpop.f32.mrf.mxu0
        %1090 = vmatprep.mubr.bf16.mxu0 0
        %1091 = vmatmul.mubr.bf16.gmra.mxu0 %v651
        %v1092 = vpop.f32.mrf.mxu0
        %v1093 = vadd.f32 %v709, %v1092
        %v1094 = vpop.f32.mrf.mxu0
        %v1095 = vpop.f32.mrf.mxu0
        %v1096 = vadd.f32 %v709, %v1095
        %v1097 = vpop.f32.mrf.mxu0
        %1098 = vmatprep.mubr.bf16.mxu0 0
        %1099 = vmatmul.mubr.bf16.gmra.mxu0 %v652
        %v1100 = vpop.f32.mrf.mxu0
        %v1101 = vadd.f32 %v709, %v1100
        %v1102 = vpop.f32.mrf.mxu0
        %v1103 = vpop.f32.mrf.mxu0
        %v1104 = vadd.f32 %v709, %v1103
        %v1105 = vpop.f32.mrf.mxu0
        %1106 = vmatprep.mubr.bf16.mxu0 0
        %1107 = vmatmul.mubr.bf16.gmra.mxu0 %v653
        %v1108 = vpop.f32.mrf.mxu0
        %v1109 = vadd.f32 %v709, %v1108
        %v1110 = vpop.f32.mrf.mxu0
        %v1111 = vpop.f32.mrf.mxu0
        %v1112 = vadd.f32 %v709, %v1111
        %v1113 = vpop.f32.mrf.mxu0
        %1114 = vmatprep.mubr.bf16.mxu0 0
        %1115 = vmatmul.mubr.bf16.gmra.mxu0 %v654
        %v1116 = vpop.f32.mrf.mxu0
        %v1117 = vadd.f32 %v709, %v1116
        %v1118 = vpop.f32.mrf.mxu0
        %v1119 = vpop.f32.mrf.mxu0
        %v1120 = vadd.f32 %v709, %v1119
        %v1121 = vpop.f32.mrf.mxu0
        %1122 = vmatprep.mubr.bf16.mxu0 0
        %1123 = vmatmul.mubr.bf16.gmra.mxu0 %v655
        %v1124 = vpop.f32.mrf.mxu0
        %v1125 = vadd.f32 %v709, %v1124
        %v1126 = vpop.f32.mrf.mxu0
        %v1127 = vpop.f32.mrf.mxu0
        %v1128 = vadd.f32 %v709, %v1127
        %v1129 = vpop.f32.mrf.mxu0
        %1130 = vmatprep.mubr.bf16.mxu0 0
        %1131 = vmatmul.mubr.bf16.gmra.mxu0 %v656
        %v1132 = vpop.f32.mrf.mxu0
        %v1133 = vadd.f32 %v709, %v1132
        %v1134 = vpop.f32.mrf.mxu0
        %v1135 = vpop.f32.mrf.mxu0
        %v1136 = vadd.f32 %v709, %v1135
        %v1137 = vpop.f32.mrf.mxu0
        %1138 = vmatprep.mubr.bf16.mxu0 0
        %1139 = vmatmul.mubr.bf16.gmra.mxu0 %v657
        %v1140 = vpop.f32.mrf.mxu0
        %v1141 = vadd.f32 %v709, %v1140
        %v1142 = vpop.f32.mrf.mxu0
        %v1143 = vpop.f32.mrf.mxu0
        %v1144 = vadd.f32 %v709, %v1143
        %v1145 = vpop.f32.mrf.mxu0
        %1146 = vmatprep.mubr.bf16.mxu0 0
        %1147 = vmatmul.mubr.bf16.gmra.mxu0 %v658
        %v1148 = vpop.f32.mrf.mxu0
        %v1149 = vadd.f32 %v709, %v1148
        %v1150 = vpop.f32.mrf.mxu0
        %v1151 = vpop.f32.mrf.mxu0
        %v1152 = vadd.f32 %v709, %v1151
        %v1153 = vpop.f32.mrf.mxu0
        %1154 = vmatprep.mubr.bf16.mxu0 0
        %1155 = vmatmul.mubr.bf16.gmra.mxu0 %v659
        %v1156 = vpop.f32.mrf.mxu0
        %v1157 = vadd.f32 %v709, %v1156
        %v1158 = vpop.f32.mrf.mxu0
        %v1159 = vpop.f32.mrf.mxu0
        %v1160 = vadd.f32 %v709, %v1159
        %v1161 = vpop.f32.mrf.mxu0
        %1162 = vmatprep.mubr.bf16.mxu0 0
        %1163 = vmatmul.mubr.bf16.gmra.mxu0 %v660
        %v1164 = vpop.f32.mrf.mxu0
        %v1165 = vadd.f32 %v709, %v1164
        %v1166 = vpop.f32.mrf.mxu0
        %v1167 = vpop.f32.mrf.mxu0
        %v1168 = vadd.f32 %v709, %v1167
        %v1169 = vpop.f32.mrf.mxu0
        %1170 = vmatprep.mubr.bf16.mxu0 0
        %1171 = vmatmul.mubr.bf16.gmra.mxu0 %v661
        %v1172 = vpop.f32.mrf.mxu0
        %v1173 = vadd.f32 %v709, %v1172
        %v1174 = vpop.f32.mrf.mxu0
        %v1175 = vpop.f32.mrf.mxu0
        %v1176 = vadd.f32 %v709, %v1175
        %v1177 = vpop.f32.mrf.mxu0
        %1178 = vmatprep.mubr.bf16.mxu0 0
        %1179 = vmatmul.mubr.bf16.gmra.mxu0 %v662
        %v1180 = vpop.f32.mrf.mxu0
        %v1181 = vadd.f32 %v709, %v1180
        %v1182 = vpop.f32.mrf.mxu0
        %v1183 = vpop.f32.mrf.mxu0
        %v1184 = vadd.f32 %v709, %v1183
        %v1185 = vpop.f32.mrf.mxu0
        %1186 = vmatprep.mubr.bf16.mxu0 0
        %1187 = vmatmul.mubr.bf16.gmra.mxu0 %v663
        %v1188 = vpop.f32.mrf.mxu0
        %v1189 = vadd.f32 %v709, %v1188
        %v1190 = vpop.f32.mrf.mxu0
        %v1191 = vpop.f32.mrf.mxu0
        %v1192 = vadd.f32 %v709, %v1191
        %v1193 = vpop.f32.mrf.mxu0
        %1194 = vdwg.mxu0
        %v1195 = vpack.c.bf16 %v876, %v876
        %v1196 = vpack.c.bf16 %v880, %v880
        %v1197 = vpack.c.bf16 %v886, %v886
        %v1198 = vpack.c.bf16 %v890, %v890
        %v1199 = vpack.c.bf16 %v896, %v896
        %v1200 = vpack.c.bf16 %v900, %v900
        %v1201 = vpack.c.bf16 %v906, %v906
        %v1202 = vpack.c.bf16 %v910, %v910
        %v1203 = vpack.c.bf16 %v916, %v916
        %v1204 = vpack.c.bf16 %v920, %v920
        %v1205 = vpack.c.bf16 %v926, %v926
        %v1206 = vpack.c.bf16 %v930, %v930
        %v1207 = vpack.c.bf16 %v936, %v936
        %v1208 = vpack.c.bf16 %v940, %v940
        %v1209 = vpack.c.bf16 %v946, %v946
        %v1210 = vpack.c.bf16 %v950, %v950
        %v1211 = vpack.c.bf16 %v956, %v956
        %v1212 = vpack.c.bf16 %v960, %v960
        %v1213 = vpack.c.bf16 %v966, %v966
        %v1214 = vpack.c.bf16 %v970, %v970
        %v1215 = vpack.c.bf16 %v976, %v976
        %v1216 = vpack.c.bf16 %v980, %v980
        %v1217 = vpack.c.bf16 %v986, %v986
        %v1218 = vpack.c.bf16 %v990, %v990
        %v1219 = vpack.c.bf16 %v996, %v996
        %v1220 = vpack.c.bf16 %v1000, %v1000
        %v1221 = vpack.c.bf16 %v1006, %v1006
        %v1222 = vpack.c.bf16 %v1010, %v1010
        %v1223 = vpack.c.bf16 %v1016, %v1016
        %v1224 = vpack.c.bf16 %v1020, %v1020
        %v1225 = vpack.c.bf16 %v1026, %v1026
        %v1226 = vpack.c.bf16 %v1030, %v1030
        %v1227 = vpack.c.bf16 %v878, %v878
        %v1228 = vpack.c.bf16 %v882, %v882
        %v1229 = vpack.c.bf16 %v888, %v888
        %v1230 = vpack.c.bf16 %v892, %v892
        %v1231 = vpack.c.bf16 %v898, %v898
        %v1232 = vpack.c.bf16 %v902, %v902
        %v1233 = vpack.c.bf16 %v908, %v908
        %v1234 = vpack.c.bf16 %v912, %v912
        %v1235 = vpack.c.bf16 %v918, %v918
        %v1236 = vpack.c.bf16 %v922, %v922
        %v1237 = vpack.c.bf16 %v928, %v928
        %v1238 = vpack.c.bf16 %v932, %v932
        %v1239 = vpack.c.bf16 %v938, %v938
        %v1240 = vpack.c.bf16 %v942, %v942
        %v1241 = vpack.c.bf16 %v948, %v948
        %v1242 = vpack.c.bf16 %v952, %v952
        %v1243 = vpack.c.bf16 %v958, %v958
        %v1244 = vpack.c.bf16 %v962, %v962
        %v1245 = vpack.c.bf16 %v968, %v968
        %v1246 = vpack.c.bf16 %v972, %v972
        %v1247 = vpack.c.bf16 %v978, %v978
        %v1248 = vpack.c.bf16 %v982, %v982
        %v1249 = vpack.c.bf16 %v988, %v988
        %v1250 = vpack.c.bf16 %v992, %v992
        %v1251 = vpack.c.bf16 %v998, %v998
        %v1252 = vpack.c.bf16 %v1002, %v1002
        %v1253 = vpack.c.bf16 %v1008, %v1008
        %v1254 = vpack.c.bf16 %v1012, %v1012
        %v1255 = vpack.c.bf16 %v1018, %v1018
        %v1256 = vpack.c.bf16 %v1022, %v1022
        %v1257 = vpack.c.bf16 %v1028, %v1028
        %v1258 = vpack.c.bf16 %v1032, %v1032
        %1259 = vmatprep.subr.bf16.mxu0 0
        %1260 = vmatpush1.bf16.xpose.msra.mxu0 0
        %1261 = vmatprep.subr.bf16.mxu0 0
        %1262 = vmatpush1.bf16.xpose.msra.mxu0 0
        %1263 = vmatprep.subr.bf16.mxu0 0
        %1264 = vmatpush1.bf16.xpose.msra.mxu0 0
        %1265 = vmatprep.subr.bf16.mxu0 0
        %1266 = vmatpush1.bf16.xpose.msra.mxu0 0
        %1267 = vmatprep.subr.bf16.mxu0 0
        %1268 = vmatpush1.bf16.xpose.msra.mxu0 0
        %1269 = vmatprep.subr.bf16.mxu0 0
        %1270 = vmatpush1.bf16.xpose.msra.mxu0 0
        %1271 = vmatprep.subr.bf16.mxu0 0
        %1272 = vmatpush1.bf16.xpose.msra.mxu0 0
        %1273 = vmatprep.subr.bf16.mxu0 0
        %1274 = vmatpush1.bf16.xpose.msra.mxu0 %v1227
        %1275 = vmatprep.subr.bf16.mxu0 0
        %1276 = vmatpush2.bf16.xpose.msra.mxu0 0
        %1277 = vmatprep.subr.bf16.mxu0 0
        %1278 = vmatpush2.bf16.xpose.msra.mxu0 0
        %1279 = vmatprep.subr.bf16.mxu0 0
        %1280 = vmatpush2.bf16.xpose.msra.mxu0 0
        %1281 = vmatprep.subr.bf16.mxu0 0
        %1282 = vmatpush2.bf16.xpose.msra.mxu0 0
        %1283 = vmatprep.subr.bf16.mxu0 0
        %1284 = vmatpush2.bf16.xpose.msra.mxu0 0
        %1285 = vmatprep.subr.bf16.mxu0 0
        %1286 = vmatpush2.bf16.xpose.msra.mxu0 0
        %1287 = vmatprep.subr.bf16.mxu0 0
        %1288 = vmatpush2.bf16.xpose.msra.mxu0 0
        %1289 = vmatprep.subr.bf16.mxu0 0
        %1290 = vmatpush2.bf16.xpose.msra.mxu0 0
        %1291 = vmatprep.mubr.bf16.mxu0 0
        %1292 = vmatmul.mubr.bf16.gmra.mxu0 %v1195
        %v1293 = vpop.f32.mrf.mxu0
        %v1294 = vadd.f32 0.0, %v1293
        %v1295 = vpop.f32.mrf.mxu0
        %v1296 = vpop.f32.mrf.mxu0
        %v1297 = vpop.f32.mrf.mxu0
        %1298 = vdwg.mxu0
        %1299 = vmatprep.subr.bf16.mxu0 0
        %1300 = vmatpush1.bf16.xpose.msra.mxu0 0
        %1301 = vmatprep.subr.bf16.mxu0 0
        %1302 = vmatpush1.bf16.xpose.msra.mxu0 0
        %1303 = vmatprep.subr.bf16.mxu0 0
        %1304 = vmatpush1.bf16.xpose.msra.mxu0 0
        %1305 = vmatprep.subr.bf16.mxu0 0
        %1306 = vmatpush1.bf16.xpose.msra.mxu0 0
        %1307 = vmatprep.subr.bf16.mxu0 0
        %1308 = vmatpush1.bf16.xpose.msra.mxu0 0
        %1309 = vmatprep.subr.bf16.mxu0 0
        %1310 = vmatpush1.bf16.xpose.msra.mxu0 0
        %1311 = vmatprep.subr.bf16.mxu0 0
        %1312 = vmatpush1.bf16.xpose.msra.mxu0 0
        %1313 = vmatprep.subr.bf16.mxu0 0
        %1314 = vmatpush1.bf16.xpose.msra.mxu0 %v1228
        %1315 = vmatprep.subr.bf16.mxu0 0
        %1316 = vmatpush2.bf16.xpose.msra.mxu0 0
        %1317 = vmatprep.subr.bf16.mxu0 0
        %1318 = vmatpush2.bf16.xpose.msra.mxu0 0
        %1319 = vmatprep.subr.bf16.mxu0 0
        %1320 = vmatpush2.bf16.xpose.msra.mxu0 0
        %1321 = vmatprep.subr.bf16.mxu0 0
        %1322 = vmatpush2.bf16.xpose.msra.mxu0 0
        %1323 = vmatprep.subr.bf16.mxu0 0
        %1324 = vmatpush2.bf16.xpose.msra.mxu0 0
        %1325 = vmatprep.subr.bf16.mxu0 0
        %1326 = vmatpush2.bf16.xpose.msra.mxu0 0
        %1327 = vmatprep.subr.bf16.mxu0 0
        %1328 = vmatpush2.bf16.xpose.msra.mxu0 0
        %1329 = vmatprep.subr.bf16.mxu0 0
        %1330 = vmatpush2.bf16.xpose.msra.mxu0 0
        %1331 = vmatprep.mubr.bf16.mxu0 0
        %1332 = vmatmul.mubr.bf16.gmra.mxu0 %v1196
        %v1333 = vpop.f32.mrf.mxu0
        %v1334 = vadd.f32 0.0, %v1333
        %v1335 = vpop.f32.mrf.mxu0
        %v1336 = vpop.f32.mrf.mxu0
        %v1337 = vpop.f32.mrf.mxu0
        %1338 = vdwg.mxu0
        %1339 = vmatprep.subr.bf16.mxu0 0
        %1340 = vmatpush1.bf16.xpose.msra.mxu0 0
        %1341 = vmatprep.subr.bf16.mxu0 0
        %1342 = vmatpush1.bf16.xpose.msra.mxu0 0
        %1343 = vmatprep.subr.bf16.mxu0 0
        %1344 = vmatpush1.bf16.xpose.msra.mxu0 0
        %1345 = vmatprep.subr.bf16.mxu0 0
        %1346 = vmatpush1.bf16.xpose.msra.mxu0 0
        %1347 = vmatprep.subr.bf16.mxu0 0
        %1348 = vmatpush1.bf16.xpose.msra.mxu0 0
        %1349 = vmatprep.subr.bf16.mxu0 0
        %1350 = vmatpush1.bf16.xpose.msra.mxu0 0
        %1351 = vmatprep.subr.bf16.mxu0 0
        %1352 = vmatpush1.bf16.xpose.msra.mxu0 0
        %1353 = vmatprep.subr.bf16.mxu0 0
        %1354 = vmatpush1.bf16.xpose.msra.mxu0 %v1229
        %1355 = vmatprep.subr.bf16.mxu0 0
        %1356 = vmatpush2.bf16.xpose.msra.mxu0 0
        %1357 = vmatprep.subr.bf16.mxu0 0
        %1358 = vmatpush2.bf16.xpose.msra.mxu0 0
        %1359 = vmatprep.subr.bf16.mxu0 0
        %1360 = vmatpush2.bf16.xpose.msra.mxu0 0
        %1361 = vmatprep.subr.bf16.mxu0 0
        %1362 = vmatpush2.bf16.xpose.msra.mxu0 0
        %1363 = vmatprep.subr.bf16.mxu0 0
        %1364 = vmatpush2.bf16.xpose.msra.mxu0 0
        %1365 = vmatprep.subr.bf16.mxu0 0
        %1366 = vmatpush2.bf16.xpose.msra.mxu0 0
        %1367 = vmatprep.subr.bf16.mxu0 0
        %1368 = vmatpush2.bf16.xpose.msra.mxu0 0
        %1369 = vmatprep.subr.bf16.mxu0 0
        %1370 = vmatpush2.bf16.xpose.msra.mxu0 0
        %1371 = vmatprep.mubr.bf16.mxu0 0
        %1372 = vmatmul.mubr.bf16.gmra.mxu0 %v1197
        %v1373 = vpop.f32.mrf.mxu0
        %v1374 = vadd.f32 0.0, %v1373
        %v1375 = vpop.f32.mrf.mxu0
        %v1376 = vpop.f32.mrf.mxu0
        %v1377 = vpop.f32.mrf.mxu0
        %1378 = vdwg.mxu0
        %1379 = vmatprep.subr.bf16.mxu0 0
        %1380 = vmatpush1.bf16.xpose.msra.mxu0 0
        %1381 = vmatprep.subr.bf16.mxu0 0
        %1382 = vmatpush1.bf16.xpose.msra.mxu0 0
        %1383 = vmatprep.subr.bf16.mxu0 0
        %1384 = vmatpush1.bf16.xpose.msra.mxu0 0
        %1385 = vmatprep.subr.bf16.mxu0 0
        %1386 = vmatpush1.bf16.xpose.msra.mxu0 0
        %1387 = vmatprep.subr.bf16.mxu0 0
        %1388 = vmatpush1.bf16.xpose.msra.mxu0 0
        %1389 = vmatprep.subr.bf16.mxu0 0
        %1390 = vmatpush1.bf16.xpose.msra.mxu0 0
        %1391 = vmatprep.subr.bf16.mxu0 0
        %1392 = vmatpush1.bf16.xpose.msra.mxu0 0
        %1393 = vmatprep.subr.bf16.mxu0 0
        %1394 = vmatpush1.bf16.xpose.msra.mxu0 %v1230
        %1395 = vmatprep.subr.bf16.mxu0 0
        %1396 = vmatpush2.bf16.xpose.msra.mxu0 0
        %1397 = vmatprep.subr.bf16.mxu0 0
        %1398 = vmatpush2.bf16.xpose.msra.mxu0 0
        %1399 = vmatprep.subr.bf16.mxu0 0
        %1400 = vmatpush2.bf16.xpose.msra.mxu0 0
        %1401 = vmatprep.subr.bf16.mxu0 0
        %1402 = vmatpush2.bf16.xpose.msra.mxu0 0
        %1403 = vmatprep.subr.bf16.mxu0 0
        %1404 = vmatpush2.bf16.xpose.msra.mxu0 0
        %1405 = vmatprep.subr.bf16.mxu0 0
        %1406 = vmatpush2.bf16.xpose.msra.mxu0 0
        %1407 = vmatprep.subr.bf16.mxu0 0
        %1408 = vmatpush2.bf16.xpose.msra.mxu0 0
        %1409 = vmatprep.subr.bf16.mxu0 0
        %1410 = vmatpush2.bf16.xpose.msra.mxu0 0
        %1411 = vmatprep.mubr.bf16.mxu0 0
        %1412 = vmatmul.mubr.bf16.gmra.mxu0 %v1198
        %v1413 = vpop.f32.mrf.mxu0
        %v1414 = vadd.f32 0.0, %v1413
        %v1415 = vpop.f32.mrf.mxu0
        %v1416 = vpop.f32.mrf.mxu0
        %v1417 = vpop.f32.mrf.mxu0
        %1418 = vdwg.mxu0
        %1419 = vmatprep.subr.bf16.mxu0 0
        %1420 = vmatpush1.bf16.xpose.msra.mxu0 0
        %1421 = vmatprep.subr.bf16.mxu0 0
        %1422 = vmatpush1.bf16.xpose.msra.mxu0 0
        %1423 = vmatprep.subr.bf16.mxu0 0
        %1424 = vmatpush1.bf16.xpose.msra.mxu0 0
        %1425 = vmatprep.subr.bf16.mxu0 0
        %1426 = vmatpush1.bf16.xpose.msra.mxu0 0
        %1427 = vmatprep.subr.bf16.mxu0 0
        %1428 = vmatpush1.bf16.xpose.msra.mxu0 0
        %1429 = vmatprep.subr.bf16.mxu0 0
        %1430 = vmatpush1.bf16.xpose.msra.mxu0 0
        %1431 = vmatprep.subr.bf16.mxu0 0
        %1432 = vmatpush1.bf16.xpose.msra.mxu0 0
        %1433 = vmatprep.subr.bf16.mxu0 0
        %1434 = vmatpush1.bf16.xpose.msra.mxu0 %v1231
        %1435 = vmatprep.subr.bf16.mxu0 0
        %1436 = vmatpush2.bf16.xpose.msra.mxu0 0
        %1437 = vmatprep.subr.bf16.mxu0 0
        %1438 = vmatpush2.bf16.xpose.msra.mxu0 0
        %1439 = vmatprep.subr.bf16.mxu0 0
        %1440 = vmatpush2.bf16.xpose.msra.mxu0 0
        %1441 = vmatprep.subr.bf16.mxu0 0
        %1442 = vmatpush2.bf16.xpose.msra.mxu0 0
        %1443 = vmatprep.subr.bf16.mxu0 0
        %1444 = vmatpush2.bf16.xpose.msra.mxu0 0
        %1445 = vmatprep.subr.bf16.mxu0 0
        %1446 = vmatpush2.bf16.xpose.msra.mxu0 0
        %1447 = vmatprep.subr.bf16.mxu0 0
        %1448 = vmatpush2.bf16.xpose.msra.mxu0 0
        %1449 = vmatprep.subr.bf16.mxu0 0
        %1450 = vmatpush2.bf16.xpose.msra.mxu0 0
        %1451 = vmatprep.mubr.bf16.mxu0 0
        %1452 = vmatmul.mubr.bf16.gmra.mxu0 %v1199
        %v1453 = vpop.f32.mrf.mxu0
        %v1454 = vadd.f32 0.0, %v1453
        %v1455 = vpop.f32.mrf.mxu0
        %v1456 = vpop.f32.mrf.mxu0
        %v1457 = vpop.f32.mrf.mxu0
        %1458 = vdwg.mxu0
        %1459 = vmatprep.subr.bf16.mxu0 0
        %1460 = vmatpush1.bf16.xpose.msra.mxu0 0
        %1461 = vmatprep.subr.bf16.mxu0 0
        %1462 = vmatpush1.bf16.xpose.msra.mxu0 0
        %1463 = vmatprep.subr.bf16.mxu0 0
        %1464 = vmatpush1.bf16.xpose.msra.mxu0 0
        %1465 = vmatprep.subr.bf16.mxu0 0
        %1466 = vmatpush1.bf16.xpose.msra.mxu0 0
        %1467 = vmatprep.subr.bf16.mxu0 0
        %1468 = vmatpush1.bf16.xpose.msra.mxu0 0
        %1469 = vmatprep.subr.bf16.mxu0 0
        %1470 = vmatpush1.bf16.xpose.msra.mxu0 0
        %1471 = vmatprep.subr.bf16.mxu0 0
        %1472 = vmatpush1.bf16.xpose.msra.mxu0 0
        %1473 = vmatprep.subr.bf16.mxu0 0
        %1474 = vmatpush1.bf16.xpose.msra.mxu0 %v1232
        %1475 = vmatprep.subr.bf16.mxu0 0
        %1476 = vmatpush2.bf16.xpose.msra.mxu0 0
        %1477 = vmatprep.subr.bf16.mxu0 0
        %1478 = vmatpush2.bf16.xpose.msra.mxu0 0
        %1479 = vmatprep.subr.bf16.mxu0 0
        %1480 = vmatpush2.bf16.xpose.msra.mxu0 0
        %1481 = vmatprep.subr.bf16.mxu0 0
        %1482 = vmatpush2.bf16.xpose.msra.mxu0 0
        %1483 = vmatprep.subr.bf16.mxu0 0
        %1484 = vmatpush2.bf16.xpose.msra.mxu0 0
        %1485 = vmatprep.subr.bf16.mxu0 0
        %1486 = vmatpush2.bf16.xpose.msra.mxu0 0
        %1487 = vmatprep.subr.bf16.mxu0 0
        %1488 = vmatpush2.bf16.xpose.msra.mxu0 0
        %1489 = vmatprep.subr.bf16.mxu0 0
        %1490 = vmatpush2.bf16.xpose.msra.mxu0 0
        %1491 = vmatprep.mubr.bf16.mxu0 0
        %1492 = vmatmul.mubr.bf16.gmra.mxu0 %v1200
        %v1493 = vpop.f32.mrf.mxu0
        %v1494 = vadd.f32 0.0, %v1493
        %v1495 = vpop.f32.mrf.mxu0
        %v1496 = vpop.f32.mrf.mxu0
        %v1497 = vpop.f32.mrf.mxu0
        %1498 = vdwg.mxu0
        %1499 = vmatprep.subr.bf16.mxu0 0
        %1500 = vmatpush1.bf16.xpose.msra.mxu0 0
        %1501 = vmatprep.subr.bf16.mxu0 0
        %1502 = vmatpush1.bf16.xpose.msra.mxu0 0
        %1503 = vmatprep.subr.bf16.mxu0 0
        %1504 = vmatpush1.bf16.xpose.msra.mxu0 0
        %1505 = vmatprep.subr.bf16.mxu0 0
        %1506 = vmatpush1.bf16.xpose.msra.mxu0 0
        %1507 = vmatprep.subr.bf16.mxu0 0
        %1508 = vmatpush1.bf16.xpose.msra.mxu0 0
        %1509 = vmatprep.subr.bf16.mxu0 0
        %1510 = vmatpush1.bf16.xpose.msra.mxu0 0
        %1511 = vmatprep.subr.bf16.mxu0 0
        %1512 = vmatpush1.bf16.xpose.msra.mxu0 0
        %1513 = vmatprep.subr.bf16.mxu0 0
        %1514 = vmatpush1.bf16.xpose.msra.mxu0 %v1233
        %1515 = vmatprep.subr.bf16.mxu0 0
        %1516 = vmatpush2.bf16.xpose.msra.mxu0 0
        %1517 = vmatprep.subr.bf16.mxu0 0
        %1518 = vmatpush2.bf16.xpose.msra.mxu0 0
        %1519 = vmatprep.subr.bf16.mxu0 0
        %1520 = vmatpush2.bf16.xpose.msra.mxu0 0
        %1521 = vmatprep.subr.bf16.mxu0 0
        %1522 = vmatpush2.bf16.xpose.msra.mxu0 0
        %1523 = vmatprep.subr.bf16.mxu0 0
        %1524 = vmatpush2.bf16.xpose.msra.mxu0 0
        %1525 = vmatprep.subr.bf16.mxu0 0
        %1526 = vmatpush2.bf16.xpose.msra.mxu0 0
        %1527 = vmatprep.subr.bf16.mxu0 0
        %1528 = vmatpush2.bf16.xpose.msra.mxu0 0
        %1529 = vmatprep.subr.bf16.mxu0 0
        %1530 = vmatpush2.bf16.xpose.msra.mxu0 0
        %1531 = vmatprep.mubr.bf16.mxu0 0
        %1532 = vmatmul.mubr.bf16.gmra.mxu0 %v1201
        %v1533 = vpop.f32.mrf.mxu0
        %v1534 = vadd.f32 0.0, %v1533
        %v1535 = vpop.f32.mrf.mxu0
        %v1536 = vpop.f32.mrf.mxu0
        %v1537 = vpop.f32.mrf.mxu0
        %1538 = vdwg.mxu0
        %1539 = vmatprep.subr.bf16.mxu0 0
        %1540 = vmatpush1.bf16.xpose.msra.mxu0 0
        %1541 = vmatprep.subr.bf16.mxu0 0
        %1542 = vmatpush1.bf16.xpose.msra.mxu0 0
        %1543 = vmatprep.subr.bf16.mxu0 0
        %1544 = vmatpush1.bf16.xpose.msra.mxu0 0
        %1545 = vmatprep.subr.bf16.mxu0 0
        %1546 = vmatpush1.bf16.xpose.msra.mxu0 0
        %1547 = vmatprep.subr.bf16.mxu0 0
        %1548 = vmatpush1.bf16.xpose.msra.mxu0 0
        %1549 = vmatprep.subr.bf16.mxu0 0
        %1550 = vmatpush1.bf16.xpose.msra.mxu0 0
        %1551 = vmatprep.subr.bf16.mxu0 0
        %1552 = vmatpush1.bf16.xpose.msra.mxu0 0
        %1553 = vmatprep.subr.bf16.mxu0 0
        %1554 = vmatpush1.bf16.xpose.msra.mxu0 %v1234
        %1555 = vmatprep.subr.bf16.mxu0 0
        %1556 = vmatpush2.bf16.xpose.msra.mxu0 0
        %1557 = vmatprep.subr.bf16.mxu0 0
        %1558 = vmatpush2.bf16.xpose.msra.mxu0 0
        %1559 = vmatprep.subr.bf16.mxu0 0
        %1560 = vmatpush2.bf16.xpose.msra.mxu0 0
        %1561 = vmatprep.subr.bf16.mxu0 0
        %1562 = vmatpush2.bf16.xpose.msra.mxu0 0
        %1563 = vmatprep.subr.bf16.mxu0 0
        %1564 = vmatpush2.bf16.xpose.msra.mxu0 0
        %1565 = vmatprep.subr.bf16.mxu0 0
        %1566 = vmatpush2.bf16.xpose.msra.mxu0 0
        %1567 = vmatprep.subr.bf16.mxu0 0
        %1568 = vmatpush2.bf16.xpose.msra.mxu0 0
        %1569 = vmatprep.subr.bf16.mxu0 0
        %1570 = vmatpush2.bf16.xpose.msra.mxu0 0
        %1571 = vmatprep.mubr.bf16.mxu0 0
        %1572 = vmatmul.mubr.bf16.gmra.mxu0 %v1202
        %v1573 = vpop.f32.mrf.mxu0
        %v1574 = vadd.f32 0.0, %v1573
        %v1575 = vpop.f32.mrf.mxu0
        %v1576 = vpop.f32.mrf.mxu0
        %v1577 = vpop.f32.mrf.mxu0
        %1578 = vdwg.mxu0
        %1579 = vmatprep.subr.bf16.mxu0 0
        %1580 = vmatpush1.bf16.xpose.msra.mxu0 0
        %1581 = vmatprep.subr.bf16.mxu0 0
        %1582 = vmatpush1.bf16.xpose.msra.mxu0 0
        %1583 = vmatprep.subr.bf16.mxu0 0
        %1584 = vmatpush1.bf16.xpose.msra.mxu0 0
        %1585 = vmatprep.subr.bf16.mxu0 0
        %1586 = vmatpush1.bf16.xpose.msra.mxu0 0
        %1587 = vmatprep.subr.bf16.mxu0 0
        %1588 = vmatpush1.bf16.xpose.msra.mxu0 0
        %1589 = vmatprep.subr.bf16.mxu0 0
        %1590 = vmatpush1.bf16.xpose.msra.mxu0 0
        %1591 = vmatprep.subr.bf16.mxu0 0
        %1592 = vmatpush1.bf16.xpose.msra.mxu0 0
        %1593 = vmatprep.subr.bf16.mxu0 0
        %1594 = vmatpush1.bf16.xpose.msra.mxu0 %v1235
        %1595 = vmatprep.subr.bf16.mxu0 0
        %1596 = vmatpush2.bf16.xpose.msra.mxu0 0
        %1597 = vmatprep.subr.bf16.mxu0 0
        %1598 = vmatpush2.bf16.xpose.msra.mxu0 0
        %1599 = vmatprep.subr.bf16.mxu0 0
        %1600 = vmatpush2.bf16.xpose.msra.mxu0 0
        %1601 = vmatprep.subr.bf16.mxu0 0
        %1602 = vmatpush2.bf16.xpose.msra.mxu0 0
        %1603 = vmatprep.subr.bf16.mxu0 0
        %1604 = vmatpush2.bf16.xpose.msra.mxu0 0
        %1605 = vmatprep.subr.bf16.mxu0 0
        %1606 = vmatpush2.bf16.xpose.msra.mxu0 0
        %1607 = vmatprep.subr.bf16.mxu0 0
        %1608 = vmatpush2.bf16.xpose.msra.mxu0 0
        %1609 = vmatprep.subr.bf16.mxu0 0
        %1610 = vmatpush2.bf16.xpose.msra.mxu0 0
        %1611 = vmatprep.mubr.bf16.mxu0 0
        %1612 = vmatmul.mubr.bf16.gmra.mxu0 %v1203
        %v1613 = vpop.f32.mrf.mxu0
        %v1614 = vadd.f32 0.0, %v1613
        %v1615 = vpop.f32.mrf.mxu0
        %v1616 = vpop.f32.mrf.mxu0
        %v1617 = vpop.f32.mrf.mxu0
        %1618 = vdwg.mxu0
        %1619 = vmatprep.subr.bf16.mxu0 0
        %1620 = vmatpush1.bf16.xpose.msra.mxu0 0
        %1621 = vmatprep.subr.bf16.mxu0 0
        %1622 = vmatpush1.bf16.xpose.msra.mxu0 0
        %1623 = vmatprep.subr.bf16.mxu0 0
        %1624 = vmatpush1.bf16.xpose.msra.mxu0 0
        %1625 = vmatprep.subr.bf16.mxu0 0
        %1626 = vmatpush1.bf16.xpose.msra.mxu0 0
        %1627 = vmatprep.subr.bf16.mxu0 0
        %1628 = vmatpush1.bf16.xpose.msra.mxu0 0
        %1629 = vmatprep.subr.bf16.mxu0 0
        %1630 = vmatpush1.bf16.xpose.msra.mxu0 0
        %1631 = vmatprep.subr.bf16.mxu0 0
        %1632 = vmatpush1.bf16.xpose.msra.mxu0 0
        %1633 = vmatprep.subr.bf16.mxu0 0
        %1634 = vmatpush1.bf16.xpose.msra.mxu0 %v1236
        %1635 = vmatprep.subr.bf16.mxu0 0
        %1636 = vmatpush2.bf16.xpose.msra.mxu0 0
        %1637 = vmatprep.subr.bf16.mxu0 0
        %1638 = vmatpush2.bf16.xpose.msra.mxu0 0
        %1639 = vmatprep.subr.bf16.mxu0 0
        %1640 = vmatpush2.bf16.xpose.msra.mxu0 0
        %1641 = vmatprep.subr.bf16.mxu0 0
        %1642 = vmatpush2.bf16.xpose.msra.mxu0 0
        %1643 = vmatprep.subr.bf16.mxu0 0
        %1644 = vmatpush2.bf16.xpose.msra.mxu0 0
        %1645 = vmatprep.subr.bf16.mxu0 0
        %1646 = vmatpush2.bf16.xpose.msra.mxu0 0
        %1647 = vmatprep.subr.bf16.mxu0 0
        %1648 = vmatpush2.bf16.xpose.msra.mxu0 0
        %1649 = vmatprep.subr.bf16.mxu0 0
        %1650 = vmatpush2.bf16.xpose.msra.mxu0 0
        %1651 = vmatprep.mubr.bf16.mxu0 0
        %1652 = vmatmul.mubr.bf16.gmra.mxu0 %v1204
        %v1653 = vpop.f32.mrf.mxu0
        %v1654 = vadd.f32 0.0, %v1653
        %v1655 = vpop.f32.mrf.mxu0
        %v1656 = vpop.f32.mrf.mxu0
        %v1657 = vpop.f32.mrf.mxu0
        %1658 = vdwg.mxu0
        %1659 = vmatprep.subr.bf16.mxu0 0
        %1660 = vmatpush1.bf16.xpose.msra.mxu0 0
        %1661 = vmatprep.subr.bf16.mxu0 0
        %1662 = vmatpush1.bf16.xpose.msra.mxu0 0
        %1663 = vmatprep.subr.bf16.mxu0 0
        %1664 = vmatpush1.bf16.xpose.msra.mxu0 0
        %1665 = vmatprep.subr.bf16.mxu0 0
        %1666 = vmatpush1.bf16.xpose.msra.mxu0 0
        %1667 = vmatprep.subr.bf16.mxu0 0
        %1668 = vmatpush1.bf16.xpose.msra.mxu0 0
        %1669 = vmatprep.subr.bf16.mxu0 0
        %1670 = vmatpush1.bf16.xpose.msra.mxu0 0
        %1671 = vmatprep.subr.bf16.mxu0 0
        %1672 = vmatpush1.bf16.xpose.msra.mxu0 0
        %1673 = vmatprep.subr.bf16.mxu0 0
        %1674 = vmatpush1.bf16.xpose.msra.mxu0 %v1237
        %1675 = vmatprep.subr.bf16.mxu0 0
        %1676 = vmatpush2.bf16.xpose.msra.mxu0 0
        %1677 = vmatprep.subr.bf16.mxu0 0
        %1678 = vmatpush2.bf16.xpose.msra.mxu0 0
        %1679 = vmatprep.subr.bf16.mxu0 0
        %1680 = vmatpush2.bf16.xpose.msra.mxu0 0
        %1681 = vmatprep.subr.bf16.mxu0 0
        %1682 = vmatpush2.bf16.xpose.msra.mxu0 0
        %1683 = vmatprep.subr.bf16.mxu0 0
        %1684 = vmatpush2.bf16.xpose.msra.mxu0 0
        %1685 = vmatprep.subr.bf16.mxu0 0
        %1686 = vmatpush2.bf16.xpose.msra.mxu0 0
        %1687 = vmatprep.subr.bf16.mxu0 0
        %1688 = vmatpush2.bf16.xpose.msra.mxu0 0
        %1689 = vmatprep.subr.bf16.mxu0 0
        %1690 = vmatpush2.bf16.xpose.msra.mxu0 0
        %1691 = vmatprep.mubr.bf16.mxu0 0
        %1692 = vmatmul.mubr.bf16.gmra.mxu0 %v1205
        %v1693 = vpop.f32.mrf.mxu0
        %v1694 = vadd.f32 0.0, %v1693
        %v1695 = vpop.f32.mrf.mxu0
        %v1696 = vpop.f32.mrf.mxu0
        %v1697 = vpop.f32.mrf.mxu0
        %1698 = vdwg.mxu0
        %1699 = vmatprep.subr.bf16.mxu0 0
        %1700 = vmatpush1.bf16.xpose.msra.mxu0 0
        %1701 = vmatprep.subr.bf16.mxu0 0
        %1702 = vmatpush1.bf16.xpose.msra.mxu0 0
        %1703 = vmatprep.subr.bf16.mxu0 0
        %1704 = vmatpush1.bf16.xpose.msra.mxu0 0
        %1705 = vmatprep.subr.bf16.mxu0 0
        %1706 = vmatpush1.bf16.xpose.msra.mxu0 0
        %1707 = vmatprep.subr.bf16.mxu0 0
        %1708 = vmatpush1.bf16.xpose.msra.mxu0 0
        %1709 = vmatprep.subr.bf16.mxu0 0
        %1710 = vmatpush1.bf16.xpose.msra.mxu0 0
        %1711 = vmatprep.subr.bf16.mxu0 0
        %1712 = vmatpush1.bf16.xpose.msra.mxu0 0
        %1713 = vmatprep.subr.bf16.mxu0 0
        %1714 = vmatpush1.bf16.xpose.msra.mxu0 %v1238
        %1715 = vmatprep.subr.bf16.mxu0 0
        %1716 = vmatpush2.bf16.xpose.msra.mxu0 0
        %1717 = vmatprep.subr.bf16.mxu0 0
        %1718 = vmatpush2.bf16.xpose.msra.mxu0 0
        %1719 = vmatprep.subr.bf16.mxu0 0
        %1720 = vmatpush2.bf16.xpose.msra.mxu0 0
        %1721 = vmatprep.subr.bf16.mxu0 0
        %1722 = vmatpush2.bf16.xpose.msra.mxu0 0
        %1723 = vmatprep.subr.bf16.mxu0 0
        %1724 = vmatpush2.bf16.xpose.msra.mxu0 0
        %1725 = vmatprep.subr.bf16.mxu0 0
        %1726 = vmatpush2.bf16.xpose.msra.mxu0 0
        %1727 = vmatprep.subr.bf16.mxu0 0
        %1728 = vmatpush2.bf16.xpose.msra.mxu0 0
        %1729 = vmatprep.subr.bf16.mxu0 0
        %1730 = vmatpush2.bf16.xpose.msra.mxu0 0
        %1731 = vmatprep.mubr.bf16.mxu0 0
        %1732 = vmatmul.mubr.bf16.gmra.mxu0 %v1206
        %v1733 = vpop.f32.mrf.mxu0
        %v1734 = vadd.f32 0.0, %v1733
        %v1735 = vpop.f32.mrf.mxu0
        %v1736 = vpop.f32.mrf.mxu0
        %v1737 = vpop.f32.mrf.mxu0
        %1738 = vdwg.mxu0
        %1739 = vmatprep.subr.bf16.mxu0 0
        %1740 = vmatpush1.bf16.xpose.msra.mxu0 0
        %1741 = vmatprep.subr.bf16.mxu0 0
        %1742 = vmatpush1.bf16.xpose.msra.mxu0 0
        %1743 = vmatprep.subr.bf16.mxu0 0
        %1744 = vmatpush1.bf16.xpose.msra.mxu0 0
        %1745 = vmatprep.subr.bf16.mxu0 0
        %1746 = vmatpush1.bf16.xpose.msra.mxu0 0
        %1747 = vmatprep.subr.bf16.mxu0 0
        %1748 = vmatpush1.bf16.xpose.msra.mxu0 0
        %1749 = vmatprep.subr.bf16.mxu0 0
        %1750 = vmatpush1.bf16.xpose.msra.mxu0 0
        %1751 = vmatprep.subr.bf16.mxu0 0
        %1752 = vmatpush1.bf16.xpose.msra.mxu0 0
        %1753 = vmatprep.subr.bf16.mxu0 0
        %1754 = vmatpush1.bf16.xpose.msra.mxu0 %v1239
        %1755 = vmatprep.subr.bf16.mxu0 0
        %1756 = vmatpush2.bf16.xpose.msra.mxu0 0
        %1757 = vmatprep.subr.bf16.mxu0 0
        %1758 = vmatpush2.bf16.xpose.msra.mxu0 0
        %1759 = vmatprep.subr.bf16.mxu0 0
        %1760 = vmatpush2.bf16.xpose.msra.mxu0 0
        %1761 = vmatprep.subr.bf16.mxu0 0
        %1762 = vmatpush2.bf16.xpose.msra.mxu0 0
        %1763 = vmatprep.subr.bf16.mxu0 0
        %1764 = vmatpush2.bf16.xpose.msra.mxu0 0
        %1765 = vmatprep.subr.bf16.mxu0 0
        %1766 = vmatpush2.bf16.xpose.msra.mxu0 0
        %1767 = vmatprep.subr.bf16.mxu0 0
        %1768 = vmatpush2.bf16.xpose.msra.mxu0 0
        %1769 = vmatprep.subr.bf16.mxu0 0
        %1770 = vmatpush2.bf16.xpose.msra.mxu0 0
        %1771 = vmatprep.mubr.bf16.mxu0 0
        %1772 = vmatmul.mubr.bf16.gmra.mxu0 %v1207
        %v1773 = vpop.f32.mrf.mxu0
        %v1774 = vadd.f32 0.0, %v1773
        %v1775 = vpop.f32.mrf.mxu0
        %v1776 = vpop.f32.mrf.mxu0
        %v1777 = vpop.f32.mrf.mxu0
        %1778 = vdwg.mxu0
        %1779 = vmatprep.subr.bf16.mxu0 0
        %1780 = vmatpush1.bf16.xpose.msra.mxu0 0
        %1781 = vmatprep.subr.bf16.mxu0 0
        %1782 = vmatpush1.bf16.xpose.msra.mxu0 0
        %1783 = vmatprep.subr.bf16.mxu0 0
        %1784 = vmatpush1.bf16.xpose.msra.mxu0 0
        %1785 = vmatprep.subr.bf16.mxu0 0
        %1786 = vmatpush1.bf16.xpose.msra.mxu0 0
        %1787 = vmatprep.subr.bf16.mxu0 0
        %1788 = vmatpush1.bf16.xpose.msra.mxu0 0
        %1789 = vmatprep.subr.bf16.mxu0 0
        %1790 = vmatpush1.bf16.xpose.msra.mxu0 0
        %1791 = vmatprep.subr.bf16.mxu0 0
        %1792 = vmatpush1.bf16.xpose.msra.mxu0 0
        %1793 = vmatprep.subr.bf16.mxu0 0
        %1794 = vmatpush1.bf16.xpose.msra.mxu0 %v1240
        %1795 = vmatprep.subr.bf16.mxu0 0
        %1796 = vmatpush2.bf16.xpose.msra.mxu0 0
        %1797 = vmatprep.subr.bf16.mxu0 0
        %1798 = vmatpush2.bf16.xpose.msra.mxu0 0
        %1799 = vmatprep.subr.bf16.mxu0 0
        %1800 = vmatpush2.bf16.xpose.msra.mxu0 0
        %1801 = vmatprep.subr.bf16.mxu0 0
        %1802 = vmatpush2.bf16.xpose.msra.mxu0 0
        %1803 = vmatprep.subr.bf16.mxu0 0
        %1804 = vmatpush2.bf16.xpose.msra.mxu0 0
        %1805 = vmatprep.subr.bf16.mxu0 0
        %1806 = vmatpush2.bf16.xpose.msra.mxu0 0
        %1807 = vmatprep.subr.bf16.mxu0 0
        %1808 = vmatpush2.bf16.xpose.msra.mxu0 0
        %1809 = vmatprep.subr.bf16.mxu0 0
        %1810 = vmatpush2.bf16.xpose.msra.mxu0 0
        %1811 = vmatprep.mubr.bf16.mxu0 0
        %1812 = vmatmul.mubr.bf16.gmra.mxu0 %v1208
        %v1813 = vpop.f32.mrf.mxu0
        %v1814 = vadd.f32 0.0, %v1813
        %v1815 = vpop.f32.mrf.mxu0
        %v1816 = vpop.f32.mrf.mxu0
        %v1817 = vpop.f32.mrf.mxu0
        %1818 = vdwg.mxu0
        %1819 = vmatprep.subr.bf16.mxu0 0
        %1820 = vmatpush1.bf16.xpose.msra.mxu0 0
        %1821 = vmatprep.subr.bf16.mxu0 0
        %1822 = vmatpush1.bf16.xpose.msra.mxu0 0
        %1823 = vmatprep.subr.bf16.mxu0 0
        %1824 = vmatpush1.bf16.xpose.msra.mxu0 0
        %1825 = vmatprep.subr.bf16.mxu0 0
        %1826 = vmatpush1.bf16.xpose.msra.mxu0 0
        %1827 = vmatprep.subr.bf16.mxu0 0
        %1828 = vmatpush1.bf16.xpose.msra.mxu0 0
        %1829 = vmatprep.subr.bf16.mxu0 0
        %1830 = vmatpush1.bf16.xpose.msra.mxu0 0
        %1831 = vmatprep.subr.bf16.mxu0 0
        %1832 = vmatpush1.bf16.xpose.msra.mxu0 0
        %1833 = vmatprep.subr.bf16.mxu0 0
        %1834 = vmatpush1.bf16.xpose.msra.mxu0 %v1241
        %1835 = vmatprep.subr.bf16.mxu0 0
        %1836 = vmatpush2.bf16.xpose.msra.mxu0 0
        %1837 = vmatprep.subr.bf16.mxu0 0
        %1838 = vmatpush2.bf16.xpose.msra.mxu0 0
        %1839 = vmatprep.subr.bf16.mxu0 0
        %1840 = vmatpush2.bf16.xpose.msra.mxu0 0
        %1841 = vmatprep.subr.bf16.mxu0 0
        %1842 = vmatpush2.bf16.xpose.msra.mxu0 0
        %1843 = vmatprep.subr.bf16.mxu0 0
        %1844 = vmatpush2.bf16.xpose.msra.mxu0 0
        %1845 = vmatprep.subr.bf16.mxu0 0
        %1846 = vmatpush2.bf16.xpose.msra.mxu0 0
        %1847 = vmatprep.subr.bf16.mxu0 0
        %1848 = vmatpush2.bf16.xpose.msra.mxu0 0
        %1849 = vmatprep.subr.bf16.mxu0 0
        %1850 = vmatpush2.bf16.xpose.msra.mxu0 0
        %1851 = vmatprep.mubr.bf16.mxu0 0
        %1852 = vmatmul.mubr.bf16.gmra.mxu0 %v1209
        %v1853 = vpop.f32.mrf.mxu0
        %v1854 = vadd.f32 0.0, %v1853
        %v1855 = vpop.f32.mrf.mxu0
        %v1856 = vpop.f32.mrf.mxu0
        %v1857 = vpop.f32.mrf.mxu0
        %1858 = vdwg.mxu0
        %1859 = vmatprep.subr.bf16.mxu0 0
        %1860 = vmatpush1.bf16.xpose.msra.mxu0 0
        %1861 = vmatprep.subr.bf16.mxu0 0
        %1862 = vmatpush1.bf16.xpose.msra.mxu0 0
        %1863 = vmatprep.subr.bf16.mxu0 0
        %1864 = vmatpush1.bf16.xpose.msra.mxu0 0
        %1865 = vmatprep.subr.bf16.mxu0 0
        %1866 = vmatpush1.bf16.xpose.msra.mxu0 0
        %1867 = vmatprep.subr.bf16.mxu0 0
        %1868 = vmatpush1.bf16.xpose.msra.mxu0 0
        %1869 = vmatprep.subr.bf16.mxu0 0
        %1870 = vmatpush1.bf16.xpose.msra.mxu0 0
        %1871 = vmatprep.subr.bf16.mxu0 0
        %1872 = vmatpush1.bf16.xpose.msra.mxu0 0
        %1873 = vmatprep.subr.bf16.mxu0 0
        %1874 = vmatpush1.bf16.xpose.msra.mxu0 %v1242
        %1875 = vmatprep.subr.bf16.mxu0 0
        %1876 = vmatpush2.bf16.xpose.msra.mxu0 0
        %1877 = vmatprep.subr.bf16.mxu0 0
        %1878 = vmatpush2.bf16.xpose.msra.mxu0 0
        %1879 = vmatprep.subr.bf16.mxu0 0
        %1880 = vmatpush2.bf16.xpose.msra.mxu0 0
        %1881 = vmatprep.subr.bf16.mxu0 0
        %1882 = vmatpush2.bf16.xpose.msra.mxu0 0
        %1883 = vmatprep.subr.bf16.mxu0 0
        %1884 = vmatpush2.bf16.xpose.msra.mxu0 0
        %1885 = vmatprep.subr.bf16.mxu0 0
        %1886 = vmatpush2.bf16.xpose.msra.mxu0 0
        %1887 = vmatprep.subr.bf16.mxu0 0
        %1888 = vmatpush2.bf16.xpose.msra.mxu0 0
        %1889 = vmatprep.subr.bf16.mxu0 0
        %1890 = vmatpush2.bf16.xpose.msra.mxu0 0
        %1891 = vmatprep.mubr.bf16.mxu0 0
        %1892 = vmatmul.mubr.bf16.gmra.mxu0 %v1210
        %v1893 = vpop.f32.mrf.mxu0
        %v1894 = vadd.f32 0.0, %v1893
        %v1895 = vpop.f32.mrf.mxu0
        %v1896 = vpop.f32.mrf.mxu0
        %v1897 = vpop.f32.mrf.mxu0
        %1898 = vdwg.mxu0
        %1899 = vmatprep.subr.bf16.mxu0 0
        %1900 = vmatpush1.bf16.xpose.msra.mxu0 0
        %1901 = vmatprep.subr.bf16.mxu0 0
        %1902 = vmatpush1.bf16.xpose.msra.mxu0 0
        %1903 = vmatprep.subr.bf16.mxu0 0
        %1904 = vmatpush1.bf16.xpose.msra.mxu0 0
        %1905 = vmatprep.subr.bf16.mxu0 0
        %1906 = vmatpush1.bf16.xpose.msra.mxu0 0
        %1907 = vmatprep.subr.bf16.mxu0 0
        %1908 = vmatpush1.bf16.xpose.msra.mxu0 0
        %1909 = vmatprep.subr.bf16.mxu0 0
        %1910 = vmatpush1.bf16.xpose.msra.mxu0 0
        %1911 = vmatprep.subr.bf16.mxu0 0
        %1912 = vmatpush1.bf16.xpose.msra.mxu0 0
        %1913 = vmatprep.subr.bf16.mxu0 0
        %1914 = vmatpush1.bf16.xpose.msra.mxu0 %v1243
        %1915 = vmatprep.subr.bf16.mxu0 0
        %1916 = vmatpush2.bf16.xpose.msra.mxu0 0
        %1917 = vmatprep.subr.bf16.mxu0 0
        %1918 = vmatpush2.bf16.xpose.msra.mxu0 0
        %1919 = vmatprep.subr.bf16.mxu0 0
        %1920 = vmatpush2.bf16.xpose.msra.mxu0 0
        %1921 = vmatprep.subr.bf16.mxu0 0
        %1922 = vmatpush2.bf16.xpose.msra.mxu0 0
        %1923 = vmatprep.subr.bf16.mxu0 0
        %1924 = vmatpush2.bf16.xpose.msra.mxu0 0
        %1925 = vmatprep.subr.bf16.mxu0 0
        %1926 = vmatpush2.bf16.xpose.msra.mxu0 0
        %1927 = vmatprep.subr.bf16.mxu0 0
        %1928 = vmatpush2.bf16.xpose.msra.mxu0 0
        %1929 = vmatprep.subr.bf16.mxu0 0
        %1930 = vmatpush2.bf16.xpose.msra.mxu0 0
        %1931 = vmatprep.mubr.bf16.mxu0 0
        %1932 = vmatmul.mubr.bf16.gmra.mxu0 %v1211
        %v1933 = vpop.f32.mrf.mxu0
        %v1934 = vadd.f32 0.0, %v1933
        %v1935 = vpop.f32.mrf.mxu0
        %v1936 = vpop.f32.mrf.mxu0
        %v1937 = vpop.f32.mrf.mxu0
        %1938 = vdwg.mxu0
        %1939 = vmatprep.subr.bf16.mxu0 0
        %1940 = vmatpush1.bf16.xpose.msra.mxu0 0
        %1941 = vmatprep.subr.bf16.mxu0 0
        %1942 = vmatpush1.bf16.xpose.msra.mxu0 0
        %1943 = vmatprep.subr.bf16.mxu0 0
        %1944 = vmatpush1.bf16.xpose.msra.mxu0 0
        %1945 = vmatprep.subr.bf16.mxu0 0
        %1946 = vmatpush1.bf16.xpose.msra.mxu0 0
        %1947 = vmatprep.subr.bf16.mxu0 0
        %1948 = vmatpush1.bf16.xpose.msra.mxu0 0
        %1949 = vmatprep.subr.bf16.mxu0 0
        %1950 = vmatpush1.bf16.xpose.msra.mxu0 0
        %1951 = vmatprep.subr.bf16.mxu0 0
        %1952 = vmatpush1.bf16.xpose.msra.mxu0 0
        %1953 = vmatprep.subr.bf16.mxu0 0
        %1954 = vmatpush1.bf16.xpose.msra.mxu0 %v1244
        %1955 = vmatprep.subr.bf16.mxu0 0
        %1956 = vmatpush2.bf16.xpose.msra.mxu0 0
        %1957 = vmatprep.subr.bf16.mxu0 0
        %1958 = vmatpush2.bf16.xpose.msra.mxu0 0
        %1959 = vmatprep.subr.bf16.mxu0 0
        %1960 = vmatpush2.bf16.xpose.msra.mxu0 0
        %1961 = vmatprep.subr.bf16.mxu0 0
        %1962 = vmatpush2.bf16.xpose.msra.mxu0 0
        %1963 = vmatprep.subr.bf16.mxu0 0
        %1964 = vmatpush2.bf16.xpose.msra.mxu0 0
        %1965 = vmatprep.subr.bf16.mxu0 0
        %1966 = vmatpush2.bf16.xpose.msra.mxu0 0
        %1967 = vmatprep.subr.bf16.mxu0 0
        %1968 = vmatpush2.bf16.xpose.msra.mxu0 0
        %1969 = vmatprep.subr.bf16.mxu0 0
        %1970 = vmatpush2.bf16.xpose.msra.mxu0 0
        %1971 = vmatprep.mubr.bf16.mxu0 0
        %1972 = vmatmul.mubr.bf16.gmra.mxu0 %v1212
        %v1973 = vpop.f32.mrf.mxu0
        %v1974 = vadd.f32 0.0, %v1973
        %v1975 = vpop.f32.mrf.mxu0
        %v1976 = vpop.f32.mrf.mxu0
        %v1977 = vpop.f32.mrf.mxu0
        %1978 = vdwg.mxu0
        %1979 = vmatprep.subr.bf16.mxu0 0
        %1980 = vmatpush1.bf16.xpose.msra.mxu0 0
        %1981 = vmatprep.subr.bf16.mxu0 0
        %1982 = vmatpush1.bf16.xpose.msra.mxu0 0
        %1983 = vmatprep.subr.bf16.mxu0 0
        %1984 = vmatpush1.bf16.xpose.msra.mxu0 0
        %1985 = vmatprep.subr.bf16.mxu0 0
        %1986 = vmatpush1.bf16.xpose.msra.mxu0 0
        %1987 = vmatprep.subr.bf16.mxu0 0
        %1988 = vmatpush1.bf16.xpose.msra.mxu0 0
        %1989 = vmatprep.subr.bf16.mxu0 0
        %1990 = vmatpush1.bf16.xpose.msra.mxu0 0
        %1991 = vmatprep.subr.bf16.mxu0 0
        %1992 = vmatpush1.bf16.xpose.msra.mxu0 0
        %1993 = vmatprep.subr.bf16.mxu0 0
        %1994 = vmatpush1.bf16.xpose.msra.mxu0 %v1245
        %1995 = vmatprep.subr.bf16.mxu0 0
        %1996 = vmatpush2.bf16.xpose.msra.mxu0 0
        %1997 = vmatprep.subr.bf16.mxu0 0
        %1998 = vmatpush2.bf16.xpose.msra.mxu0 0
        %1999 = vmatprep.subr.bf16.mxu0 0
        %2000 = vmatpush2.bf16.xpose.msra.mxu0 0
        %2001 = vmatprep.subr.bf16.mxu0 0
        %2002 = vmatpush2.bf16.xpose.msra.mxu0 0
        %2003 = vmatprep.subr.bf16.mxu0 0
        %2004 = vmatpush2.bf16.xpose.msra.mxu0 0
        %2005 = vmatprep.subr.bf16.mxu0 0
        %2006 = vmatpush2.bf16.xpose.msra.mxu0 0
        %2007 = vmatprep.subr.bf16.mxu0 0
        %2008 = vmatpush2.bf16.xpose.msra.mxu0 0
        %2009 = vmatprep.subr.bf16.mxu0 0
        %2010 = vmatpush2.bf16.xpose.msra.mxu0 0
        %2011 = vmatprep.mubr.bf16.mxu0 0
        %2012 = vmatmul.mubr.bf16.gmra.mxu0 %v1213
        %v2013 = vpop.f32.mrf.mxu0
        %v2014 = vadd.f32 0.0, %v2013
        %v2015 = vpop.f32.mrf.mxu0
        %v2016 = vpop.f32.mrf.mxu0
        %v2017 = vpop.f32.mrf.mxu0
        %2018 = vdwg.mxu0
        %2019 = vmatprep.subr.bf16.mxu0 0
        %2020 = vmatpush1.bf16.xpose.msra.mxu0 0
        %2021 = vmatprep.subr.bf16.mxu0 0
        %2022 = vmatpush1.bf16.xpose.msra.mxu0 0
        %2023 = vmatprep.subr.bf16.mxu0 0
        %2024 = vmatpush1.bf16.xpose.msra.mxu0 0
        %2025 = vmatprep.subr.bf16.mxu0 0
        %2026 = vmatpush1.bf16.xpose.msra.mxu0 0
        %2027 = vmatprep.subr.bf16.mxu0 0
        %2028 = vmatpush1.bf16.xpose.msra.mxu0 0
        %2029 = vmatprep.subr.bf16.mxu0 0
        %2030 = vmatpush1.bf16.xpose.msra.mxu0 0
        %2031 = vmatprep.subr.bf16.mxu0 0
        %2032 = vmatpush1.bf16.xpose.msra.mxu0 0
        %2033 = vmatprep.subr.bf16.mxu0 0
        %2034 = vmatpush1.bf16.xpose.msra.mxu0 %v1246
        %2035 = vmatprep.subr.bf16.mxu0 0
        %2036 = vmatpush2.bf16.xpose.msra.mxu0 0
        %2037 = vmatprep.subr.bf16.mxu0 0
        %2038 = vmatpush2.bf16.xpose.msra.mxu0 0
        %2039 = vmatprep.subr.bf16.mxu0 0
        %2040 = vmatpush2.bf16.xpose.msra.mxu0 0
        %2041 = vmatprep.subr.bf16.mxu0 0
        %2042 = vmatpush2.bf16.xpose.msra.mxu0 0
        %2043 = vmatprep.subr.bf16.mxu0 0
        %2044 = vmatpush2.bf16.xpose.msra.mxu0 0
        %2045 = vmatprep.subr.bf16.mxu0 0
        %2046 = vmatpush2.bf16.xpose.msra.mxu0 0
        %2047 = vmatprep.subr.bf16.mxu0 0
        %2048 = vmatpush2.bf16.xpose.msra.mxu0 0
        %2049 = vmatprep.subr.bf16.mxu0 0
        %2050 = vmatpush2.bf16.xpose.msra.mxu0 0
        %2051 = vmatprep.mubr.bf16.mxu0 0
        %2052 = vmatmul.mubr.bf16.gmra.mxu0 %v1214
        %v2053 = vpop.f32.mrf.mxu0
        %v2054 = vadd.f32 0.0, %v2053
        %v2055 = vpop.f32.mrf.mxu0
        %v2056 = vpop.f32.mrf.mxu0
        %v2057 = vpop.f32.mrf.mxu0
        %2058 = vdwg.mxu0
        %2059 = vmatprep.subr.bf16.mxu0 0
        %2060 = vmatpush1.bf16.xpose.msra.mxu0 0
        %2061 = vmatprep.subr.bf16.mxu0 0
        %2062 = vmatpush1.bf16.xpose.msra.mxu0 0
        %2063 = vmatprep.subr.bf16.mxu0 0
        %2064 = vmatpush1.bf16.xpose.msra.mxu0 0
        %2065 = vmatprep.subr.bf16.mxu0 0
        %2066 = vmatpush1.bf16.xpose.msra.mxu0 0
        %2067 = vmatprep.subr.bf16.mxu0 0
        %2068 = vmatpush1.bf16.xpose.msra.mxu0 0
        %2069 = vmatprep.subr.bf16.mxu0 0
        %2070 = vmatpush1.bf16.xpose.msra.mxu0 0
        %2071 = vmatprep.subr.bf16.mxu0 0
        %2072 = vmatpush1.bf16.xpose.msra.mxu0 0
        %2073 = vmatprep.subr.bf16.mxu0 0
        %2074 = vmatpush1.bf16.xpose.msra.mxu0 %v1247
        %2075 = vmatprep.subr.bf16.mxu0 0
        %2076 = vmatpush2.bf16.xpose.msra.mxu0 0
        %2077 = vmatprep.subr.bf16.mxu0 0
        %2078 = vmatpush2.bf16.xpose.msra.mxu0 0
        %2079 = vmatprep.subr.bf16.mxu0 0
        %2080 = vmatpush2.bf16.xpose.msra.mxu0 0
        %2081 = vmatprep.subr.bf16.mxu0 0
        %2082 = vmatpush2.bf16.xpose.msra.mxu0 0
        %2083 = vmatprep.subr.bf16.mxu0 0
        %2084 = vmatpush2.bf16.xpose.msra.mxu0 0
        %2085 = vmatprep.subr.bf16.mxu0 0
        %2086 = vmatpush2.bf16.xpose.msra.mxu0 0
        %2087 = vmatprep.subr.bf16.mxu0 0
        %2088 = vmatpush2.bf16.xpose.msra.mxu0 0
        %2089 = vmatprep.subr.bf16.mxu0 0
        %2090 = vmatpush2.bf16.xpose.msra.mxu0 0
        %2091 = vmatprep.mubr.bf16.mxu0 0
        %2092 = vmatmul.mubr.bf16.gmra.mxu0 %v1215
        %v2093 = vpop.f32.mrf.mxu0
        %v2094 = vadd.f32 0.0, %v2093
        %v2095 = vpop.f32.mrf.mxu0
        %v2096 = vpop.f32.mrf.mxu0
        %v2097 = vpop.f32.mrf.mxu0
        %2098 = vdwg.mxu0
        %2099 = vmatprep.subr.bf16.mxu0 0
        %2100 = vmatpush1.bf16.xpose.msra.mxu0 0
        %2101 = vmatprep.subr.bf16.mxu0 0
        %2102 = vmatpush1.bf16.xpose.msra.mxu0 0
        %2103 = vmatprep.subr.bf16.mxu0 0
        %2104 = vmatpush1.bf16.xpose.msra.mxu0 0
        %2105 = vmatprep.subr.bf16.mxu0 0
        %2106 = vmatpush1.bf16.xpose.msra.mxu0 0
        %2107 = vmatprep.subr.bf16.mxu0 0
        %2108 = vmatpush1.bf16.xpose.msra.mxu0 0
        %2109 = vmatprep.subr.bf16.mxu0 0
        %2110 = vmatpush1.bf16.xpose.msra.mxu0 0
        %2111 = vmatprep.subr.bf16.mxu0 0
        %2112 = vmatpush1.bf16.xpose.msra.mxu0 0
        %2113 = vmatprep.subr.bf16.mxu0 0
        %2114 = vmatpush1.bf16.xpose.msra.mxu0 %v1248
        %2115 = vmatprep.subr.bf16.mxu0 0
        %2116 = vmatpush2.bf16.xpose.msra.mxu0 0
        %2117 = vmatprep.subr.bf16.mxu0 0
        %2118 = vmatpush2.bf16.xpose.msra.mxu0 0
        %2119 = vmatprep.subr.bf16.mxu0 0
        %2120 = vmatpush2.bf16.xpose.msra.mxu0 0
        %2121 = vmatprep.subr.bf16.mxu0 0
        %2122 = vmatpush2.bf16.xpose.msra.mxu0 0
        %2123 = vmatprep.subr.bf16.mxu0 0
        %2124 = vmatpush2.bf16.xpose.msra.mxu0 0
        %2125 = vmatprep.subr.bf16.mxu0 0
        %2126 = vmatpush2.bf16.xpose.msra.mxu0 0
        %2127 = vmatprep.subr.bf16.mxu0 0
        %2128 = vmatpush2.bf16.xpose.msra.mxu0 0
        %2129 = vmatprep.subr.bf16.mxu0 0
        %2130 = vmatpush2.bf16.xpose.msra.mxu0 0
        %2131 = vmatprep.mubr.bf16.mxu0 0
        %2132 = vmatmul.mubr.bf16.gmra.mxu0 %v1216
        %v2133 = vpop.f32.mrf.mxu0
        %v2134 = vadd.f32 0.0, %v2133
        %v2135 = vpop.f32.mrf.mxu0
        %v2136 = vpop.f32.mrf.mxu0
        %v2137 = vpop.f32.mrf.mxu0
        %2138 = vdwg.mxu0
        %2139 = vmatprep.subr.bf16.mxu0 0
        %2140 = vmatpush1.bf16.xpose.msra.mxu0 0
        %2141 = vmatprep.subr.bf16.mxu0 0
        %2142 = vmatpush1.bf16.xpose.msra.mxu0 0
        %2143 = vmatprep.subr.bf16.mxu0 0
        %2144 = vmatpush1.bf16.xpose.msra.mxu0 0
        %2145 = vmatprep.subr.bf16.mxu0 0
        %2146 = vmatpush1.bf16.xpose.msra.mxu0 0
        %2147 = vmatprep.subr.bf16.mxu0 0
        %2148 = vmatpush1.bf16.xpose.msra.mxu0 0
        %2149 = vmatprep.subr.bf16.mxu0 0
        %2150 = vmatpush1.bf16.xpose.msra.mxu0 0
        %2151 = vmatprep.subr.bf16.mxu0 0
        %2152 = vmatpush1.bf16.xpose.msra.mxu0 0
        %2153 = vmatprep.subr.bf16.mxu0 0
        %2154 = vmatpush1.bf16.xpose.msra.mxu0 %v1249
        %2155 = vmatprep.subr.bf16.mxu0 0
        %2156 = vmatpush2.bf16.xpose.msra.mxu0 0
        %2157 = vmatprep.subr.bf16.mxu0 0
        %2158 = vmatpush2.bf16.xpose.msra.mxu0 0
        %2159 = vmatprep.subr.bf16.mxu0 0
        %2160 = vmatpush2.bf16.xpose.msra.mxu0 0
        %2161 = vmatprep.subr.bf16.mxu0 0
        %2162 = vmatpush2.bf16.xpose.msra.mxu0 0
        %2163 = vmatprep.subr.bf16.mxu0 0
        %2164 = vmatpush2.bf16.xpose.msra.mxu0 0
        %2165 = vmatprep.subr.bf16.mxu0 0
        %2166 = vmatpush2.bf16.xpose.msra.mxu0 0
        %2167 = vmatprep.subr.bf16.mxu0 0
        %2168 = vmatpush2.bf16.xpose.msra.mxu0 0
        %2169 = vmatprep.subr.bf16.mxu0 0
        %2170 = vmatpush2.bf16.xpose.msra.mxu0 0
        %2171 = vmatprep.mubr.bf16.mxu0 0
        %2172 = vmatmul.mubr.bf16.gmra.mxu0 %v1217
        %v2173 = vpop.f32.mrf.mxu0
        %v2174 = vadd.f32 0.0, %v2173
        %v2175 = vpop.f32.mrf.mxu0
        %v2176 = vpop.f32.mrf.mxu0
        %v2177 = vpop.f32.mrf.mxu0
        %2178 = vdwg.mxu0
        %2179 = vmatprep.subr.bf16.mxu0 0
        %2180 = vmatpush1.bf16.xpose.msra.mxu0 0
        %2181 = vmatprep.subr.bf16.mxu0 0
        %2182 = vmatpush1.bf16.xpose.msra.mxu0 0
        %2183 = vmatprep.subr.bf16.mxu0 0
        %2184 = vmatpush1.bf16.xpose.msra.mxu0 0
        %2185 = vmatprep.subr.bf16.mxu0 0
        %2186 = vmatpush1.bf16.xpose.msra.mxu0 0
        %2187 = vmatprep.subr.bf16.mxu0 0
        %2188 = vmatpush1.bf16.xpose.msra.mxu0 0
        %2189 = vmatprep.subr.bf16.mxu0 0
        %2190 = vmatpush1.bf16.xpose.msra.mxu0 0
        %2191 = vmatprep.subr.bf16.mxu0 0
        %2192 = vmatpush1.bf16.xpose.msra.mxu0 0
        %2193 = vmatprep.subr.bf16.mxu0 0
        %2194 = vmatpush1.bf16.xpose.msra.mxu0 %v1250
        %2195 = vmatprep.subr.bf16.mxu0 0
        %2196 = vmatpush2.bf16.xpose.msra.mxu0 0
        %2197 = vmatprep.subr.bf16.mxu0 0
        %2198 = vmatpush2.bf16.xpose.msra.mxu0 0
        %2199 = vmatprep.subr.bf16.mxu0 0
        %2200 = vmatpush2.bf16.xpose.msra.mxu0 0
        %2201 = vmatprep.subr.bf16.mxu0 0
        %2202 = vmatpush2.bf16.xpose.msra.mxu0 0
        %2203 = vmatprep.subr.bf16.mxu0 0
        %2204 = vmatpush2.bf16.xpose.msra.mxu0 0
        %2205 = vmatprep.subr.bf16.mxu0 0
        %2206 = vmatpush2.bf16.xpose.msra.mxu0 0
        %2207 = vmatprep.subr.bf16.mxu0 0
        %2208 = vmatpush2.bf16.xpose.msra.mxu0 0
        %2209 = vmatprep.subr.bf16.mxu0 0
        %2210 = vmatpush2.bf16.xpose.msra.mxu0 0
        %2211 = vmatprep.mubr.bf16.mxu0 0
        %2212 = vmatmul.mubr.bf16.gmra.mxu0 %v1218
        %v2213 = vpop.f32.mrf.mxu0
        %v2214 = vadd.f32 0.0, %v2213
        %v2215 = vpop.f32.mrf.mxu0
        %v2216 = vpop.f32.mrf.mxu0
        %v2217 = vpop.f32.mrf.mxu0
        %2218 = vdwg.mxu0
        %2219 = vmatprep.subr.bf16.mxu0 0
        %2220 = vmatpush1.bf16.xpose.msra.mxu0 0
        %2221 = vmatprep.subr.bf16.mxu0 0
        %2222 = vmatpush1.bf16.xpose.msra.mxu0 0
        %2223 = vmatprep.subr.bf16.mxu0 0
        %2224 = vmatpush1.bf16.xpose.msra.mxu0 0
        %2225 = vmatprep.subr.bf16.mxu0 0
        %2226 = vmatpush1.bf16.xpose.msra.mxu0 0
        %2227 = vmatprep.subr.bf16.mxu0 0
        %2228 = vmatpush1.bf16.xpose.msra.mxu0 0
        %2229 = vmatprep.subr.bf16.mxu0 0
        %2230 = vmatpush1.bf16.xpose.msra.mxu0 0
        %2231 = vmatprep.subr.bf16.mxu0 0
        %2232 = vmatpush1.bf16.xpose.msra.mxu0 0
        %2233 = vmatprep.subr.bf16.mxu0 0
        %2234 = vmatpush1.bf16.xpose.msra.mxu0 %v1251
        %2235 = vmatprep.subr.bf16.mxu0 0
        %2236 = vmatpush2.bf16.xpose.msra.mxu0 0
        %2237 = vmatprep.subr.bf16.mxu0 0
        %2238 = vmatpush2.bf16.xpose.msra.mxu0 0
        %2239 = vmatprep.subr.bf16.mxu0 0
        %2240 = vmatpush2.bf16.xpose.msra.mxu0 0
        %2241 = vmatprep.subr.bf16.mxu0 0
        %2242 = vmatpush2.bf16.xpose.msra.mxu0 0
        %2243 = vmatprep.subr.bf16.mxu0 0
        %2244 = vmatpush2.bf16.xpose.msra.mxu0 0
        %2245 = vmatprep.subr.bf16.mxu0 0
        %2246 = vmatpush2.bf16.xpose.msra.mxu0 0
        %2247 = vmatprep.subr.bf16.mxu0 0
        %2248 = vmatpush2.bf16.xpose.msra.mxu0 0
        %2249 = vmatprep.subr.bf16.mxu0 0
        %2250 = vmatpush2.bf16.xpose.msra.mxu0 0
        %2251 = vmatprep.mubr.bf16.mxu0 0
        %2252 = vmatmul.mubr.bf16.gmra.mxu0 %v1219
        %v2253 = vpop.f32.mrf.mxu0
        %v2254 = vadd.f32 0.0, %v2253
        %v2255 = vpop.f32.mrf.mxu0
        %v2256 = vpop.f32.mrf.mxu0
        %v2257 = vpop.f32.mrf.mxu0
        %2258 = vdwg.mxu0
        %2259 = vmatprep.subr.bf16.mxu0 0
        %2260 = vmatpush1.bf16.xpose.msra.mxu0 0
        %2261 = vmatprep.subr.bf16.mxu0 0
        %2262 = vmatpush1.bf16.xpose.msra.mxu0 0
        %2263 = vmatprep.subr.bf16.mxu0 0
        %2264 = vmatpush1.bf16.xpose.msra.mxu0 0
        %2265 = vmatprep.subr.bf16.mxu0 0
        %2266 = vmatpush1.bf16.xpose.msra.mxu0 0
        %2267 = vmatprep.subr.bf16.mxu0 0
        %2268 = vmatpush1.bf16.xpose.msra.mxu0 0
        %2269 = vmatprep.subr.bf16.mxu0 0
        %2270 = vmatpush1.bf16.xpose.msra.mxu0 0
        %2271 = vmatprep.subr.bf16.mxu0 0
        %2272 = vmatpush1.bf16.xpose.msra.mxu0 0
        %2273 = vmatprep.subr.bf16.mxu0 0
        %2274 = vmatpush1.bf16.xpose.msra.mxu0 %v1252
        %2275 = vmatprep.subr.bf16.mxu0 0
        %2276 = vmatpush2.bf16.xpose.msra.mxu0 0
        %2277 = vmatprep.subr.bf16.mxu0 0
        %2278 = vmatpush2.bf16.xpose.msra.mxu0 0
        %2279 = vmatprep.subr.bf16.mxu0 0
        %2280 = vmatpush2.bf16.xpose.msra.mxu0 0
        %2281 = vmatprep.subr.bf16.mxu0 0
        %2282 = vmatpush2.bf16.xpose.msra.mxu0 0
        %2283 = vmatprep.subr.bf16.mxu0 0
        %2284 = vmatpush2.bf16.xpose.msra.mxu0 0
        %2285 = vmatprep.subr.bf16.mxu0 0
        %2286 = vmatpush2.bf16.xpose.msra.mxu0 0
        %2287 = vmatprep.subr.bf16.mxu0 0
        %2288 = vmatpush2.bf16.xpose.msra.mxu0 0
        %2289 = vmatprep.subr.bf16.mxu0 0
        %2290 = vmatpush2.bf16.xpose.msra.mxu0 0
        %2291 = vmatprep.mubr.bf16.mxu0 0
        %2292 = vmatmul.mubr.bf16.gmra.mxu0 %v1220
        %v2293 = vpop.f32.mrf.mxu0
        %v2294 = vadd.f32 0.0, %v2293
        %v2295 = vpop.f32.mrf.mxu0
        %v2296 = vpop.f32.mrf.mxu0
        %v2297 = vpop.f32.mrf.mxu0
        %2298 = vdwg.mxu0
        %2299 = vmatprep.subr.bf16.mxu0 0
        %2300 = vmatpush1.bf16.xpose.msra.mxu0 0
        %2301 = vmatprep.subr.bf16.mxu0 0
        %2302 = vmatpush1.bf16.xpose.msra.mxu0 0
        %2303 = vmatprep.subr.bf16.mxu0 0
        %2304 = vmatpush1.bf16.xpose.msra.mxu0 0
        %2305 = vmatprep.subr.bf16.mxu0 0
        %2306 = vmatpush1.bf16.xpose.msra.mxu0 0
        %2307 = vmatprep.subr.bf16.mxu0 0
        %2308 = vmatpush1.bf16.xpose.msra.mxu0 0
        %2309 = vmatprep.subr.bf16.mxu0 0
        %2310 = vmatpush1.bf16.xpose.msra.mxu0 0
        %2311 = vmatprep.subr.bf16.mxu0 0
        %2312 = vmatpush1.bf16.xpose.msra.mxu0 0
        %2313 = vmatprep.subr.bf16.mxu0 0
        %2314 = vmatpush1.bf16.xpose.msra.mxu0 %v1253
        %2315 = vmatprep.subr.bf16.mxu0 0
        %2316 = vmatpush2.bf16.xpose.msra.mxu0 0
        %2317 = vmatprep.subr.bf16.mxu0 0
        %2318 = vmatpush2.bf16.xpose.msra.mxu0 0
        %2319 = vmatprep.subr.bf16.mxu0 0
        %2320 = vmatpush2.bf16.xpose.msra.mxu0 0
        %2321 = vmatprep.subr.bf16.mxu0 0
        %2322 = vmatpush2.bf16.xpose.msra.mxu0 0
        %2323 = vmatprep.subr.bf16.mxu0 0
        %2324 = vmatpush2.bf16.xpose.msra.mxu0 0
        %2325 = vmatprep.subr.bf16.mxu0 0
        %2326 = vmatpush2.bf16.xpose.msra.mxu0 0
        %2327 = vmatprep.subr.bf16.mxu0 0
        %2328 = vmatpush2.bf16.xpose.msra.mxu0 0
        %2329 = vmatprep.subr.bf16.mxu0 0
        %2330 = vmatpush2.bf16.xpose.msra.mxu0 0
        %2331 = vmatprep.mubr.bf16.mxu0 0
        %2332 = vmatmul.mubr.bf16.gmra.mxu0 %v1221
        %v2333 = vpop.f32.mrf.mxu0
        %v2334 = vadd.f32 0.0, %v2333
        %v2335 = vpop.f32.mrf.mxu0
        %v2336 = vpop.f32.mrf.mxu0
        %v2337 = vpop.f32.mrf.mxu0
        %2338 = vdwg.mxu0
        %2339 = vmatprep.subr.bf16.mxu0 0
        %2340 = vmatpush1.bf16.xpose.msra.mxu0 0
        %2341 = vmatprep.subr.bf16.mxu0 0
        %2342 = vmatpush1.bf16.xpose.msra.mxu0 0
        %2343 = vmatprep.subr.bf16.mxu0 0
        %2344 = vmatpush1.bf16.xpose.msra.mxu0 0
        %2345 = vmatprep.subr.bf16.mxu0 0
        %2346 = vmatpush1.bf16.xpose.msra.mxu0 0
        %2347 = vmatprep.subr.bf16.mxu0 0
        %2348 = vmatpush1.bf16.xpose.msra.mxu0 0
        %2349 = vmatprep.subr.bf16.mxu0 0
        %2350 = vmatpush1.bf16.xpose.msra.mxu0 0
        %2351 = vmatprep.subr.bf16.mxu0 0
        %2352 = vmatpush1.bf16.xpose.msra.mxu0 0
        %2353 = vmatprep.subr.bf16.mxu0 0
        %2354 = vmatpush1.bf16.xpose.msra.mxu0 %v1254
        %2355 = vmatprep.subr.bf16.mxu0 0
        %2356 = vmatpush2.bf16.xpose.msra.mxu0 0
        %2357 = vmatprep.subr.bf16.mxu0 0
        %2358 = vmatpush2.bf16.xpose.msra.mxu0 0
        %2359 = vmatprep.subr.bf16.mxu0 0
        %2360 = vmatpush2.bf16.xpose.msra.mxu0 0
        %2361 = vmatprep.subr.bf16.mxu0 0
        %2362 = vmatpush2.bf16.xpose.msra.mxu0 0
        %2363 = vmatprep.subr.bf16.mxu0 0
        %2364 = vmatpush2.bf16.xpose.msra.mxu0 0
        %2365 = vmatprep.subr.bf16.mxu0 0
        %2366 = vmatpush2.bf16.xpose.msra.mxu0 0
        %2367 = vmatprep.subr.bf16.mxu0 0
        %2368 = vmatpush2.bf16.xpose.msra.mxu0 0
        %2369 = vmatprep.subr.bf16.mxu0 0
        %2370 = vmatpush2.bf16.xpose.msra.mxu0 0
        %2371 = vmatprep.mubr.bf16.mxu0 0
        %2372 = vmatmul.mubr.bf16.gmra.mxu0 %v1222
        %v2373 = vpop.f32.mrf.mxu0
        %v2374 = vadd.f32 0.0, %v2373
        %v2375 = vpop.f32.mrf.mxu0
        %v2376 = vpop.f32.mrf.mxu0
        %v2377 = vpop.f32.mrf.mxu0
        %2378 = vdwg.mxu0
        %2379 = vmatprep.subr.bf16.mxu0 0
        %2380 = vmatpush1.bf16.xpose.msra.mxu0 0
        %2381 = vmatprep.subr.bf16.mxu0 0
        %2382 = vmatpush1.bf16.xpose.msra.mxu0 0
        %2383 = vmatprep.subr.bf16.mxu0 0
        %2384 = vmatpush1.bf16.xpose.msra.mxu0 0
        %2385 = vmatprep.subr.bf16.mxu0 0
        %2386 = vmatpush1.bf16.xpose.msra.mxu0 0
        %2387 = vmatprep.subr.bf16.mxu0 0
        %2388 = vmatpush1.bf16.xpose.msra.mxu0 0
        %2389 = vmatprep.subr.bf16.mxu0 0
        %2390 = vmatpush1.bf16.xpose.msra.mxu0 0
        %2391 = vmatprep.subr.bf16.mxu0 0
        %2392 = vmatpush1.bf16.xpose.msra.mxu0 0
        %2393 = vmatprep.subr.bf16.mxu0 0
        %2394 = vmatpush1.bf16.xpose.msra.mxu0 %v1255
        %2395 = vmatprep.subr.bf16.mxu0 0
        %2396 = vmatpush2.bf16.xpose.msra.mxu0 0
        %2397 = vmatprep.subr.bf16.mxu0 0
        %2398 = vmatpush2.bf16.xpose.msra.mxu0 0
        %2399 = vmatprep.subr.bf16.mxu0 0
        %2400 = vmatpush2.bf16.xpose.msra.mxu0 0
        %2401 = vmatprep.subr.bf16.mxu0 0
        %2402 = vmatpush2.bf16.xpose.msra.mxu0 0
        %2403 = vmatprep.subr.bf16.mxu0 0
        %2404 = vmatpush2.bf16.xpose.msra.mxu0 0
        %2405 = vmatprep.subr.bf16.mxu0 0
        %2406 = vmatpush2.bf16.xpose.msra.mxu0 0
        %2407 = vmatprep.subr.bf16.mxu0 0
        %2408 = vmatpush2.bf16.xpose.msra.mxu0 0
        %2409 = vmatprep.subr.bf16.mxu0 0
        %2410 = vmatpush2.bf16.xpose.msra.mxu0 0
        %2411 = vmatprep.mubr.bf16.mxu0 0
        %2412 = vmatmul.mubr.bf16.gmra.mxu0 %v1223
        %v2413 = vpop.f32.mrf.mxu0
        %v2414 = vadd.f32 0.0, %v2413
        %v2415 = vpop.f32.mrf.mxu0
        %v2416 = vpop.f32.mrf.mxu0
        %v2417 = vpop.f32.mrf.mxu0
        %2418 = vdwg.mxu0
        %2419 = vmatprep.subr.bf16.mxu0 0
        %2420 = vmatpush1.bf16.xpose.msra.mxu0 0
        %2421 = vmatprep.subr.bf16.mxu0 0
        %2422 = vmatpush1.bf16.xpose.msra.mxu0 0
        %2423 = vmatprep.subr.bf16.mxu0 0
        %2424 = vmatpush1.bf16.xpose.msra.mxu0 0
        %2425 = vmatprep.subr.bf16.mxu0 0
        %2426 = vmatpush1.bf16.xpose.msra.mxu0 0
        %2427 = vmatprep.subr.bf16.mxu0 0
        %2428 = vmatpush1.bf16.xpose.msra.mxu0 0
        %2429 = vmatprep.subr.bf16.mxu0 0
        %2430 = vmatpush1.bf16.xpose.msra.mxu0 0
        %2431 = vmatprep.subr.bf16.mxu0 0
        %2432 = vmatpush1.bf16.xpose.msra.mxu0 0
        %2433 = vmatprep.subr.bf16.mxu0 0
        %2434 = vmatpush1.bf16.xpose.msra.mxu0 %v1256
        %2435 = vmatprep.subr.bf16.mxu0 0
        %2436 = vmatpush2.bf16.xpose.msra.mxu0 0
        %2437 = vmatprep.subr.bf16.mxu0 0
        %2438 = vmatpush2.bf16.xpose.msra.mxu0 0
        %2439 = vmatprep.subr.bf16.mxu0 0
        %2440 = vmatpush2.bf16.xpose.msra.mxu0 0
        %2441 = vmatprep.subr.bf16.mxu0 0
        %2442 = vmatpush2.bf16.xpose.msra.mxu0 0
        %2443 = vmatprep.subr.bf16.mxu0 0
        %2444 = vmatpush2.bf16.xpose.msra.mxu0 0
        %2445 = vmatprep.subr.bf16.mxu0 0
        %2446 = vmatpush2.bf16.xpose.msra.mxu0 0
        %2447 = vmatprep.subr.bf16.mxu0 0
        %2448 = vmatpush2.bf16.xpose.msra.mxu0 0
        %2449 = vmatprep.subr.bf16.mxu0 0
        %2450 = vmatpush2.bf16.xpose.msra.mxu0 0
        %2451 = vmatprep.mubr.bf16.mxu0 0
        %2452 = vmatmul.mubr.bf16.gmra.mxu0 %v1224
        %v2453 = vpop.f32.mrf.mxu0
        %v2454 = vadd.f32 0.0, %v2453
        %v2455 = vpop.f32.mrf.mxu0
        %v2456 = vpop.f32.mrf.mxu0
        %v2457 = vpop.f32.mrf.mxu0
        %2458 = vdwg.mxu0
        %2459 = vmatprep.subr.bf16.mxu0 0
        %2460 = vmatpush1.bf16.xpose.msra.mxu0 0
        %2461 = vmatprep.subr.bf16.mxu0 0
        %2462 = vmatpush1.bf16.xpose.msra.mxu0 0
        %2463 = vmatprep.subr.bf16.mxu0 0
        %2464 = vmatpush1.bf16.xpose.msra.mxu0 0
        %2465 = vmatprep.subr.bf16.mxu0 0
        %2466 = vmatpush1.bf16.xpose.msra.mxu0 0
        %2467 = vmatprep.subr.bf16.mxu0 0
        %2468 = vmatpush1.bf16.xpose.msra.mxu0 0
        %2469 = vmatprep.subr.bf16.mxu0 0
        %2470 = vmatpush1.bf16.xpose.msra.mxu0 0
        %2471 = vmatprep.subr.bf16.mxu0 0
        %2472 = vmatpush1.bf16.xpose.msra.mxu0 0
        %2473 = vmatprep.subr.bf16.mxu0 0
        %2474 = vmatpush1.bf16.xpose.msra.mxu0 %v1257
        %2475 = vmatprep.subr.bf16.mxu0 0
        %2476 = vmatpush2.bf16.xpose.msra.mxu0 0
        %2477 = vmatprep.subr.bf16.mxu0 0
        %2478 = vmatpush2.bf16.xpose.msra.mxu0 0
        %2479 = vmatprep.subr.bf16.mxu0 0
        %2480 = vmatpush2.bf16.xpose.msra.mxu0 0
        %2481 = vmatprep.subr.bf16.mxu0 0
        %2482 = vmatpush2.bf16.xpose.msra.mxu0 0
        %2483 = vmatprep.subr.bf16.mxu0 0
        %2484 = vmatpush2.bf16.xpose.msra.mxu0 0
        %2485 = vmatprep.subr.bf16.mxu0 0
        %2486 = vmatpush2.bf16.xpose.msra.mxu0 0
        %2487 = vmatprep.subr.bf16.mxu0 0
        %2488 = vmatpush2.bf16.xpose.msra.mxu0 0
        %2489 = vmatprep.subr.bf16.mxu0 0
        %2490 = vmatpush2.bf16.xpose.msra.mxu0 0
        %2491 = vmatprep.mubr.bf16.mxu0 0
        %2492 = vmatmul.mubr.bf16.gmra.mxu0 %v1225
        %v2493 = vpop.f32.mrf.mxu0
        %v2494 = vadd.f32 0.0, %v2493
        %v2495 = vpop.f32.mrf.mxu0
        %v2496 = vpop.f32.mrf.mxu0
        %v2497 = vpop.f32.mrf.mxu0
        %2498 = vdwg.mxu0
        %2499 = vmatprep.subr.bf16.mxu0 0
        %2500 = vmatpush1.bf16.xpose.msra.mxu0 0
        %2501 = vmatprep.subr.bf16.mxu0 0
        %2502 = vmatpush1.bf16.xpose.msra.mxu0 0
        %2503 = vmatprep.subr.bf16.mxu0 0
        %2504 = vmatpush1.bf16.xpose.msra.mxu0 0
        %2505 = vmatprep.subr.bf16.mxu0 0
        %2506 = vmatpush1.bf16.xpose.msra.mxu0 0
        %2507 = vmatprep.subr.bf16.mxu0 0
        %2508 = vmatpush1.bf16.xpose.msra.mxu0 0
        %2509 = vmatprep.subr.bf16.mxu0 0
        %2510 = vmatpush1.bf16.xpose.msra.mxu0 0
        %2511 = vmatprep.subr.bf16.mxu0 0
        %2512 = vmatpush1.bf16.xpose.msra.mxu0 0
        %2513 = vmatprep.subr.bf16.mxu0 0
        %2514 = vmatpush1.bf16.xpose.msra.mxu0 %v1258
        %2515 = vmatprep.subr.bf16.mxu0 0
        %2516 = vmatpush2.bf16.xpose.msra.mxu0 0
        %2517 = vmatprep.subr.bf16.mxu0 0
        %2518 = vmatpush2.bf16.xpose.msra.mxu0 0
        %2519 = vmatprep.subr.bf16.mxu0 0
        %2520 = vmatpush2.bf16.xpose.msra.mxu0 0
        %2521 = vmatprep.subr.bf16.mxu0 0
        %2522 = vmatpush2.bf16.xpose.msra.mxu0 0
        %2523 = vmatprep.subr.bf16.mxu0 0
        %2524 = vmatpush2.bf16.xpose.msra.mxu0 0
        %2525 = vmatprep.subr.bf16.mxu0 0
        %2526 = vmatpush2.bf16.xpose.msra.mxu0 0
        %2527 = vmatprep.subr.bf16.mxu0 0
        %2528 = vmatpush2.bf16.xpose.msra.mxu0 0
        %2529 = vmatprep.subr.bf16.mxu0 0
        %2530 = vmatpush2.bf16.xpose.msra.mxu0 0
        %2531 = vmatprep.mubr.bf16.mxu0 0
        %2532 = vmatmul.mubr.bf16.gmra.mxu0 %v1226
        %v2533 = vpop.f32.mrf.mxu0
        %v2534 = vadd.f32 0.0, %v2533
        %v2535 = vpop.f32.mrf.mxu0
        %v2536 = vpop.f32.mrf.mxu0
        %v2537 = vpop.f32.mrf.mxu0
        %2538 = vdwg.mxu0
        %vm2539 = vcmask 64512
        %v2540 = vsel %vm2539, %v1294, -inf
        %2541 = vmax.xlane.f32.xlu0 %v2540
        %v2542 = vpop.xlane.xlu0 %2541
        %v2543 = vsel %vm2539, %v1334, -inf
        %2544 = vmax.xlane.f32.xlu0 %v2543
        %v2545 = vpop.xlane.xlu0 %2544
        %v2546 = vsel %vm2539, %v1374, -inf
        %2547 = vmax.xlane.f32.xlu0 %v2546
        %v2548 = vpop.xlane.xlu0 %2547
        %v2549 = vsel %vm2539, %v1414, -inf
        %2550 = vmax.xlane.f32.xlu0 %v2549
        %v2551 = vpop.xlane.xlu0 %2550
        %v2552 = vsel %vm2539, %v1454, -inf
        %2553 = vmax.xlane.f32.xlu0 %v2552
        %v2554 = vpop.xlane.xlu0 %2553
        %v2555 = vsel %vm2539, %v1494, -inf
        %2556 = vmax.xlane.f32.xlu0 %v2555
        %v2557 = vpop.xlane.xlu0 %2556
        %v2558 = vsel %vm2539, %v1534, -inf
        %2559 = vmax.xlane.f32.xlu0 %v2558
        %v2560 = vpop.xlane.xlu0 %2559
        %v2561 = vsel %vm2539, %v1574, -inf
        %2562 = vmax.xlane.f32.xlu0 %v2561
        %v2563 = vpop.xlane.xlu0 %2562
        %v2564 = vsel %vm2539, %v1614, -inf
        %2565 = vmax.xlane.f32.xlu0 %v2564
        %v2566 = vpop.xlane.xlu0 %2565
        %v2567 = vsel %vm2539, %v1654, -inf
        %2568 = vmax.xlane.f32.xlu0 %v2567
        %v2569 = vpop.xlane.xlu0 %2568
        %v2570 = vsel %vm2539, %v1694, -inf
        %2571 = vmax.xlane.f32.xlu0 %v2570
        %v2572 = vpop.xlane.xlu0 %2571
        %v2573 = vsel %vm2539, %v1734, -inf
        %2574 = vmax.xlane.f32.xlu0 %v2573
        %v2575 = vpop.xlane.xlu0 %2574
        %v2576 = vsel %vm2539, %v1774, -inf
        %2577 = vmax.xlane.f32.xlu0 %v2576
        %v2578 = vpop.xlane.xlu0 %2577
        %v2579 = vsel %vm2539, %v1814, -inf
        %2580 = vmax.xlane.f32.xlu0 %v2579
        %v2581 = vpop.xlane.xlu0 %2580
        %v2582 = vsel %vm2539, %v1854, -inf
        %2583 = vmax.xlane.f32.xlu0 %v2582
        %v2584 = vpop.xlane.xlu0 %2583
        %v2585 = vsel %vm2539, %v1894, -inf
        %2586 = vmax.xlane.f32.xlu0 %v2585
        %v2587 = vpop.xlane.xlu0 %2586
        %v2588 = vsel %vm2539, %v1934, -inf
        %2589 = vmax.xlane.f32.xlu0 %v2588
        %v2590 = vpop.xlane.xlu0 %2589
        %v2591 = vsel %vm2539, %v1974, -inf
        %2592 = vmax.xlane.f32.xlu0 %v2591
        %v2593 = vpop.xlane.xlu0 %2592
        %v2594 = vsel %vm2539, %v2014, -inf
        %2595 = vmax.xlane.f32.xlu0 %v2594
        %v2596 = vpop.xlane.xlu0 %2595
        %v2597 = vsel %vm2539, %v2054, -inf
        %2598 = vmax.xlane.f32.xlu0 %v2597
        %v2599 = vpop.xlane.xlu0 %2598
        %v2600 = vsel %vm2539, %v2094, -inf
        %2601 = vmax.xlane.f32.xlu0 %v2600
        %v2602 = vpop.xlane.xlu0 %2601
        %v2603 = vsel %vm2539, %v2134, -inf
        %2604 = vmax.xlane.f32.xlu0 %v2603
        %v2605 = vpop.xlane.xlu0 %2604
        %v2606 = vsel %vm2539, %v2174, -inf
        %2607 = vmax.xlane.f32.xlu0 %v2606
        %v2608 = vpop.xlane.xlu0 %2607
        %v2609 = vsel %vm2539, %v2214, -inf
        %2610 = vmax.xlane.f32.xlu0 %v2609
        %v2611 = vpop.xlane.xlu0 %2610
        %v2612 = vsel %vm2539, %v2254, -inf
        %2613 = vmax.xlane.f32.xlu0 %v2612
        %v2614 = vpop.xlane.xlu0 %2613
        %v2615 = vsel %vm2539, %v2294, -inf
        %2616 = vmax.xlane.f32.xlu0 %v2615
        %v2617 = vpop.xlane.xlu0 %2616
        %v2618 = vsel %vm2539, %v2334, -inf
        %2619 = vmax.xlane.f32.xlu0 %v2618
        %v2620 = vpop.xlane.xlu0 %2619
        %v2621 = vsel %vm2539, %v2374, -inf
        %2622 = vmax.xlane.f32.xlu0 %v2621
        %v2623 = vpop.xlane.xlu0 %2622
        %v2624 = vsel %vm2539, %v2414, -inf
        %2625 = vmax.xlane.f32.xlu0 %v2624
        %v2626 = vpop.xlane.xlu0 %2625
        %v2627 = vsel %vm2539, %v2454, -inf
        %2628 = vmax.xlane.f32.xlu0 %v2627
        %v2629 = vpop.xlane.xlu0 %2628
        %v2630 = vsel %vm2539, %v2494, -inf
        %2631 = vmax.xlane.f32.xlu0 %v2630
        %v2632 = vpop.xlane.xlu0 %2631
        %v2633 = vsel %vm2539, %v2534, -inf
        %2634 = vmax.xlane.f32.xlu0 %v2633
        %v2635 = vpop.xlane.xlu0 %2634
        %v2636 = vsub.f32 %v1294, %v2542
        %v2637 = vsub.f32 %v1334, %v2545
        %v2638 = vsub.f32 %v1374, %v2548
        %v2639 = vsub.f32 %v1414, %v2551
        %v2640 = vsub.f32 %v1454, %v2554
        %v2641 = vsub.f32 %v1494, %v2557
        %v2642 = vsub.f32 %v1534, %v2560
        %v2643 = vsub.f32 %v1574, %v2563
        %v2644 = vsub.f32 %v1614, %v2566
        %v2645 = vsub.f32 %v1654, %v2569
        %v2646 = vsub.f32 %v1694, %v2572
        %v2647 = vsub.f32 %v1734, %v2575
        %v2648 = vsub.f32 %v1774, %v2578
        %v2649 = vsub.f32 %v1814, %v2581
        %v2650 = vsub.f32 %v1854, %v2584
        %v2651 = vsub.f32 %v1894, %v2587
        %v2652 = vsub.f32 %v1934, %v2590
        %v2653 = vsub.f32 %v1974, %v2593
        %v2654 = vsub.f32 %v2014, %v2596
        %v2655 = vsub.f32 %v2054, %v2599
        %v2656 = vsub.f32 %v2094, %v2602
        %v2657 = vsub.f32 %v2134, %v2605
        %v2658 = vsub.f32 %v2174, %v2608
        %v2659 = vsub.f32 %v2214, %v2611
        %v2660 = vsub.f32 %v2254, %v2614
        %v2661 = vsub.f32 %v2294, %v2617
        %v2662 = vsub.f32 %v2334, %v2620
        %v2663 = vsub.f32 %v2374, %v2623
        %v2664 = vsub.f32 %v2414, %v2626
        %v2665 = vsub.f32 %v2454, %v2629
        %v2666 = vsub.f32 %v2494, %v2632
        %v2667 = vsub.f32 %v2534, %v2635
        %v2668 = vmul.f32 %v2636, 1.442695
        %v2669 = vpow.pop %v2668
        %v2670 = vmul.f32 %v2637, 1.442695
        %v2671 = vpow.pop %v2670
        %v2672 = vmul.f32 %v2638, 1.442695
        %v2673 = vpow.pop %v2672
        %v2674 = vmul.f32 %v2639, 1.442695
        %v2675 = vpow.pop %v2674
        %v2676 = vmul.f32 %v2640, 1.442695
        %v2677 = vpow.pop %v2676
        %v2678 = vmul.f32 %v2641, 1.442695
        %v2679 = vpow.pop %v2678
        %v2680 = vmul.f32 %v2642, 1.442695
        %v2681 = vpow.pop %v2680
        %v2682 = vmul.f32 %v2643, 1.442695
        %v2683 = vpow.pop %v2682
        %v2684 = vmul.f32 %v2644, 1.442695
        %v2685 = vpow.pop %v2684
        %v2686 = vmul.f32 %v2645, 1.442695
        %v2687 = vpow.pop %v2686
        %v2688 = vmul.f32 %v2646, 1.442695
        %v2689 = vpow.pop %v2688
        %v2690 = vmul.f32 %v2647, 1.442695
        %v2691 = vpow.pop %v2690
        %v2692 = vmul.f32 %v2648, 1.442695
        %v2693 = vpow.pop %v2692
        %v2694 = vmul.f32 %v2649, 1.442695
        %v2695 = vpow.pop %v2694
        %v2696 = vmul.f32 %v2650, 1.442695
        %v2697 = vpow.pop %v2696
        %v2698 = vmul.f32 %v2651, 1.442695
        %v2699 = vpow.pop %v2698
        %v2700 = vmul.f32 %v2652, 1.442695
        %v2701 = vpow.pop %v2700
        %v2702 = vmul.f32 %v2653, 1.442695
        %v2703 = vpow.pop %v2702
        %v2704 = vmul.f32 %v2654, 1.442695
        %v2705 = vpow.pop %v2704
        %v2706 = vmul.f32 %v2655, 1.442695
        %v2707 = vpow.pop %v2706
        %v2708 = vmul.f32 %v2656, 1.442695
        %v2709 = vpow.pop %v2708
        %v2710 = vmul.f32 %v2657, 1.442695
        %v2711 = vpow.pop %v2710
        %v2712 = vmul.f32 %v2658, 1.442695
        %v2713 = vpow.pop %v2712
        %v2714 = vmul.f32 %v2659, 1.442695
        %v2715 = vpow.pop %v2714
        %v2716 = vmul.f32 %v2660, 1.442695
        %v2717 = vpow.pop %v2716
        %v2718 = vmul.f32 %v2661, 1.442695
        %v2719 = vpow.pop %v2718
        %v2720 = vmul.f32 %v2662, 1.442695
        %v2721 = vpow.pop %v2720
        %v2722 = vmul.f32 %v2663, 1.442695
        %v2723 = vpow.pop %v2722
        %v2724 = vmul.f32 %v2664, 1.442695
        %v2725 = vpow.pop %v2724
        %v2726 = vmul.f32 %v2665, 1.442695
        %v2727 = vpow.pop %v2726
        %v2728 = vmul.f32 %v2666, 1.442695
        %v2729 = vpow.pop %v2728
        %v2730 = vmul.f32 %v2667, 1.442695
        %v2731 = vpow.pop %v2730
        %v2732 = vsel %vm2539, %v2669, 0.0
        %2733 = vadd.xlane.f32.xlu0 %v2732
        %v2734 = vpop.xlane.xlu0 %2733
        %v2735 = vsel %vm2539, %v2671, 0.0
        %2736 = vadd.xlane.f32.xlu0 %v2735
        %v2737 = vpop.xlane.xlu0 %2736
        %v2738 = vsel %vm2539, %v2673, 0.0
        %2739 = vadd.xlane.f32.xlu0 %v2738
        %v2740 = vpop.xlane.xlu0 %2739
        %v2741 = vsel %vm2539, %v2675, 0.0
        %2742 = vadd.xlane.f32.xlu0 %v2741
        %v2743 = vpop.xlane.xlu0 %2742
        %v2744 = vsel %vm2539, %v2677, 0.0
        %2745 = vadd.xlane.f32.xlu0 %v2744
        %v2746 = vpop.xlane.xlu0 %2745
        %v2747 = vsel %vm2539, %v2679, 0.0
        %2748 = vadd.xlane.f32.xlu0 %v2747
        %v2749 = vpop.xlane.xlu0 %2748
        %v2750 = vsel %vm2539, %v2681, 0.0
        %2751 = vadd.xlane.f32.xlu0 %v2750
        %v2752 = vpop.xlane.xlu0 %2751
        %v2753 = vsel %vm2539, %v2683, 0.0
        %2754 = vadd.xlane.f32.xlu0 %v2753
        %v2755 = vpop.xlane.xlu0 %2754
        %v2756 = vsel %vm2539, %v2685, 0.0
        %2757 = vadd.xlane.f32.xlu0 %v2756
        %v2758 = vpop.xlane.xlu0 %2757
        %v2759 = vsel %vm2539, %v2687, 0.0
        %2760 = vadd.xlane.f32.xlu0 %v2759
        %v2761 = vpop.xlane.xlu0 %2760
        %v2762 = vsel %vm2539, %v2689, 0.0
        %2763 = vadd.xlane.f32.xlu0 %v2762
        %v2764 = vpop.xlane.xlu0 %2763
        %v2765 = vsel %vm2539, %v2691, 0.0
        %2766 = vadd.xlane.f32.xlu0 %v2765
        %v2767 = vpop.xlane.xlu0 %2766
        %v2768 = vsel %vm2539, %v2693, 0.0
        %2769 = vadd.xlane.f32.xlu0 %v2768
        %v2770 = vpop.xlane.xlu0 %2769
        %v2771 = vsel %vm2539, %v2695, 0.0
        %2772 = vadd.xlane.f32.xlu0 %v2771
        %v2773 = vpop.xlane.xlu0 %2772
        %v2774 = vsel %vm2539, %v2697, 0.0
        %2775 = vadd.xlane.f32.xlu0 %v2774
        %v2776 = vpop.xlane.xlu0 %2775
        %v2777 = vsel %vm2539, %v2699, 0.0
        %2778 = vadd.xlane.f32.xlu0 %v2777
        %v2779 = vpop.xlane.xlu0 %2778
        %v2780 = vsel %vm2539, %v2701, 0.0
        %2781 = vadd.xlane.f32.xlu0 %v2780
        %v2782 = vpop.xlane.xlu0 %2781
        %v2783 = vsel %vm2539, %v2703, 0.0
        %2784 = vadd.xlane.f32.xlu0 %v2783
        %v2785 = vpop.xlane.xlu0 %2784
        %v2786 = vsel %vm2539, %v2705, 0.0
        %2787 = vadd.xlane.f32.xlu0 %v2786
        %v2788 = vpop.xlane.xlu0 %2787
        %v2789 = vsel %vm2539, %v2707, 0.0
        %2790 = vadd.xlane.f32.xlu0 %v2789
        %v2791 = vpop.xlane.xlu0 %2790
        %v2792 = vsel %vm2539, %v2709, 0.0
        %2793 = vadd.xlane.f32.xlu0 %v2792
        %v2794 = vpop.xlane.xlu0 %2793
        %v2795 = vsel %vm2539, %v2711, 0.0
        %2796 = vadd.xlane.f32.xlu0 %v2795
        %v2797 = vpop.xlane.xlu0 %2796
        %v2798 = vsel %vm2539, %v2713, 0.0
        %2799 = vadd.xlane.f32.xlu0 %v2798
        %v2800 = vpop.xlane.xlu0 %2799
        %v2801 = vsel %vm2539, %v2715, 0.0
        %2802 = vadd.xlane.f32.xlu0 %v2801
        %v2803 = vpop.xlane.xlu0 %2802
        %v2804 = vsel %vm2539, %v2717, 0.0
        %2805 = vadd.xlane.f32.xlu0 %v2804
        %v2806 = vpop.xlane.xlu0 %2805
        %v2807 = vsel %vm2539, %v2719, 0.0
        %2808 = vadd.xlane.f32.xlu0 %v2807
        %v2809 = vpop.xlane.xlu0 %2808
        %v2810 = vsel %vm2539, %v2721, 0.0
        %2811 = vadd.xlane.f32.xlu0 %v2810
        %v2812 = vpop.xlane.xlu0 %2811
        %v2813 = vsel %vm2539, %v2723, 0.0
        %2814 = vadd.xlane.f32.xlu0 %v2813
        %v2815 = vpop.xlane.xlu0 %2814
        %v2816 = vsel %vm2539, %v2725, 0.0
        %2817 = vadd.xlane.f32.xlu0 %v2816
        %v2818 = vpop.xlane.xlu0 %2817
        %v2819 = vsel %vm2539, %v2727, 0.0
        %2820 = vadd.xlane.f32.xlu0 %v2819
        %v2821 = vpop.xlane.xlu0 %2820
        %v2822 = vsel %vm2539, %v2729, 0.0
        %2823 = vadd.xlane.f32.xlu0 %v2822
        %v2824 = vpop.xlane.xlu0 %2823
        %v2825 = vsel %vm2539, %v2731, 0.0
        %2826 = vadd.xlane.f32.xlu0 %v2825
        %v2827 = vpop.xlane.xlu0 %2826
        %v2828 = vrcp.pop %v2734
        %v2829 = vrcp.pop %v2737
        %v2830 = vrcp.pop %v2740
        %v2831 = vrcp.pop %v2743
        %v2832 = vrcp.pop %v2746
        %v2833 = vrcp.pop %v2749
        %v2834 = vrcp.pop %v2752
        %v2835 = vrcp.pop %v2755
        %v2836 = vrcp.pop %v2758
        %v2837 = vrcp.pop %v2761
        %v2838 = vrcp.pop %v2764
        %v2839 = vrcp.pop %v2767
        %v2840 = vrcp.pop %v2770
        %v2841 = vrcp.pop %v2773
        %v2842 = vrcp.pop %v2776
        %v2843 = vrcp.pop %v2779
        %v2844 = vrcp.pop %v2782
        %v2845 = vrcp.pop %v2785
        %v2846 = vrcp.pop %v2788
        %v2847 = vrcp.pop %v2791
        %v2848 = vrcp.pop %v2794
        %v2849 = vrcp.pop %v2797
        %v2850 = vrcp.pop %v2800
        %v2851 = vrcp.pop %v2803
        %v2852 = vrcp.pop %v2806
        %v2853 = vrcp.pop %v2809
        %v2854 = vrcp.pop %v2812
        %v2855 = vrcp.pop %v2815
        %v2856 = vrcp.pop %v2818
        %v2857 = vrcp.pop %v2821
        %v2858 = vrcp.pop %v2824
        %v2859 = vrcp.pop %v2827
        %v2860 = vmul.f32 %v2669, %v2828
        %v2861 = vmul.f32 %v2671, %v2829
        %v2862 = vmul.f32 %v2673, %v2830
        %v2863 = vmul.f32 %v2675, %v2831
        %v2864 = vmul.f32 %v2677, %v2832
        %v2865 = vmul.f32 %v2679, %v2833
        %v2866 = vmul.f32 %v2681, %v2834
        %v2867 = vmul.f32 %v2683, %v2835
        %v2868 = vmul.f32 %v2685, %v2836
        %v2869 = vmul.f32 %v2687, %v2837
        %v2870 = vmul.f32 %v2689, %v2838
        %v2871 = vmul.f32 %v2691, %v2839
        %v2872 = vmul.f32 %v2693, %v2840
        %v2873 = vmul.f32 %v2695, %v2841
        %v2874 = vmul.f32 %v2697, %v2842
        %v2875 = vmul.f32 %v2699, %v2843
        %v2876 = vmul.f32 %v2701, %v2844
        %v2877 = vmul.f32 %v2703, %v2845
        %v2878 = vmul.f32 %v2705, %v2846
        %v2879 = vmul.f32 %v2707, %v2847
        %v2880 = vmul.f32 %v2709, %v2848
        %v2881 = vmul.f32 %v2711, %v2849
        %v2882 = vmul.f32 %v2713, %v2850
        %v2883 = vmul.f32 %v2715, %v2851
        %v2884 = vmul.f32 %v2717, %v2852
        %v2885 = vmul.f32 %v2719, %v2853
        %v2886 = vmul.f32 %v2721, %v2854
        %v2887 = vmul.f32 %v2723, %v2855
        %v2888 = vmul.f32 %v2725, %v2856
        %v2889 = vmul.f32 %v2727, %v2857
        %v2890 = vmul.f32 %v2729, %v2858
        %v2891 = vmul.f32 %v2731, %v2859
        %v2892 = vsel %vm2539, %v2860, 0.0
        %v2893 = vrot.slane %v2892, 4
        %v2894 = vadd.f32 %v2892, %v2893
        %v2895 = vrot.slane %v2894, 2
        %v2896 = vadd.f32 %v2894, %v2895
        %v2897 = vrot.slane %v2896, 1
        %v2898 = vadd.f32 %v2896, %v2897
        %v2899 = vsel %vm2539, %v2861, 0.0
        %v2900 = vrot.slane %v2899, 4
        %v2901 = vadd.f32 %v2899, %v2900
        %v2902 = vrot.slane %v2901, 2
        %v2903 = vadd.f32 %v2901, %v2902
        %v2904 = vrot.slane %v2903, 1
        %v2905 = vadd.f32 %v2903, %v2904
        %v2906 = vsel %vm2539, %v2862, 0.0
        %v2907 = vrot.slane %v2906, 4
        %v2908 = vadd.f32 %v2906, %v2907
        %v2909 = vrot.slane %v2908, 2
        %v2910 = vadd.f32 %v2908, %v2909
        %v2911 = vrot.slane %v2910, 1
        %v2912 = vadd.f32 %v2910, %v2911
        %v2913 = vsel %vm2539, %v2863, 0.0
        %v2914 = vrot.slane %v2913, 4
        %v2915 = vadd.f32 %v2913, %v2914
        %v2916 = vrot.slane %v2915, 2
        %v2917 = vadd.f32 %v2915, %v2916
        %v2918 = vrot.slane %v2917, 1
        %v2919 = vadd.f32 %v2917, %v2918
        %v2920 = vsel %vm2539, %v2864, 0.0
        %v2921 = vrot.slane %v2920, 4
        %v2922 = vadd.f32 %v2920, %v2921
        %v2923 = vrot.slane %v2922, 2
        %v2924 = vadd.f32 %v2922, %v2923
        %v2925 = vrot.slane %v2924, 1
        %v2926 = vadd.f32 %v2924, %v2925
        %v2927 = vsel %vm2539, %v2865, 0.0
        %v2928 = vrot.slane %v2927, 4
        %v2929 = vadd.f32 %v2927, %v2928
        %v2930 = vrot.slane %v2929, 2
        %v2931 = vadd.f32 %v2929, %v2930
        %v2932 = vrot.slane %v2931, 1
        %v2933 = vadd.f32 %v2931, %v2932
        %v2934 = vsel %vm2539, %v2866, 0.0
        %v2935 = vrot.slane %v2934, 4
        %v2936 = vadd.f32 %v2934, %v2935
        %v2937 = vrot.slane %v2936, 2
        %v2938 = vadd.f32 %v2936, %v2937
        %v2939 = vrot.slane %v2938, 1
        %v2940 = vadd.f32 %v2938, %v2939
        %v2941 = vsel %vm2539, %v2867, 0.0
        %v2942 = vrot.slane %v2941, 4
        %v2943 = vadd.f32 %v2941, %v2942
        %v2944 = vrot.slane %v2943, 2
        %v2945 = vadd.f32 %v2943, %v2944
        %v2946 = vrot.slane %v2945, 1
        %v2947 = vadd.f32 %v2945, %v2946
        %v2948 = vsel %vm2539, %v2868, 0.0
        %v2949 = vrot.slane %v2948, 4
        %v2950 = vadd.f32 %v2948, %v2949
        %v2951 = vrot.slane %v2950, 2
        %v2952 = vadd.f32 %v2950, %v2951
        %v2953 = vrot.slane %v2952, 1
        %v2954 = vadd.f32 %v2952, %v2953
        %v2955 = vsel %vm2539, %v2869, 0.0
        %v2956 = vrot.slane %v2955, 4
        %v2957 = vadd.f32 %v2955, %v2956
        %v2958 = vrot.slane %v2957, 2
        %v2959 = vadd.f32 %v2957, %v2958
        %v2960 = vrot.slane %v2959, 1
        %v2961 = vadd.f32 %v2959, %v2960
        %v2962 = vsel %vm2539, %v2870, 0.0
        %v2963 = vrot.slane %v2962, 4
        %v2964 = vadd.f32 %v2962, %v2963
        %v2965 = vrot.slane %v2964, 2
        %v2966 = vadd.f32 %v2964, %v2965
        %v2967 = vrot.slane %v2966, 1
        %v2968 = vadd.f32 %v2966, %v2967
        %v2969 = vsel %vm2539, %v2871, 0.0
        %v2970 = vrot.slane %v2969, 4
        %v2971 = vadd.f32 %v2969, %v2970
        %v2972 = vrot.slane %v2971, 2
        %v2973 = vadd.f32 %v2971, %v2972
        %v2974 = vrot.slane %v2973, 1
        %v2975 = vadd.f32 %v2973, %v2974
        %v2976 = vsel %vm2539, %v2872, 0.0
        %v2977 = vrot.slane %v2976, 4
        %v2978 = vadd.f32 %v2976, %v2977
        %v2979 = vrot.slane %v2978, 2
        %v2980 = vadd.f32 %v2978, %v2979
        %v2981 = vrot.slane %v2980, 1
        %v2982 = vadd.f32 %v2980, %v2981
        %v2983 = vsel %vm2539, %v2873, 0.0
        %v2984 = vrot.slane %v2983, 4
        %v2985 = vadd.f32 %v2983, %v2984
        %v2986 = vrot.slane %v2985, 2
        %v2987 = vadd.f32 %v2985, %v2986
        %v2988 = vrot.slane %v2987, 1
        %v2989 = vadd.f32 %v2987, %v2988
        %v2990 = vsel %vm2539, %v2874, 0.0
        %v2991 = vrot.slane %v2990, 4
        %v2992 = vadd.f32 %v2990, %v2991
        %v2993 = vrot.slane %v2992, 2
        %v2994 = vadd.f32 %v2992, %v2993
        %v2995 = vrot.slane %v2994, 1
        %v2996 = vadd.f32 %v2994, %v2995
        %v2997 = vsel %vm2539, %v2875, 0.0
        %v2998 = vrot.slane %v2997, 4
        %v2999 = vadd.f32 %v2997, %v2998
        %v3000 = vrot.slane %v2999, 2
        %v3001 = vadd.f32 %v2999, %v3000
        %v3002 = vrot.slane %v3001, 1
        %v3003 = vadd.f32 %v3001, %v3002
        %v3004 = vsel %vm2539, %v2876, 0.0
        %v3005 = vrot.slane %v3004, 4
        %v3006 = vadd.f32 %v3004, %v3005
        %v3007 = vrot.slane %v3006, 2
        %v3008 = vadd.f32 %v3006, %v3007
        %v3009 = vrot.slane %v3008, 1
        %v3010 = vadd.f32 %v3008, %v3009
        %v3011 = vsel %vm2539, %v2877, 0.0
        %v3012 = vrot.slane %v3011, 4
        %v3013 = vadd.f32 %v3011, %v3012
        %v3014 = vrot.slane %v3013, 2
        %v3015 = vadd.f32 %v3013, %v3014
        %v3016 = vrot.slane %v3015, 1
        %v3017 = vadd.f32 %v3015, %v3016
        %v3018 = vsel %vm2539, %v2878, 0.0
        %v3019 = vrot.slane %v3018, 4
        %v3020 = vadd.f32 %v3018, %v3019
        %v3021 = vrot.slane %v3020, 2
        %v3022 = vadd.f32 %v3020, %v3021
        %v3023 = vrot.slane %v3022, 1
        %v3024 = vadd.f32 %v3022, %v3023
        %v3025 = vsel %vm2539, %v2879, 0.0
        %v3026 = vrot.slane %v3025, 4
        %v3027 = vadd.f32 %v3025, %v3026
        %v3028 = vrot.slane %v3027, 2
        %v3029 = vadd.f32 %v3027, %v3028
        %v3030 = vrot.slane %v3029, 1
        %v3031 = vadd.f32 %v3029, %v3030
        %v3032 = vsel %vm2539, %v2880, 0.0
        %v3033 = vrot.slane %v3032, 4
        %v3034 = vadd.f32 %v3032, %v3033
        %v3035 = vrot.slane %v3034, 2
        %v3036 = vadd.f32 %v3034, %v3035
        %v3037 = vrot.slane %v3036, 1
        %v3038 = vadd.f32 %v3036, %v3037
        %v3039 = vsel %vm2539, %v2881, 0.0
        %v3040 = vrot.slane %v3039, 4
        %v3041 = vadd.f32 %v3039, %v3040
        %v3042 = vrot.slane %v3041, 2
        %v3043 = vadd.f32 %v3041, %v3042
        %v3044 = vrot.slane %v3043, 1
        %v3045 = vadd.f32 %v3043, %v3044
        %v3046 = vsel %vm2539, %v2882, 0.0
        %v3047 = vrot.slane %v3046, 4
        %v3048 = vadd.f32 %v3046, %v3047
        %v3049 = vrot.slane %v3048, 2
        %v3050 = vadd.f32 %v3048, %v3049
        %v3051 = vrot.slane %v3050, 1
        %v3052 = vadd.f32 %v3050, %v3051
        %v3053 = vsel %vm2539, %v2883, 0.0
        %v3054 = vrot.slane %v3053, 4
        %v3055 = vadd.f32 %v3053, %v3054
        %v3056 = vrot.slane %v3055, 2
        %v3057 = vadd.f32 %v3055, %v3056
        %v3058 = vrot.slane %v3057, 1
        %v3059 = vadd.f32 %v3057, %v3058
        %v3060 = vsel %vm2539, %v2884, 0.0
        %v3061 = vrot.slane %v3060, 4
        %v3062 = vadd.f32 %v3060, %v3061
        %v3063 = vrot.slane %v3062, 2
        %v3064 = vadd.f32 %v3062, %v3063
        %v3065 = vrot.slane %v3064, 1
        %v3066 = vadd.f32 %v3064, %v3065
        %v3067 = vsel %vm2539, %v2885, 0.0
        %v3068 = vrot.slane %v3067, 4
        %v3069 = vadd.f32 %v3067, %v3068
        %v3070 = vrot.slane %v3069, 2
        %v3071 = vadd.f32 %v3069, %v3070
        %v3072 = vrot.slane %v3071, 1
        %v3073 = vadd.f32 %v3071, %v3072
        %v3074 = vsel %vm2539, %v2886, 0.0
        %v3075 = vrot.slane %v3074, 4
        %v3076 = vadd.f32 %v3074, %v3075
        %v3077 = vrot.slane %v3076, 2
        %v3078 = vadd.f32 %v3076, %v3077
        %v3079 = vrot.slane %v3078, 1
        %v3080 = vadd.f32 %v3078, %v3079
        %v3081 = vsel %vm2539, %v2887, 0.0
        %v3082 = vrot.slane %v3081, 4
        %v3083 = vadd.f32 %v3081, %v3082
        %v3084 = vrot.slane %v3083, 2
        %v3085 = vadd.f32 %v3083, %v3084
        %v3086 = vrot.slane %v3085, 1
        %v3087 = vadd.f32 %v3085, %v3086
        %v3088 = vsel %vm2539, %v2888, 0.0
        %v3089 = vrot.slane %v3088, 4
        %v3090 = vadd.f32 %v3088, %v3089
        %v3091 = vrot.slane %v3090, 2
        %v3092 = vadd.f32 %v3090, %v3091
        %v3093 = vrot.slane %v3092, 1
        %v3094 = vadd.f32 %v3092, %v3093
        %v3095 = vsel %vm2539, %v2889, 0.0
        %v3096 = vrot.slane %v3095, 4
        %v3097 = vadd.f32 %v3095, %v3096
        %v3098 = vrot.slane %v3097, 2
        %v3099 = vadd.f32 %v3097, %v3098
        %v3100 = vrot.slane %v3099, 1
        %v3101 = vadd.f32 %v3099, %v3100
        %v3102 = vsel %vm2539, %v2890, 0.0
        %v3103 = vrot.slane %v3102, 4
        %v3104 = vadd.f32 %v3102, %v3103
        %v3105 = vrot.slane %v3104, 2
        %v3106 = vadd.f32 %v3104, %v3105
        %v3107 = vrot.slane %v3106, 1
        %v3108 = vadd.f32 %v3106, %v3107
        %v3109 = vsel %vm2539, %v2891, 0.0
        %v3110 = vrot.slane %v3109, 4
        %v3111 = vadd.f32 %v3109, %v3110
        %v3112 = vrot.slane %v3111, 2
        %v3113 = vadd.f32 %v3111, %v3112
        %v3114 = vrot.slane %v3113, 1
        %v3115 = vadd.f32 %v3113, %v3114
        %v3116 = vrcp.pop 8.0
        %v3117 = vmul.f32 %v2898, %v3116
        %v3118 = vmul.f32 %v2905, %v3116
        %v3119 = vmul.f32 %v2912, %v3116
        %v3120 = vmul.f32 %v2919, %v3116
        %v3121 = vmul.f32 %v2926, %v3116
        %v3122 = vmul.f32 %v2933, %v3116
        %v3123 = vmul.f32 %v2940, %v3116
        %v3124 = vmul.f32 %v2947, %v3116
        %v3125 = vmul.f32 %v2954, %v3116
        %v3126 = vmul.f32 %v2961, %v3116
        %v3127 = vmul.f32 %v2968, %v3116
        %v3128 = vmul.f32 %v2975, %v3116
        %v3129 = vmul.f32 %v2982, %v3116
        %v3130 = vmul.f32 %v2989, %v3116
        %v3131 = vmul.f32 %v2996, %v3116
        %v3132 = vmul.f32 %v3003, %v3116
        %v3133 = vmul.f32 %v3010, %v3116
        %v3134 = vmul.f32 %v3017, %v3116
        %v3135 = vmul.f32 %v3024, %v3116
        %v3136 = vmul.f32 %v3031, %v3116
        %v3137 = vmul.f32 %v3038, %v3116
        %v3138 = vmul.f32 %v3045, %v3116
        %v3139 = vmul.f32 %v3052, %v3116
        %v3140 = vmul.f32 %v3059, %v3116
        %v3141 = vmul.f32 %v3066, %v3116
        %v3142 = vmul.f32 %v3073, %v3116
        %v3143 = vmul.f32 %v3080, %v3116
        %v3144 = vmul.f32 %v3087, %v3116
        %v3145 = vmul.f32 %v3094, %v3116
        %v3146 = vmul.f32 %v3101, %v3116
        %v3147 = vmul.f32 %v3108, %v3116
        %v3148 = vmul.f32 %v3115, %v3116
        %3150 = vbcast.lane.b32.xlu0 %v3117, 256
        %v3151 = vpop.permute.xlu0 %3150
        %3153 = vbcast.lane.b32.xlu0 %v3118, 256
        %v3154 = vpop.permute.xlu0 %3153
        %3156 = vbcast.lane.b32.xlu0 %v3119, 256
        %v3157 = vpop.permute.xlu0 %3156
        %3159 = vbcast.lane.b32.xlu0 %v3120, 256
        %v3160 = vpop.permute.xlu0 %3159
        %3162 = vbcast.lane.b32.xlu0 %v3121, 256
        %v3163 = vpop.permute.xlu0 %3162
        %3165 = vbcast.lane.b32.xlu0 %v3122, 256
        %v3166 = vpop.permute.xlu0 %3165
        %3168 = vbcast.lane.b32.xlu0 %v3123, 256
        %v3169 = vpop.permute.xlu0 %3168
        %3171 = vbcast.lane.b32.xlu0 %v3124, 256
        %v3172 = vpop.permute.xlu0 %3171
        %3174 = vbcast.lane.b32.xlu0 %v3125, 256
        %v3175 = vpop.permute.xlu0 %3174
        %3177 = vbcast.lane.b32.xlu0 %v3126, 256
        %v3178 = vpop.permute.xlu0 %3177
        %3180 = vbcast.lane.b32.xlu0 %v3127, 256
        %v3181 = vpop.permute.xlu0 %3180
        %3183 = vbcast.lane.b32.xlu0 %v3128, 256
        %v3184 = vpop.permute.xlu0 %3183
        %3186 = vbcast.lane.b32.xlu0 %v3129, 256
        %v3187 = vpop.permute.xlu0 %3186
        %3189 = vbcast.lane.b32.xlu0 %v3130, 256
        %v3190 = vpop.permute.xlu0 %3189
        %3192 = vbcast.lane.b32.xlu0 %v3131, 256
        %v3193 = vpop.permute.xlu0 %3192
        %3195 = vbcast.lane.b32.xlu0 %v3132, 256
        %v3196 = vpop.permute.xlu0 %3195
        %3198 = vbcast.lane.b32.xlu0 %v3133, 256
        %v3199 = vpop.permute.xlu0 %3198
        %3201 = vbcast.lane.b32.xlu0 %v3134, 256
        %v3202 = vpop.permute.xlu0 %3201
        %3204 = vbcast.lane.b32.xlu0 %v3135, 256
        %v3205 = vpop.permute.xlu0 %3204
        %3207 = vbcast.lane.b32.xlu0 %v3136, 256
        %v3208 = vpop.permute.xlu0 %3207
        %3210 = vbcast.lane.b32.xlu0 %v3137, 256
        %v3211 = vpop.permute.xlu0 %3210
        %3213 = vbcast.lane.b32.xlu0 %v3138, 256
        %v3214 = vpop.permute.xlu0 %3213
        %3216 = vbcast.lane.b32.xlu0 %v3139, 256
        %v3217 = vpop.permute.xlu0 %3216
        %3219 = vbcast.lane.b32.xlu0 %v3140, 256
        %v3220 = vpop.permute.xlu0 %3219
        %3222 = vbcast.lane.b32.xlu0 %v3141, 256
        %v3223 = vpop.permute.xlu0 %3222
        %3225 = vbcast.lane.b32.xlu0 %v3142, 256
        %v3226 = vpop.permute.xlu0 %3225
        %3228 = vbcast.lane.b32.xlu0 %v3143, 256
        %v3229 = vpop.permute.xlu0 %3228
        %3231 = vbcast.lane.b32.xlu0 %v3144, 256
        %v3232 = vpop.permute.xlu0 %3231
        %3234 = vbcast.lane.b32.xlu0 %v3145, 256
        %v3235 = vpop.permute.xlu0 %3234
        %3237 = vbcast.lane.b32.xlu0 %v3146, 256
        %v3238 = vpop.permute.xlu0 %3237
        %3240 = vbcast.lane.b32.xlu0 %v3147, 256
        %v3241 = vpop.permute.xlu0 %3240
        %3243 = vbcast.lane.b32.xlu0 %v3148, 256
        %v3244 = vpop.permute.xlu0 %3243
        %v3245 = vmul.f32 %v3151, %v1069
        %v3246 = vmul.f32 %v3154, %v1072
        %v3247 = vmul.f32 %v3157, %v1077
        %v3248 = vmul.f32 %v3160, %v1080
        %v3249 = vmul.f32 %v3163, %v1085
        %v3250 = vmul.f32 %v3166, %v1088
        %v3251 = vmul.f32 %v3169, %v1093
        %v3252 = vmul.f32 %v3172, %v1096
        %v3253 = vmul.f32 %v3175, %v1101
        %v3254 = vmul.f32 %v3178, %v1104
        %v3255 = vmul.f32 %v3181, %v1109
        %v3256 = vmul.f32 %v3184, %v1112
        %v3257 = vmul.f32 %v3187, %v1117
        %v3258 = vmul.f32 %v3190, %v1120
        %v3259 = vmul.f32 %v3193, %v1125
        %v3260 = vmul.f32 %v3196, %v1128
        %v3261 = vmul.f32 %v3199, %v1133
        %v3262 = vmul.f32 %v3202, %v1136
        %v3263 = vmul.f32 %v3205, %v1141
        %v3264 = vmul.f32 %v3208, %v1144
        %v3265 = vmul.f32 %v3211, %v1149
        %v3266 = vmul.f32 %v3214, %v1152
        %v3267 = vmul.f32 %v3217, %v1157
        %v3268 = vmul.f32 %v3220, %v1160
        %v3269 = vmul.f32 %v3223, %v1165
        %v3270 = vmul.f32 %v3226, %v1168
        %v3271 = vmul.f32 %v3229, %v1173
        %v3272 = vmul.f32 %v3232, %v1176
        %v3273 = vmul.f32 %v3235, %v1181
        %v3274 = vmul.f32 %v3238, %v1184
        %v3275 = vmul.f32 %v3241, %v1189
        %v3276 = vmul.f32 %v3244, %v1192
        %v3277 = vrot.slane %v3245, 4
        %v3278 = vadd.f32 %v3245, %v3277
        %v3279 = vrot.slane %v3278, 2
        %v3280 = vadd.f32 %v3278, %v3279
        %v3281 = vrot.slane %v3280, 1
        %v3282 = vadd.f32 %v3280, %v3281
        %v3283 = vrot.slane %v3246, 4
        %v3284 = vadd.f32 %v3246, %v3283
        %v3285 = vrot.slane %v3284, 2
        %v3286 = vadd.f32 %v3284, %v3285
        %v3287 = vrot.slane %v3286, 1
        %v3288 = vadd.f32 %v3286, %v3287
        %v3289 = vrot.slane %v3247, 4
        %v3290 = vadd.f32 %v3247, %v3289
        %v3291 = vrot.slane %v3290, 2
        %v3292 = vadd.f32 %v3290, %v3291
        %v3293 = vrot.slane %v3292, 1
        %v3294 = vadd.f32 %v3292, %v3293
        %v3295 = vrot.slane %v3248, 4
        %v3296 = vadd.f32 %v3248, %v3295
        %v3297 = vrot.slane %v3296, 2
        %v3298 = vadd.f32 %v3296, %v3297
        %v3299 = vrot.slane %v3298, 1
        %v3300 = vadd.f32 %v3298, %v3299
        %v3301 = vrot.slane %v3249, 4
        %v3302 = vadd.f32 %v3249, %v3301
        %v3303 = vrot.slane %v3302, 2
        %v3304 = vadd.f32 %v3302, %v3303
        %v3305 = vrot.slane %v3304, 1
        %v3306 = vadd.f32 %v3304, %v3305
        %v3307 = vrot.slane %v3250, 4
        %v3308 = vadd.f32 %v3250, %v3307
        %v3309 = vrot.slane %v3308, 2
        %v3310 = vadd.f32 %v3308, %v3309
        %v3311 = vrot.slane %v3310, 1
        %v3312 = vadd.f32 %v3310, %v3311
        %v3313 = vrot.slane %v3251, 4
        %v3314 = vadd.f32 %v3251, %v3313
        %v3315 = vrot.slane %v3314, 2
        %v3316 = vadd.f32 %v3314, %v3315
        %v3317 = vrot.slane %v3316, 1
        %v3318 = vadd.f32 %v3316, %v3317
        %v3319 = vrot.slane %v3252, 4
        %v3320 = vadd.f32 %v3252, %v3319
        %v3321 = vrot.slane %v3320, 2
        %v3322 = vadd.f32 %v3320, %v3321
        %v3323 = vrot.slane %v3322, 1
        %v3324 = vadd.f32 %v3322, %v3323
        %v3325 = vrot.slane %v3253, 4
        %v3326 = vadd.f32 %v3253, %v3325
        %v3327 = vrot.slane %v3326, 2
        %v3328 = vadd.f32 %v3326, %v3327
        %v3329 = vrot.slane %v3328, 1
        %v3330 = vadd.f32 %v3328, %v3329
        %v3331 = vrot.slane %v3254, 4
        %v3332 = vadd.f32 %v3254, %v3331
        %v3333 = vrot.slane %v3332, 2
        %v3334 = vadd.f32 %v3332, %v3333
        %v3335 = vrot.slane %v3334, 1
        %v3336 = vadd.f32 %v3334, %v3335
        %v3337 = vrot.slane %v3255, 4
        %v3338 = vadd.f32 %v3255, %v3337
        %v3339 = vrot.slane %v3338, 2
        %v3340 = vadd.f32 %v3338, %v3339
        %v3341 = vrot.slane %v3340, 1
        %v3342 = vadd.f32 %v3340, %v3341
        %v3343 = vrot.slane %v3256, 4
        %v3344 = vadd.f32 %v3256, %v3343
        %v3345 = vrot.slane %v3344, 2
        %v3346 = vadd.f32 %v3344, %v3345
        %v3347 = vrot.slane %v3346, 1
        %v3348 = vadd.f32 %v3346, %v3347
        %v3349 = vrot.slane %v3257, 4
        %v3350 = vadd.f32 %v3257, %v3349
        %v3351 = vrot.slane %v3350, 2
        %v3352 = vadd.f32 %v3350, %v3351
        %v3353 = vrot.slane %v3352, 1
        %v3354 = vadd.f32 %v3352, %v3353
        %v3355 = vrot.slane %v3258, 4
        %v3356 = vadd.f32 %v3258, %v3355
        %v3357 = vrot.slane %v3356, 2
        %v3358 = vadd.f32 %v3356, %v3357
        %v3359 = vrot.slane %v3358, 1
        %v3360 = vadd.f32 %v3358, %v3359
        %v3361 = vrot.slane %v3259, 4
        %v3362 = vadd.f32 %v3259, %v3361
        %v3363 = vrot.slane %v3362, 2
        %v3364 = vadd.f32 %v3362, %v3363
        %v3365 = vrot.slane %v3364, 1
        %v3366 = vadd.f32 %v3364, %v3365
        %v3367 = vrot.slane %v3260, 4
        %v3368 = vadd.f32 %v3260, %v3367
        %v3369 = vrot.slane %v3368, 2
        %v3370 = vadd.f32 %v3368, %v3369
        %v3371 = vrot.slane %v3370, 1
        %v3372 = vadd.f32 %v3370, %v3371
        %v3373 = vrot.slane %v3261, 4
        %v3374 = vadd.f32 %v3261, %v3373
        %v3375 = vrot.slane %v3374, 2
        %v3376 = vadd.f32 %v3374, %v3375
        %v3377 = vrot.slane %v3376, 1
        %v3378 = vadd.f32 %v3376, %v3377
        %v3379 = vrot.slane %v3262, 4
        %v3380 = vadd.f32 %v3262, %v3379
        %v3381 = vrot.slane %v3380, 2
        %v3382 = vadd.f32 %v3380, %v3381
        %v3383 = vrot.slane %v3382, 1
        %v3384 = vadd.f32 %v3382, %v3383
        %v3385 = vrot.slane %v3263, 4
        %v3386 = vadd.f32 %v3263, %v3385
        %v3387 = vrot.slane %v3386, 2
        %v3388 = vadd.f32 %v3386, %v3387
        %v3389 = vrot.slane %v3388, 1
        %v3390 = vadd.f32 %v3388, %v3389
        %v3391 = vrot.slane %v3264, 4
        %v3392 = vadd.f32 %v3264, %v3391
        %v3393 = vrot.slane %v3392, 2
        %v3394 = vadd.f32 %v3392, %v3393
        %v3395 = vrot.slane %v3394, 1
        %v3396 = vadd.f32 %v3394, %v3395
        %v3397 = vrot.slane %v3265, 4
        %v3398 = vadd.f32 %v3265, %v3397
        %v3399 = vrot.slane %v3398, 2
        %v3400 = vadd.f32 %v3398, %v3399
        %v3401 = vrot.slane %v3400, 1
        %v3402 = vadd.f32 %v3400, %v3401
        %v3403 = vrot.slane %v3266, 4
        %v3404 = vadd.f32 %v3266, %v3403
        %v3405 = vrot.slane %v3404, 2
        %v3406 = vadd.f32 %v3404, %v3405
        %v3407 = vrot.slane %v3406, 1
        %v3408 = vadd.f32 %v3406, %v3407
        %v3409 = vrot.slane %v3267, 4
        %v3410 = vadd.f32 %v3267, %v3409
        %v3411 = vrot.slane %v3410, 2
        %v3412 = vadd.f32 %v3410, %v3411
        %v3413 = vrot.slane %v3412, 1
        %v3414 = vadd.f32 %v3412, %v3413
        %v3415 = vrot.slane %v3268, 4
        %v3416 = vadd.f32 %v3268, %v3415
        %v3417 = vrot.slane %v3416, 2
        %v3418 = vadd.f32 %v3416, %v3417
        %v3419 = vrot.slane %v3418, 1
        %v3420 = vadd.f32 %v3418, %v3419
        %v3421 = vrot.slane %v3269, 4
        %v3422 = vadd.f32 %v3269, %v3421
        %v3423 = vrot.slane %v3422, 2
        %v3424 = vadd.f32 %v3422, %v3423
        %v3425 = vrot.slane %v3424, 1
        %v3426 = vadd.f32 %v3424, %v3425
        %v3427 = vrot.slane %v3270, 4
        %v3428 = vadd.f32 %v3270, %v3427
        %v3429 = vrot.slane %v3428, 2
        %v3430 = vadd.f32 %v3428, %v3429
        %v3431 = vrot.slane %v3430, 1
        %v3432 = vadd.f32 %v3430, %v3431
        %v3433 = vrot.slane %v3271, 4
        %v3434 = vadd.f32 %v3271, %v3433
        %v3435 = vrot.slane %v3434, 2
        %v3436 = vadd.f32 %v3434, %v3435
        %v3437 = vrot.slane %v3436, 1
        %v3438 = vadd.f32 %v3436, %v3437
        %v3439 = vrot.slane %v3272, 4
        %v3440 = vadd.f32 %v3272, %v3439
        %v3441 = vrot.slane %v3440, 2
        %v3442 = vadd.f32 %v3440, %v3441
        %v3443 = vrot.slane %v3442, 1
        %v3444 = vadd.f32 %v3442, %v3443
        %v3445 = vrot.slane %v3273, 4
        %v3446 = vadd.f32 %v3273, %v3445
        %v3447 = vrot.slane %v3446, 2
        %v3448 = vadd.f32 %v3446, %v3447
        %v3449 = vrot.slane %v3448, 1
        %v3450 = vadd.f32 %v3448, %v3449
        %v3451 = vrot.slane %v3274, 4
        %v3452 = vadd.f32 %v3274, %v3451
        %v3453 = vrot.slane %v3452, 2
        %v3454 = vadd.f32 %v3452, %v3453
        %v3455 = vrot.slane %v3454, 1
        %v3456 = vadd.f32 %v3454, %v3455
        %v3457 = vrot.slane %v3275, 4
        %v3458 = vadd.f32 %v3275, %v3457
        %v3459 = vrot.slane %v3458, 2
        %v3460 = vadd.f32 %v3458, %v3459
        %v3461 = vrot.slane %v3460, 1
        %v3462 = vadd.f32 %v3460, %v3461
        %v3463 = vrot.slane %v3276, 4
        %v3464 = vadd.f32 %v3276, %v3463
        %v3465 = vrot.slane %v3464, 2
        %v3466 = vadd.f32 %v3464, %v3465
        %v3467 = vrot.slane %v3466, 1
        %v3468 = vadd.f32 %v3466, %v3467
        %v3469 = vpack.c.bf16 %v3282, %v3282
        %v3470 = vpack.c.bf16 %v3288, %v3288
        %v3471 = vpack.c.bf16 %v3294, %v3294
        %v3472 = vpack.c.bf16 %v3300, %v3300
        %v3473 = vpack.c.bf16 %v3306, %v3306
        %v3474 = vpack.c.bf16 %v3312, %v3312
        %v3475 = vpack.c.bf16 %v3318, %v3318
        %v3476 = vpack.c.bf16 %v3324, %v3324
        %v3477 = vpack.c.bf16 %v3330, %v3330
        %v3478 = vpack.c.bf16 %v3336, %v3336
        %v3479 = vpack.c.bf16 %v3342, %v3342
        %v3480 = vpack.c.bf16 %v3348, %v3348
        %v3481 = vpack.c.bf16 %v3354, %v3354
        %v3482 = vpack.c.bf16 %v3360, %v3360
        %v3483 = vpack.c.bf16 %v3366, %v3366
        %v3484 = vpack.c.bf16 %v3372, %v3372
        %v3485 = vpack.c.bf16 %v3378, %v3378
        %v3486 = vpack.c.bf16 %v3384, %v3384
        %v3487 = vpack.c.bf16 %v3390, %v3390
        %v3488 = vpack.c.bf16 %v3396, %v3396
        %v3489 = vpack.c.bf16 %v3402, %v3402
        %v3490 = vpack.c.bf16 %v3408, %v3408
        %v3491 = vpack.c.bf16 %v3414, %v3414
        %v3492 = vpack.c.bf16 %v3420, %v3420
        %v3493 = vpack.c.bf16 %v3426, %v3426
        %v3494 = vpack.c.bf16 %v3432, %v3432
        %v3495 = vpack.c.bf16 %v3438, %v3438
        %v3496 = vpack.c.bf16 %v3444, %v3444
        %v3497 = vpack.c.bf16 %v3450, %v3450
        %v3498 = vpack.c.bf16 %v3456, %v3456
        %v3499 = vpack.c.bf16 %v3462, %v3462
        %v3500 = vpack.c.bf16 %v3468, %v3468
        %v3501 = vld [vmem:[%s3] sm:$0xf]
        %v3502 = vld [vmem:[%s3 + $0x4] sm:$0xf]
        %v3503 = vld [vmem:[%s3 + $0x8] sm:$0xf]
        %v3504 = vld [vmem:[%s3 + $0xc] sm:$0xf]
        %v3505 = vld [vmem:[%s3 + $0x10] sm:$0xf]
        %v3506 = vld [vmem:[%s3 + $0x14] sm:$0xf]
        %v3507 = vld [vmem:[%s3 + $0x18] sm:$0xf]
        %v3508 = vld [vmem:[%s3 + $0x1c] sm:$0xf]
        %v3509 = vld [vmem:[%s3 + $0x20] sm:$0xf]
        %v3510 = vld [vmem:[%s3 + $0x24] sm:$0xf]
        %v3511 = vld [vmem:[%s3 + $0x28] sm:$0xf]
        %v3512 = vld [vmem:[%s3 + $0x2c] sm:$0xf]
        %v3513 = vld [vmem:[%s3 + $0x30] sm:$0xf]
        %v3514 = vld [vmem:[%s3 + $0x34] sm:$0xf]
        %v3515 = vld [vmem:[%s3 + $0x38] sm:$0xf]
        %v3516 = vld [vmem:[%s3 + $0x3c] sm:$0xf]
        %v3517 = vld [vmem:[%s6] sm:$0x1]
        %v3519 = vlaneseq
        %v3520 = vshrl.u32 %v3519, 7
        %v3521 = vsub.s32 0, %v3520
        %v3522 = vrot.slane %v3517, %v3521
        %v3556 = vunpack.c.l.b16 %v3469
        %v3557 = vunpack.c.l.b16 %v3470
        %v3558 = vunpack.c.l.b16 %v3471
        %v3559 = vunpack.c.l.b16 %v3472
        %v3560 = vunpack.c.l.b16 %v3473
        %v3561 = vunpack.c.l.b16 %v3474
        %v3562 = vunpack.c.l.b16 %v3475
        %v3563 = vunpack.c.l.b16 %v3476
        %v3564 = vunpack.c.l.b16 %v3477
        %v3565 = vunpack.c.l.b16 %v3478
        %v3566 = vunpack.c.l.b16 %v3479
        %v3567 = vunpack.c.l.b16 %v3480
        %v3568 = vunpack.c.l.b16 %v3481
        %v3569 = vunpack.c.l.b16 %v3482
        %v3570 = vunpack.c.l.b16 %v3483
        %v3571 = vunpack.c.l.b16 %v3484
        %v3572 = vunpack.c.l.b16 %v3485
        %v3573 = vunpack.c.l.b16 %v3486
        %v3574 = vunpack.c.l.b16 %v3487
        %v3575 = vunpack.c.l.b16 %v3488
        %v3576 = vunpack.c.l.b16 %v3489
        %v3577 = vunpack.c.l.b16 %v3490
        %v3578 = vunpack.c.l.b16 %v3491
        %v3579 = vunpack.c.l.b16 %v3492
        %v3580 = vunpack.c.l.b16 %v3493
        %v3581 = vunpack.c.l.b16 %v3494
        %v3582 = vunpack.c.l.b16 %v3495
        %v3583 = vunpack.c.l.b16 %v3496
        %v3584 = vunpack.c.l.b16 %v3497
        %v3585 = vunpack.c.l.b16 %v3498
        %v3586 = vunpack.c.l.b16 %v3499
        %v3587 = vunpack.c.l.b16 %v3500
        %vm3588 = vcmask 1041409
        %v3589 = vsel %vm3588, %v3557, %v3556
        %vm3590 = vcmask 1042434
        %v3591 = vsel %vm3590, %v3558, %v3589
        %vm3592 = vcmask 1043459
        %v3593 = vsel %vm3592, %v3559, %v3591
        %vm3594 = vcmask 1044484
        %v3595 = vsel %vm3594, %v3560, %v3593
        %vm3596 = vcmask 1045509
        %v3597 = vsel %vm3596, %v3561, %v3595
        %vm3598 = vcmask 1046534
        %v3599 = vsel %vm3598, %v3562, %v3597
        %vm3600 = vcmask 1047559
        %v3601 = vsel %vm3600, %v3563, %v3599
        %v3602 = vsel %vm3588, %v3565, %v3564
        %v3603 = vsel %vm3590, %v3566, %v3602
        %v3604 = vsel %vm3592, %v3567, %v3603
        %v3605 = vsel %vm3594, %v3568, %v3604
        %v3606 = vsel %vm3596, %v3569, %v3605
        %v3607 = vsel %vm3598, %v3570, %v3606
        %v3608 = vsel %vm3600, %v3571, %v3607
        %v3609 = vsel %vm3588, %v3573, %v3572
        %v3610 = vsel %vm3590, %v3574, %v3609
        %v3611 = vsel %vm3592, %v3575, %v3610
        %v3612 = vsel %vm3594, %v3576, %v3611
        %v3613 = vsel %vm3596, %v3577, %v3612
        %v3614 = vsel %vm3598, %v3578, %v3613
        %v3615 = vsel %vm3600, %v3579, %v3614
        %v3616 = vsel %vm3588, %v3581, %v3580
        %v3617 = vsel %vm3590, %v3582, %v3616
        %v3618 = vsel %vm3592, %v3583, %v3617
        %v3619 = vsel %vm3594, %v3584, %v3618
        %v3620 = vsel %vm3596, %v3585, %v3619
        %v3621 = vsel %vm3598, %v3586, %v3620
        %v3622 = vsel %vm3600, %v3587, %v3621
        %v3623 = vpack.c.b16 %v3608, %v3601
        %v3624 = vpack.c.b16 %v3622, %v3615
        %v3643 = vunpack.c.l.b16 %v3501
        %v3644 = vunpack.c.l.b16 %v3502
        %v3645 = vunpack.c.l.b16 %v3503
        %v3646 = vunpack.c.l.b16 %v3504
        %v3647 = vunpack.c.l.b16 %v3505
        %v3648 = vunpack.c.l.b16 %v3506
        %v3649 = vunpack.c.l.b16 %v3507
        %v3650 = vunpack.c.l.b16 %v3508
        %v3651 = vunpack.c.l.b16 %v3509
        %v3652 = vunpack.c.l.b16 %v3510
        %v3653 = vunpack.c.l.b16 %v3511
        %v3654 = vunpack.c.l.b16 %v3512
        %v3655 = vunpack.c.l.b16 %v3513
        %v3656 = vunpack.c.l.b16 %v3514
        %v3657 = vunpack.c.l.b16 %v3515
        %v3658 = vunpack.c.l.b16 %v3516
        %v3659 = vpack.c.b16 %v3644, %v3643
        %v3660 = vpack.c.b16 %v3646, %v3645
        %v3661 = vpack.c.b16 %v3648, %v3647
        %v3662 = vpack.c.b16 %v3650, %v3649
        %v3663 = vpack.c.b16 %v3652, %v3651
        %v3664 = vpack.c.b16 %v3654, %v3653
        %v3665 = vpack.c.b16 %v3656, %v3655
        %v3666 = vpack.c.b16 %v3658, %v3657
        %3675 = vmatprep.subr.bf16.mxu0 0
        %3676 = vmatpush1.bf16.msra.mxu0 %v3666
        %3677 = vmatprep.subr.bf16.mxu0 0
        %3678 = vmatpush1.bf16.msra.mxu0 %v3665
        %3679 = vmatprep.subr.bf16.mxu0 0
        %3680 = vmatpush1.bf16.msra.mxu0 %v3664
        %3681 = vmatprep.subr.bf16.mxu0 0
        %3682 = vmatpush1.bf16.msra.mxu0 %v3663
        %3683 = vmatprep.subr.bf16.mxu0 0
        %3684 = vmatpush1.bf16.msra.mxu0 %v3662
        %3685 = vmatprep.subr.bf16.mxu0 0
        %3686 = vmatpush1.bf16.msra.mxu0 %v3661
        %3687 = vmatprep.subr.bf16.mxu0 0
        %3688 = vmatpush1.bf16.msra.mxu0 %v3660
        %3689 = vmatprep.subr.bf16.mxu0 0
        %3690 = vmatpush1.bf16.msra.mxu0 %v3659
        %3691 = vmatprep.subr.bf16.mxu0 0
        %3692 = vmatpush2.bf16.msra.mxu0 0
        %3693 = vmatprep.subr.bf16.mxu0 0
        %3694 = vmatpush2.bf16.msra.mxu0 0
        %3695 = vmatprep.subr.bf16.mxu0 0
        %3696 = vmatpush2.bf16.msra.mxu0 0
        %3697 = vmatprep.subr.bf16.mxu0 0
        %3698 = vmatpush2.bf16.msra.mxu0 0
        %3699 = vmatprep.subr.bf16.mxu0 0
        %3700 = vmatpush2.bf16.msra.mxu0 0
        %3701 = vmatprep.subr.bf16.mxu0 0
        %3702 = vmatpush2.bf16.msra.mxu0 0
        %3703 = vmatprep.subr.bf16.mxu0 0
        %3704 = vmatpush2.bf16.msra.mxu0 0
        %3705 = vmatprep.subr.bf16.mxu0 0
        %3706 = vmatpush2.bf16.msra.mxu0 0
        %3707 = vmatprep.mubr.bf16.mxu0 0
        %3708 = vmatmul.mubr.bf16.gmra.mxu0 %v3623
        %v3709 = vpop.f32.mrf.mxu0
        %v3710 = vadd.f32 %v3522, %v3709
        %v3711 = vpop.f32.mrf.mxu0
        %v3712 = vpop.f32.mrf.mxu0
        %v3713 = vadd.f32 %v3522, %v3712
        %v3714 = vpop.f32.mrf.mxu0
        %3715 = vmatprep.mubr.bf16.mxu0 0
        %3716 = vmatmul.mubr.bf16.gmra.mxu0 %v3624
        %v3717 = vpop.f32.mrf.mxu0
        %v3718 = vadd.f32 %v3522, %v3717
        %v3719 = vpop.f32.mrf.mxu0
        %v3720 = vpop.f32.mrf.mxu0
        %v3721 = vadd.f32 %v3522, %v3720
        %v3722 = vpop.f32.mrf.mxu0
        %3723 = vdwg.mxu0
        %3724 = vst [vmem:[%s272] sm:$0xff] %v3710
        %3725 = vst [vmem:[%s272 + $0x8] sm:$0xff] %v3713
        %3726 = vst [vmem:[%s272 + $0x10] sm:$0xff] %v3718
        %3727 = vst [vmem:[%s272 + $0x18] sm:$0xff] %v3721
        %s3728 = sand.u32 %s181, 1
        %s3729 = scalar_lea.sflag [#allocation3], %s3728
        %s3730 = sand.u32 %s181, 1
        %s3731 = smul.addr %s3730, 32
        %s3732 = scalar_lea.vmem [#allocation2], %s3731
        // Predicated region
        $region49: #{tpu_custom_call.1} parent=47 // pred_check
          %p3733 = pneg %p191
        $region50: #{tpu_custom_call.1} parent=47 // pred_check_branch
          %3735 = sbr.rel (%p3733) target = $region52
        $region51: #{tpu_custom_call.1} parent=47 // pred_region
          %s3736 = smul.u32 4, %s21
          %s3738 = ssub.s32 512, 512
          %3739 = vsyncadd %s3729, %s3738
          %s3740 = smul.addr %s3736, 128
          %s3741 = scalar_lea.hbm %s7, %s3740
          %s3742 = sshll.u32 %s3732, 4
          %s3743 = int_to_ptr.vmem [resolvable:$true] %s3742
          %3748 = dma.vmem_to_hbm [thread:$0]  %s3743, 512, %s3741, %s3729, 128, 128, 8
        $region52: #{tpu_custom_call.1} parent=47 // pred_fallthru
          _
      $region48: #{tpu_custom_call.1} parent=5 // pred_fallthru
        _
      %p3749 = scmp.le.s32.totalorder 2, %s16
      // Predicated region
      $region53: #{tpu_custom_call.1} parent=5 // pred_check
        %p3750 = pneg %p3749
      $region54: #{tpu_custom_call.1} parent=5 // pred_check_branch
        %3752 = sbr.rel (%p3750) target = $region56
      $region55: #{tpu_custom_call.1} parent=5 // pred_region
        %s3753 = ssub.s32 %s16, 2
        // Predicated region
        $region57: #{tpu_custom_call.1} parent=55 // pred_check
          %p3754 = pneg %p197
        $region58: #{tpu_custom_call.1} parent=55 // pred_check_branch
          %3756 = sbr.rel (%p3754) target = $region60
        $region59: #{tpu_custom_call.1} parent=55 // pred_region
          %s3757 = sand.u32 %s182, 1
          %s3758 = scalar_lea.sflag [#allocation3], %s3757
          %s3759 = sand.u32 %s182, 1
          %s3760 = smul.addr %s3759, 32
          %s3761 = scalar_lea.vmem [#allocation2], %s3760
          %3762 = dma.done %s3758, 512
        $region60: #{tpu_custom_call.1} parent=55 // pred_fallthru
          _
      $region56: #{tpu_custom_call.1} parent=5 // pred_fallthru
        _
    $region6: #{tpu_custom_call.1} parent=1 // loop_footer
      %s20 = sadd.s32 1, %s16
    $region7: #{tpu_custom_call.1} parent=1 // loop_footer_branch
      %15 = sbr.rel target = $region3
    $region8: #{tpu_custom_call.1} parent=1 // loop_exit
      _
    %3763 = vsyncpa [#allocation3], 1
    %s3764 = scalar_lea.sflag [#allocation3], 1
    %3765 = vsyncpa %s3764, 1

</llo_original>
